<compile_context>
chip_gen: v7x
topology: tpu7x:2x2x1
jax: 0.10.0
libtpu: 0.0.40
codegen_flags: <defaults>
</compile_context>

<pallas_src>
import functools

import numpy as np
import jax
import jax.numpy as jnp
from jax import lax
from jax.experimental import pallas as pl
from jax.experimental.pallas import tpu as pltpu

BN_EPS = 1e-5
# TODO(synk): BatchNorm is applied in eval mode with freshly-initialized running stats
# (mean=0, var=1, gamma=1, beta=0); trained running statistics / affine are not modeled.
BN_SCALE = float(1.0 / np.sqrt(1.0 + BN_EPS))
KS = 7
PAD = (KS - 1) // 2


# --------------------------------------------------------------------------------------
# Host-side helpers
# --------------------------------------------------------------------------------------
def _round_up(n, m):
    return (n + m - 1) // m * m


def _padded_vmem_bytes(shape, dtype):
    """VMEM footprint in native tiled layout (last dim -> 128 lanes,
    second-to-last -> 8*(4/itemsize) sublanes)."""
    itemsize = jnp.dtype(dtype).itemsize
    if len(shape) == 1:
        return _round_up(shape[0] * itemsize, 512)
    lane = _round_up(shape[-1], 128)
    sub = _round_up(shape[-2], 8 * max(1, 4 // itemsize))
    lead = 1
    for d in shape[:-2]:
        lead *= int(d)
    return lead * sub * lane * itemsize


def _device_kind():
    try:
        return jax.devices()[0].device_kind.lower()
    except Exception:
        return ""


def _band_matrices(w_gate, ws):
    """(2, 7, 7) conv taps -> (14, ws, ws) banded matrices (bf16).

    band[ci*7 + dy, k, j] = w_gate[ci, dy, k - j + PAD] if that tap is in [0, 7), else 0.
    For the vertically zero-padded pooled plane P_ci of shape (hs + 6, ws):
        conv_out = sum_{ci, dy} P_ci[dy:dy+hs, :] @ band[ci*7 + dy]
    so the horizontal taps AND the horizontal zero padding become one MXU matmul per
    (ci, dy) instead of 7 strided loads / lane shifts.  w_gate already carries BN scale.
    """
    k = jnp.arange(ws)[:, None]
    j = jnp.arange(ws)[None, :]
    dx = k - j + PAD
    valid = (dx >= 0) & (dx < KS)
    dxc = jnp.clip(dx, 0, KS - 1)
    bands = jnp.where(valid[None, None], w_gate[:, :, dxc], 0.0)   # (2, KS, ws, ws)
    return bands.reshape(2 * KS, ws, ws).astype(jnp.bfloat16)


def _pick_tb(B, C, H, W, x_dtype, fixed_bytes, budget_bytes, prefer_multi_step,
             block_cap_bytes=4 * 1024 * 1024):
    """Largest divisor of B whose (TB, C, H, W) block fits both the per-block cap and
    the full VMEM accounting.  On v7x prefer an even (>=2) number of grid steps so the
    'parallel' batch axis splits across both TensorCores."""
    divisors = [d for d in range(1, B + 1) if B % d == 0]
    feasible = []
    for d in divisors:
        blk = _padded_vmem_bytes((d, C, H, W), x_dtype)
        if blk <= block_cap_bytes and 4 * blk + fixed_bytes <= budget_bytes:
            feasible.append(d)
    if not feasible:
        feasible = [1]
    tb = max(feasible)
    if prefer_multi_step:
        even = [d for d in feasible if (B // d) % 2 == 0]
        multi = [d for d in feasible if (B // d) >= 2]
        if even:
            tb = max(even)
        elif multi:
            tb = max(multi)
    return tb


# --------------------------------------------------------------------------------------
# Kernel
# --------------------------------------------------------------------------------------
def _zero_halo(pad_ref, hs, ws):
    """Zero only the 3 top + 3 bottom halo rows; the interior is overwritten per image."""
    zero = jnp.zeros((PAD, ws), jnp.float32)
    for ci in range(2):
        pad_ref[ci, 0:PAD, :] = zero
        pad_ref[ci, PAD + hs:2 * PAD + hs, :] = zero


def _gate_scale(pad_ref, band_ref, mean2d, max2d, hs, ws, bias):
    """sigmoid(relu(BN(conv7x7([mean; max])))) on an (hs, ws) spatial plane.
    BN scale is pre-folded into band_ref and bias on the host."""
    pad_ref[0, PAD:PAD + hs, :] = mean2d.astype(jnp.float32)
    pad_ref[1, PAD:PAD + hs, :] = max2d.astype(jnp.float32)

    acc = jnp.zeros((hs, ws), jnp.float32)
    # 2 input channels x 7 vertical taps; horizontal taps live in the banded matrices
    # and run as single-pass bf16 matmuls on the (otherwise idle) MXU, f32 accumulation.
    for ci in range(2):
        for dy in range(KS):
            rows = pad_ref[ci, dy:dy + hs, :].astype(jnp.bfloat16)
            acc = acc + jnp.dot(rows, band_ref[ci * KS + dy],
                                preferred_element_type=jnp.float32)

    y = jnp.maximum(acc + bias, 0.0)      # (conv + bias) * BN_SCALE, already folded
    return jax.nn.sigmoid(y)


def _wta_kernel(x_ref, band_ch_ref, band_cw_ref, band_hw_ref, b_ref, sw_ref, o_ref,
                pad_ch, pad_cw, pad_hw, *, TB, C, H, W, ELEMWISE_F32):
    # Halo rows stay zero for the whole grid step (interior overwritten per image).
    _zero_halo(pad_ch, C, H)
    _zero_halo(pad_cw, C, W)
    _zero_halo(pad_hw, H, W)

    w0 = sw_ref[0]
    w1 = sw_ref[1]

    def body(bi, carry):
        x = x_ref[bi]                                   # (C, H, W)
        if ELEMWISE_F32:
            x = x.astype(jnp.float32)
        ew_dtype = x.dtype

        # ch gate (params 0): PyTorch permute (b,w,c,h) -> pool over W, plane (C, H)
        s_ch = _gate_scale(pad_ch, band_ch_ref,
                           jnp.mean(x, axis=2, dtype=jnp.float32),
                           jnp.max(x, axis=2), C, H, b_ref[0])
        # cw gate (params 1): permute (b,h,c,w) -> pool over H, plane (C, W)
        s_cw = _gate_scale(pad_cw, band_cw_ref,
                           jnp.mean(x, axis=1, dtype=jnp.float32),
                           jnp.max(x, axis=1), C, W, b_ref[1])
        # hw gate (params 2): native layout -> pool over C, plane (H, W)
        s_hw = _gate_scale(pad_hw, band_hw_ref,
                           jnp.mean(x, axis=0, dtype=jnp.float32),
                           jnp.max(x, axis=0), H, W, b_ref[2])

        # Fold the softmax weights into the small gate planes, then do the full-tensor
        # combine/multiply in the elementwise dtype.
        # NOTE: reproduces the original module exactly — weights[1] gates BOTH cw and hw.
        p_ch = (w0 * s_ch).astype(ew_dtype)             # (C, H)
        p_cw = (w1 * s_cw).astype(ew_dtype)             # (C, W)
        p_hw = (w1 * s_hw).astype(ew_dtype)             # (H, W)

        g = p_ch[:, :, None] + p_cw[:, None, :] + p_hw[None, :, :]
        o_ref[bi] = (x * g).astype(o_ref.dtype)
        return carry

    lax.fori_loop(0, TB, body, 0)


# --------------------------------------------------------------------------------------
# Wrapper
# --------------------------------------------------------------------------------------
def weighted_triplet_attention(x, conv_w, conv_b, weights):
    """x: (B, C, H, W). conv_w: (3, 2, 7, 7), conv_b: (3,), weights: (3,)."""
    B, C, H, W = x.shape
    kind = _device_kind()
    is_v7 = "v7" in kind
    bf16_valu = ("v6" in kind) or is_v7
    elemwise_f32 = not (x.dtype == jnp.bfloat16 and bf16_valu)   # keep f32 path on v5e

    # Fold BatchNorm (eval, init stats) into the conv taps and bias on the host.
    conv_w_s = conv_w.astype(jnp.float32) * BN_SCALE
    conv_b_s = conv_b.astype(jnp.float32) * BN_SCALE
    sw = jax.nn.softmax(weights.astype(jnp.float32))

    band_ch = _band_matrices(conv_w_s[0], H)   # ch gate plane is (C, H)
    band_cw = _band_matrices(conv_w_s[1], W)   # cw gate plane is (C, W)
    band_hw = _band_matrices(conv_w_s[2], W)   # hw gate plane is (H, W)

    # VMEM accounting: 2x in block + 2x out block (double buffered) + 2x each band
    # input (conservative) + pad scratch + compiler-internal headroom.
    fixed_bytes = (
        2 * (_padded_vmem_bytes((2 * KS, H, H), jnp.bfloat16)
             + 2 * _padded_vmem_bytes((2 * KS, W, W), jnp.bfloat16))
        + _padded_vmem_bytes((2, C + 2 * PAD, H), jnp.float32)
        + _padded_vmem_bytes((2, C + 2 * PAD, W), jnp.float32)
        + _padded_vmem_bytes((2, H + 2 * PAD, W), jnp.float32)
        + (2 << 20))
    vmem_limit = (48 << 20) if is_v7 else (64 << 20)   # v7x TC has 64 MiB physical
    TB = _pick_tb(B, C, H, W, x.dtype, fixed_bytes, vmem_limit - (4 << 20),
                  prefer_multi_step=is_v7)

    kernel = functools.partial(_wta_kernel, TB=TB, C=C, H=H, W=W,
                               ELEMWISE_F32=elemwise_f32)

    # TODO(synk): for deployment shapes with W < 128 the NCHW output store is a masked
    # partial vst; a lane-dense wrapper-side relayout (e.g. NHWC when C >= 128) would be
    # the next win, but the hw-gate conv needs an (H, W) plane so it is not applied here.
    return pl.pallas_call(
        kernel,
        out_shape=jax.ShapeDtypeStruct((B, C, H, W), x.dtype),
        grid=(B // TB,),
        in_specs=[
            pl.BlockSpec((TB, C, H, W), lambda b: (b, 0, 0, 0)),
            pl.BlockSpec((2 * KS, H, H), lambda b: (0, 0, 0)),   # banded conv, ch gate
            pl.BlockSpec((2 * KS, W, W), lambda b: (0, 0, 0)),   # banded conv, cw gate
            pl.BlockSpec((2 * KS, W, W), lambda b: (0, 0, 0)),   # banded conv, hw gate
            pl.BlockSpec(memory_space=pltpu.MemorySpace.SMEM),   # conv biases (3,), BN-folded
            pl.BlockSpec(memory_space=pltpu.MemorySpace.SMEM),   # softmax(weights) (3,)
        ],
        out_specs=pl.BlockSpec((TB, C, H, W), lambda b: (b, 0, 0, 0)),
        scratch_shapes=[
            pltpu.VMEM((2, C + 2 * PAD, H), jnp.float32),   # ch plane, vertical halo only
            pltpu.VMEM((2, C + 2 * PAD, W), jnp.float32),   # cw plane, vertical halo only
            pltpu.VMEM((2, H + 2 * PAD, W), jnp.float32),   # hw plane, vertical halo only
        ],
        compiler_params=pltpu.CompilerParams(
            dimension_semantics=("parallel",),              # batch steps are independent
            vmem_limit_bytes=vmem_limit,
        ),
    )(x, band_ch, band_cw, band_hw, conv_b_s, sw)


# ---------------- pure-JAX reference (for correctness check only) ----------------
def _ref_gate(xp, w, b):
    mean = jnp.mean(xp, axis=1, keepdims=True)
    mx = jnp.max(xp, axis=1, keepdims=True)
    pooled = jnp.concatenate([mean, mx], axis=1)
    y = lax.conv_general_dilated(
        pooled, w, (1, 1), [(PAD, PAD), (PAD, PAD)],
        dimension_numbers=("NCHW", "OIHW", "NCHW"),
        precision=lax.Precision.HIGHEST) + b
    y = y * BN_SCALE
    y = jnp.maximum(y, 0.0)
    y = jax.nn.sigmoid(y)
    return xp * y


def _ref_forward(x, conv_w, conv_b, weights):
    sw = jax.nn.softmax(weights)
    x_ch = jnp.transpose(_ref_gate(jnp.transpose(x, (0, 3, 1, 2)), conv_w[0:1], conv_b[0]), (0, 2, 3, 1))
    x_cw = jnp.transpose(_ref_gate(jnp.transpose(x, (0, 2, 1, 3)), conv_w[1:2], conv_b[1]), (0, 2, 1, 3))
    x_hw = _ref_gate(x, conv_w[2:3], conv_b[2])
    return sw[0] * x_ch + sw[1] * x_cw + sw[1] * x_hw


if __name__ == "__main__":
    key = jax.random.PRNGKey(0)
    k_x, k_w, k_b = jax.random.split(key, 3)

    B, C, H, W = 2, 4, 16, 16
    x = jax.random.normal(k_x, (B, C, H, W), jnp.float32)

    # Deterministic parameter init (PyTorch-style uniform bounds for conv; weights = ones(3)).
    fan_in = 2 * KS * KS
    bound = 1.0 / np.sqrt(fan_in)
    conv_w = jax.random.uniform(k_w, (3, 2, KS, KS), jnp.float32, -bound, bound)
    conv_b = jax.random.uniform(k_b, (3,), jnp.float32, -bound, bound)
    weights = jnp.ones((3,), jnp.float32)

    out = weighted_triplet_attention(x, conv_w, conv_b, weights)
    out = jax.block_until_ready(out)

    ref = _ref_forward(x, conv_w, conv_b, weights)
    # Tolerance loosened vs. the f32-HIGHEST version: the conv now runs as single-pass
    # bf16 MXU matmuls with f32 accumulation (gate goes through a sigmoid, so the
    # effective error stays ~1e-3).
    np.testing.assert_allclose(np.asarray(out), np.asarray(ref), rtol=2e-2, atol=2e-2)

    print("KERNEL_OK")
</pallas_src>

<mosaic_0001>
module attributes {stable_mosaic.version = 11 : i64} {
  func.func @_wta_kernel(%arg0: i32, %arg1: memref<2x4x16x16xf32, #tpu.memory_space<vmem>>, %arg2: memref<14x16x16xbf16, #tpu.memory_space<vmem>>, %arg3: memref<14x16x16xbf16, #tpu.memory_space<vmem>>, %arg4: memref<14x16x16xbf16, #tpu.memory_space<vmem>>, %arg5: memref<3xf32, #tpu.memory_space<smem>>, %arg6: memref<3xf32, #tpu.memory_space<smem>>, %arg7: memref<2x4x16x16xf32, #tpu.memory_space<vmem>>, %arg8: memref<2x10x16xf32, #tpu.memory_space<vmem>>, %arg9: memref<2x10x16xf32, #tpu.memory_space<vmem>>, %arg10: memref<2x22x16xf32, #tpu.memory_space<vmem>>) attributes {dimension_semantics = [#tpu.dimension_semantics<parallel>], iteration_bounds = array<i64: 1>, scalar_prefetch = 0 : i64, scratch_operands = 3 : i64, tpu.core_type = #tpu.core_type<tc>, window_params = [{transform_indices = @transform_0, window_bounds = array<i64: 2, 4, 16, 16>}, {pipeline_mode = #tpu.pipeline_mode<synchronous>, transform_indices = @transform_1, window_bounds = array<i64: 14, 16, 16>}, {pipeline_mode = #tpu.pipeline_mode<synchronous>, transform_indices = @transform_2, window_bounds = array<i64: 14, 16, 16>}, {pipeline_mode = #tpu.pipeline_mode<synchronous>, transform_indices = @transform_3, window_bounds = array<i64: 14, 16, 16>}, {transform_indices = @transform_4, window_bounds = array<i64: 3>}, {transform_indices = @transform_5, window_bounds = array<i64: 3>}, {transform_indices = @transform_6, window_bounds = array<i64: 2, 4, 16, 16>}]} {
    %cst = arith.constant 0.000000e+00 : f32
    %0 = vector.broadcast %cst : f32 to vector<3x16xf32>
    %c0 = arith.constant 0 : index
    %c0_0 = arith.constant 0 : index
    %c0_1 = arith.constant 0 : index
    %1 = vector.load %arg8[%c0, %c0_0, %c0_1] : memref<2x10x16xf32, #tpu.memory_space<vmem>>, vector<1x3x16xf32>
    %2 = vector.shape_cast %1 : vector<1x3x16xf32> to vector<3x16xf32>
    %3 = vector.shape_cast %0 : vector<3x16xf32> to vector<1x3x16xf32>
    tpu.vector_store %arg8[%c0, %c0_0, %c0_1], %3 {strides = array<i32>} : memref<2x10x16xf32, #tpu.memory_space<vmem>>, vector<1x3x16xf32>,
    %c0_2 = arith.constant 0 : index
    %c7 = arith.constant 7 : index
    %c0_3 = arith.constant 0 : index
    %4 = vector.load %arg8[%c0_2, %c7, %c0_3] : memref<2x10x16xf32, #tpu.memory_space<vmem>>, vector<1x3x16xf32>
    %5 = vector.shape_cast %4 : vector<1x3x16xf32> to vector<3x16xf32>
    %6 = vector.shape_cast %0 : vector<3x16xf32> to vector<1x3x16xf32>
    tpu.vector_store %arg8[%c0_2, %c7, %c0_3], %6 {strides = array<i32>} : memref<2x10x16xf32, #tpu.memory_space<vmem>>, vector<1x3x16xf32>,
    %c1 = arith.constant 1 : index
    %c0_4 = arith.constant 0 : index
    %c0_5 = arith.constant 0 : index
    %7 = vector.load %arg8[%c1, %c0_4, %c0_5] : memref<2x10x16xf32, #tpu.memory_space<vmem>>, vector<1x3x16xf32>
    %8 = vector.shape_cast %7 : vector<1x3x16xf32> to vector<3x16xf32>
    %9 = vector.shape_cast %0 : vector<3x16xf32> to vector<1x3x16xf32>
    tpu.vector_store %arg8[%c1, %c0_4, %c0_5], %9 {strides = array<i32>} : memref<2x10x16xf32, #tpu.memory_space<vmem>>, vector<1x3x16xf32>,
    %c1_6 = arith.constant 1 : index
    %c7_7 = arith.constant 7 : index
    %c0_8 = arith.constant 0 : index
    %10 = vector.load %arg8[%c1_6, %c7_7, %c0_8] : memref<2x10x16xf32, #tpu.memory_space<vmem>>, vector<1x3x16xf32>
    %11 = vector.shape_cast %10 : vector<1x3x16xf32> to vector<3x16xf32>
    %12 = vector.shape_cast %0 : vector<3x16xf32> to vector<1x3x16xf32>
    tpu.vector_store %arg8[%c1_6, %c7_7, %c0_8], %12 {strides = array<i32>} : memref<2x10x16xf32, #tpu.memory_space<vmem>>, vector<1x3x16xf32>,
    %cst_9 = arith.constant 0.000000e+00 : f32
    %13 = vector.broadcast %cst_9 : f32 to vector<3x16xf32>
    %c0_10 = arith.constant 0 : index
    %c0_11 = arith.constant 0 : index
    %c0_12 = arith.constant 0 : index
    %14 = vector.load %arg9[%c0_10, %c0_11, %c0_12] : memref<2x10x16xf32, #tpu.memory_space<vmem>>, vector<1x3x16xf32>
    %15 = vector.shape_cast %14 : vector<1x3x16xf32> to vector<3x16xf32>
    %16 = vector.shape_cast %13 : vector<3x16xf32> to vector<1x3x16xf32>
    tpu.vector_store %arg9[%c0_10, %c0_11, %c0_12], %16 {strides = array<i32>} : memref<2x10x16xf32, #tpu.memory_space<vmem>>, vector<1x3x16xf32>,
    %c0_13 = arith.constant 0 : index
    %c7_14 = arith.constant 7 : index
    %c0_15 = arith.constant 0 : index
    %17 = vector.load %arg9[%c0_13, %c7_14, %c0_15] : memref<2x10x16xf32, #tpu.memory_space<vmem>>, vector<1x3x16xf32>
    %18 = vector.shape_cast %17 : vector<1x3x16xf32> to vector<3x16xf32>
    %19 = vector.shape_cast %13 : vector<3x16xf32> to vector<1x3x16xf32>
    tpu.vector_store %arg9[%c0_13, %c7_14, %c0_15], %19 {strides = array<i32>} : memref<2x10x16xf32, #tpu.memory_space<vmem>>, vector<1x3x16xf32>,
    %c1_16 = arith.constant 1 : index
    %c0_17 = arith.constant 0 : index
    %c0_18 = arith.constant 0 : index
    %20 = vector.load %arg9[%c1_16, %c0_17, %c0_18] : memref<2x10x16xf32, #tpu.memory_space<vmem>>, vector<1x3x16xf32>
    %21 = vector.shape_cast %20 : vector<1x3x16xf32> to vector<3x16xf32>
    %22 = vector.shape_cast %13 : vector<3x16xf32> to vector<1x3x16xf32>
    tpu.vector_store %arg9[%c1_16, %c0_17, %c0_18], %22 {strides = array<i32>} : memref<2x10x16xf32, #tpu.memory_space<vmem>>, vector<1x3x16xf32>,
    %c1_19 = arith.constant 1 : index
    %c7_20 = arith.constant 7 : index
    %c0_21 = arith.constant 0 : index
    %23 = vector.load %arg9[%c1_19, %c7_20, %c0_21] : memref<2x10x16xf32, #tpu.memory_space<vmem>>, vector<1x3x16xf32>
    %24 = vector.shape_cast %23 : vector<1x3x16xf32> to vector<3x16xf32>
    %25 = vector.shape_cast %13 : vector<3x16xf32> to vector<1x3x16xf32>
    tpu.vector_store %arg9[%c1_19, %c7_20, %c0_21], %25 {strides = array<i32>} : memref<2x10x16xf32, #tpu.memory_space<vmem>>, vector<1x3x16xf32>,
    %cst_22 = arith.constant 0.000000e+00 : f32
    %26 = vector.broadcast %cst_22 : f32 to vector<3x16xf32>
    %c0_23 = arith.constant 0 : index
    %c0_24 = arith.constant 0 : index
    %c0_25 = arith.constant 0 : index
    %27 = vector.load %arg10[%c0_23, %c0_24, %c0_25] : memref<2x22x16xf32, #tpu.memory_space<vmem>>, vector<1x3x16xf32>
    %28 = vector.shape_cast %27 : vector<1x3x16xf32> to vector<3x16xf32>
    %29 = vector.shape_cast %26 : vector<3x16xf32> to vector<1x3x16xf32>
    tpu.vector_store %arg10[%c0_23, %c0_24, %c0_25], %29 {strides = array<i32>} : memref<2x22x16xf32, #tpu.memory_space<vmem>>, vector<1x3x16xf32>,
    %c0_26 = arith.constant 0 : index
    %c19 = arith.constant 19 : index
    %c0_27 = arith.constant 0 : index
    %30 = vector.load %arg10[%c0_26, %c19, %c0_27] : memref<2x22x16xf32, #tpu.memory_space<vmem>>, vector<1x3x16xf32>
    %31 = vector.shape_cast %30 : vector<1x3x16xf32> to vector<3x16xf32>
    %32 = vector.shape_cast %26 : vector<3x16xf32> to vector<1x3x16xf32>
    tpu.vector_store %arg10[%c0_26, %c19, %c0_27], %32 {strides = array<i32>} : memref<2x22x16xf32, #tpu.memory_space<vmem>>, vector<1x3x16xf32>,
    %c1_28 = arith.constant 1 : index
    %c0_29 = arith.constant 0 : index
    %c0_30 = arith.constant 0 : index
    %33 = vector.load %arg10[%c1_28, %c0_29, %c0_30] : memref<2x22x16xf32, #tpu.memory_space<vmem>>, vector<1x3x16xf32>
    %34 = vector.shape_cast %33 : vector<1x3x16xf32> to vector<3x16xf32>
    %35 = vector.shape_cast %26 : vector<3x16xf32> to vector<1x3x16xf32>
    tpu.vector_store %arg10[%c1_28, %c0_29, %c0_30], %35 {strides = array<i32>} : memref<2x22x16xf32, #tpu.memory_space<vmem>>, vector<1x3x16xf32>,
    %c1_31 = arith.constant 1 : index
    %c19_32 = arith.constant 19 : index
    %c0_33 = arith.constant 0 : index
    %36 = vector.load %arg10[%c1_31, %c19_32, %c0_33] : memref<2x22x16xf32, #tpu.memory_space<vmem>>, vector<1x3x16xf32>
    %37 = vector.shape_cast %36 : vector<1x3x16xf32> to vector<3x16xf32>
    %38 = vector.shape_cast %26 : vector<3x16xf32> to vector<1x3x16xf32>
    tpu.vector_store %arg10[%c1_31, %c19_32, %c0_33], %38 {strides = array<i32>} : memref<2x22x16xf32, #tpu.memory_space<vmem>>, vector<1x3x16xf32>,
    %c0_34 = arith.constant 0 : index
    %39 = memref.load %arg6[%c0_34] : memref<3xf32, #tpu.memory_space<smem>>
    %c1_35 = arith.constant 1 : index
    %40 = memref.load %arg6[%c1_35] : memref<3xf32, #tpu.memory_space<smem>>
    %c0_i32 = arith.constant 0 : i32
    %c2_i32 = arith.constant 2 : i32
    %41 = arith.addi %c0_i32, %c2_i32 : i32
    %c1_i32 = arith.constant 1 : i32
    scf.for %arg11 = %c0_i32 to %41 step %c1_i32  : i32 {
      %42 = arith.index_cast %arg11 : i32 to index
      %c0_37 = arith.constant 0 : index
      %c0_38 = arith.constant 0 : index
      %c0_39 = arith.constant 0 : index
      %43 = vector.load %arg1[%42, %c0_37, %c0_38, %c0_39] : memref<2x4x16x16xf32, #tpu.memory_space<vmem>>, vector<1x4x16x16xf32>
      %44 = vector.shape_cast %43 : vector<1x4x16x16xf32> to vector<4x16x16xf32>
      %cst_40 = arith.constant dense<0.000000e+00> : vector<4x16xf32>
      %45 = vector.multi_reduction <add>, %44, %cst_40 [2] : vector<4x16x16xf32> to vector<4x16xf32>
      %cst_41 = arith.constant 1.600000e+01 : f32
      %46 = vector.broadcast %cst_41 : f32 to vector<4x16xf32>
      %47 = arith.divf %45, %46 : vector<4x16xf32>
      %cst_42 = arith.constant dense<0xFF800000> : vector<4x16xf32>
      %48 = vector.multi_reduction <maximumf>, %44, %cst_42 [2] : vector<4x16x16xf32> to vector<4x16xf32>
      %c0_43 = arith.constant 0 : index
      %49 = memref.load %arg5[%c0_43] : memref<3xf32, #tpu.memory_space<smem>>
      %c0_44 = arith.constant 0 : index
      %c3 = arith.constant 3 : index
      %c0_45 = arith.constant 0 : index
      %50 = vector.load %arg8[%c0_44, %c3, %c0_45] : memref<2x10x16xf32, #tpu.memory_space<vmem>>, vector<1x4x16xf32>
      %51 = vector.shape_cast %50 : vector<1x4x16xf32> to vector<4x16xf32>
      %52 = vector.shape_cast %47 : vector<4x16xf32> to vector<1x4x16xf32>
      tpu.vector_store %arg8[%c0_44, %c3, %c0_45], %52 {strides = array<i32>} : memref<2x10x16xf32, #tpu.memory_space<vmem>>, vector<1x4x16xf32>,
      %c1_46 = arith.constant 1 : index
      %c3_47 = arith.constant 3 : index
      %c0_48 = arith.constant 0 : index
      %53 = vector.load %arg8[%c1_46, %c3_47, %c0_48] : memref<2x10x16xf32, #tpu.memory_space<vmem>>, vector<1x4x16xf32>
      %54 = vector.shape_cast %53 : vector<1x4x16xf32> to vector<4x16xf32>
      %55 = vector.shape_cast %48 : vector<4x16xf32> to vector<1x4x16xf32>
      tpu.vector_store %arg8[%c1_46, %c3_47, %c0_48], %55 {strides = array<i32>} : memref<2x10x16xf32, #tpu.memory_space<vmem>>, vector<1x4x16xf32>,
      %cst_49 = arith.constant 0.000000e+00 : f32
      %56 = vector.broadcast %cst_49 : f32 to vector<4x16xf32>
      %c0_50 = arith.constant 0 : index
      %c0_51 = arith.constant 0 : index
      %c0_52 = arith.constant 0 : index
      %57 = vector.load %arg8[%c0_50, %c0_51, %c0_52] : memref<2x10x16xf32, #tpu.memory_space<vmem>>, vector<1x4x16xf32>
      %58 = vector.shape_cast %57 : vector<1x4x16xf32> to vector<4x16xf32>
      %59 = arith.truncf %58 : vector<4x16xf32> to vector<4x16xbf16>
      %c0_53 = arith.constant 0 : index
      %c0_54 = arith.constant 0 : index
      %c0_55 = arith.constant 0 : index
      %60 = vector.load %arg2[%c0_53, %c0_54, %c0_55] : memref<14x16x16xbf16, #tpu.memory_space<vmem>>, vector<1x16x16xbf16>
      %61 = vector.shape_cast %60 : vector<1x16x16xbf16> to vector<16x16xbf16>
      %cst_56 = arith.constant dense<0.000000e+00> : vector<4x16xf32>
      %62 = tpu.matmul %59, %61, %cst_56 {dimension_numbers = #tpu.dot_dimension_numbers<[1], [0], [0], [1], [0, 0, 1, 1], [], []>} : vector<4x16xbf16>, vector<16x16xbf16>, vector<4x16xf32> -> vector<4x16xf32>
      %63 = arith.addf %56, %62 : vector<4x16xf32>
      %c0_57 = arith.constant 0 : index
      %c1_58 = arith.constant 1 : index
      %c0_59 = arith.constant 0 : index
      %64 = vector.load %arg8[%c0_57, %c1_58, %c0_59] : memref<2x10x16xf32, #tpu.memory_space<vmem>>, vector<1x4x16xf32>
      %65 = vector.shape_cast %64 : vector<1x4x16xf32> to vector<4x16xf32>
      %66 = arith.truncf %65 : vector<4x16xf32> to vector<4x16xbf16>
      %c1_60 = arith.constant 1 : index
      %c0_61 = arith.constant 0 : index
      %c0_62 = arith.constant 0 : index
      %67 = vector.load %arg2[%c1_60, %c0_61, %c0_62] : memref<14x16x16xbf16, #tpu.memory_space<vmem>>, vector<1x16x16xbf16>
      %68 = vector.shape_cast %67 : vector<1x16x16xbf16> to vector<16x16xbf16>
      %cst_63 = arith.constant dense<0.000000e+00> : vector<4x16xf32>
      %69 = tpu.matmul %66, %68, %cst_63 {dimension_numbers = #tpu.dot_dimension_numbers<[1], [0], [0], [1], [0, 0, 1, 1], [], []>} : vector<4x16xbf16>, vector<16x16xbf16>, vector<4x16xf32> -> vector<4x16xf32>
      %70 = arith.addf %63, %69 : vector<4x16xf32>
      %c0_64 = arith.constant 0 : index
      %c2 = arith.constant 2 : index
      %c0_65 = arith.constant 0 : index
      %71 = vector.load %arg8[%c0_64, %c2, %c0_65] : memref<2x10x16xf32, #tpu.memory_space<vmem>>, vector<1x4x16xf32>
      %72 = vector.shape_cast %71 : vector<1x4x16xf32> to vector<4x16xf32>
      %73 = arith.truncf %72 : vector<4x16xf32> to vector<4x16xbf16>
      %c2_66 = arith.constant 2 : index
      %c0_67 = arith.constant 0 : index
      %c0_68 = arith.constant 0 : index
      %74 = vector.load %arg2[%c2_66, %c0_67, %c0_68] : memref<14x16x16xbf16, #tpu.memory_space<vmem>>, vector<1x16x16xbf16>
      %75 = vector.shape_cast %74 : vector<1x16x16xbf16> to vector<16x16xbf16>
      %cst_69 = arith.constant dense<0.000000e+00> : vector<4x16xf32>
      %76 = tpu.matmul %73, %75, %cst_69 {dimension_numbers = #tpu.dot_dimension_numbers<[1], [0], [0], [1], [0, 0, 1, 1], [], []>} : vector<4x16xbf16>, vector<16x16xbf16>, vector<4x16xf32> -> vector<4x16xf32>
      %77 = arith.addf %70, %76 : vector<4x16xf32>
      %c0_70 = arith.constant 0 : index
      %c3_71 = arith.constant 3 : index
      %c0_72 = arith.constant 0 : index
      %78 = vector.load %arg8[%c0_70, %c3_71, %c0_72] : memref<2x10x16xf32, #tpu.memory_space<vmem>>, vector<1x4x16xf32>
      %79 = vector.shape_cast %78 : vector<1x4x16xf32> to vector<4x16xf32>
      %80 = arith.truncf %79 : vector<4x16xf32> to vector<4x16xbf16>
      %c3_73 = arith.constant 3 : index
      %c0_74 = arith.constant 0 : index
      %c0_75 = arith.constant 0 : index
      %81 = vector.load %arg2[%c3_73, %c0_74, %c0_75] : memref<14x16x16xbf16, #tpu.memory_space<vmem>>, vector<1x16x16xbf16>
      %82 = vector.shape_cast %81 : vector<1x16x16xbf16> to vector<16x16xbf16>
      %cst_76 = arith.constant dense<0.000000e+00> : vector<4x16xf32>
      %83 = tpu.matmul %80, %82, %cst_76 {dimension_numbers = #tpu.dot_dimension_numbers<[1], [0], [0], [1], [0, 0, 1, 1], [], []>} : vector<4x16xbf16>, vector<16x16xbf16>, vector<4x16xf32> -> vector<4x16xf32>
      %84 = arith.addf %77, %83 : vector<4x16xf32>
      %c0_77 = arith.constant 0 : index
      %c4 = arith.constant 4 : index
      %c0_78 = arith.constant 0 : index
      %85 = vector.load %arg8[%c0_77, %c4, %c0_78] : memref<2x10x16xf32, #tpu.memory_space<vmem>>, vector<1x4x16xf32>
      %86 = vector.shape_cast %85 : vector<1x4x16xf32> to vector<4x16xf32>
      %87 = arith.truncf %86 : vector<4x16xf32> to vector<4x16xbf16>
      %c4_79 = arith.constant 4 : index
      %c0_80 = arith.constant 0 : index
      %c0_81 = arith.constant 0 : index
      %88 = vector.load %arg2[%c4_79, %c0_80, %c0_81] : memref<14x16x16xbf16, #tpu.memory_space<vmem>>, vector<1x16x16xbf16>
      %89 = vector.shape_cast %88 : vector<1x16x16xbf16> to vector<16x16xbf16>
      %cst_82 = arith.constant dense<0.000000e+00> : vector<4x16xf32>
      %90 = tpu.matmul %87, %89, %cst_82 {dimension_numbers = #tpu.dot_dimension_numbers<[1], [0], [0], [1], [0, 0, 1, 1], [], []>} : vector<4x16xbf16>, vector<16x16xbf16>, vector<4x16xf32> -> vector<4x16xf32>
      %91 = arith.addf %84, %90 : vector<4x16xf32>
      %c0_83 = arith.constant 0 : index
      %c5 = arith.constant 5 : index
      %c0_84 = arith.constant 0 : index
      %92 = vector.load %arg8[%c0_83, %c5, %c0_84] : memref<2x10x16xf32, #tpu.memory_space<vmem>>, vector<1x4x16xf32>
      %93 = vector.shape_cast %92 : vector<1x4x16xf32> to vector<4x16xf32>
      %94 = arith.truncf %93 : vector<4x16xf32> to vector<4x16xbf16>
      %c5_85 = arith.constant 5 : index
      %c0_86 = arith.constant 0 : index
      %c0_87 = arith.constant 0 : index
      %95 = vector.load %arg2[%c5_85, %c0_86, %c0_87] : memref<14x16x16xbf16, #tpu.memory_space<vmem>>, vector<1x16x16xbf16>
      %96 = vector.shape_cast %95 : vector<1x16x16xbf16> to vector<16x16xbf16>
      %cst_88 = arith.constant dense<0.000000e+00> : vector<4x16xf32>
      %97 = tpu.matmul %94, %96, %cst_88 {dimension_numbers = #tpu.dot_dimension_numbers<[1], [0], [0], [1], [0, 0, 1, 1], [], []>} : vector<4x16xbf16>, vector<16x16xbf16>, vector<4x16xf32> -> vector<4x16xf32>
      %98 = arith.addf %91, %97 : vector<4x16xf32>
      %c0_89 = arith.constant 0 : index
      %c6 = arith.constant 6 : index
      %c0_90 = arith.constant 0 : index
      %99 = vector.load %arg8[%c0_89, %c6, %c0_90] : memref<2x10x16xf32, #tpu.memory_space<vmem>>, vector<1x4x16xf32>
      %100 = vector.shape_cast %99 : vector<1x4x16xf32> to vector<4x16xf32>
      %101 = arith.truncf %100 : vector<4x16xf32> to vector<4x16xbf16>
      %c6_91 = arith.constant 6 : index
      %c0_92 = arith.constant 0 : index
      %c0_93 = arith.constant 0 : index
      %102 = vector.load %arg2[%c6_91, %c0_92, %c0_93] : memref<14x16x16xbf16, #tpu.memory_space<vmem>>, vector<1x16x16xbf16>
      %103 = vector.shape_cast %102 : vector<1x16x16xbf16> to vector<16x16xbf16>
      %cst_94 = arith.constant dense<0.000000e+00> : vector<4x16xf32>
      %104 = tpu.matmul %101, %103, %cst_94 {dimension_numbers = #tpu.dot_dimension_numbers<[1], [0], [0], [1], [0, 0, 1, 1], [], []>} : vector<4x16xbf16>, vector<16x16xbf16>, vector<4x16xf32> -> vector<4x16xf32>
      %105 = arith.addf %98, %104 : vector<4x16xf32>
      %c1_95 = arith.constant 1 : index
      %c0_96 = arith.constant 0 : index
      %c0_97 = arith.constant 0 : index
      %106 = vector.load %arg8[%c1_95, %c0_96, %c0_97] : memref<2x10x16xf32, #tpu.memory_space<vmem>>, vector<1x4x16xf32>
      %107 = vector.shape_cast %106 : vector<1x4x16xf32> to vector<4x16xf32>
      %108 = arith.truncf %107 : vector<4x16xf32> to vector<4x16xbf16>
      %c7_98 = arith.constant 7 : index
      %c0_99 = arith.constant 0 : index
      %c0_100 = arith.constant 0 : index
      %109 = vector.load %arg2[%c7_98, %c0_99, %c0_100] : memref<14x16x16xbf16, #tpu.memory_space<vmem>>, vector<1x16x16xbf16>
      %110 = vector.shape_cast %109 : vector<1x16x16xbf16> to vector<16x16xbf16>
      %cst_101 = arith.constant dense<0.000000e+00> : vector<4x16xf32>
      %111 = tpu.matmul %108, %110, %cst_101 {dimension_numbers = #tpu.dot_dimension_numbers<[1], [0], [0], [1], [0, 0, 1, 1], [], []>} : vector<4x16xbf16>, vector<16x16xbf16>, vector<4x16xf32> -> vector<4x16xf32>
      %112 = arith.addf %105, %111 : vector<4x16xf32>
      %c1_102 = arith.constant 1 : index
      %c1_103 = arith.constant 1 : index
      %c0_104 = arith.constant 0 : index
      %113 = vector.load %arg8[%c1_102, %c1_103, %c0_104] : memref<2x10x16xf32, #tpu.memory_space<vmem>>, vector<1x4x16xf32>
      %114 = vector.shape_cast %113 : vector<1x4x16xf32> to vector<4x16xf32>
      %115 = arith.truncf %114 : vector<4x16xf32> to vector<4x16xbf16>
      %c8 = arith.constant 8 : index
      %c0_105 = arith.constant 0 : index
      %c0_106 = arith.constant 0 : index
      %116 = vector.load %arg2[%c8, %c0_105, %c0_106] : memref<14x16x16xbf16, #tpu.memory_space<vmem>>, vector<1x16x16xbf16>
      %117 = vector.shape_cast %116 : vector<1x16x16xbf16> to vector<16x16xbf16>
      %cst_107 = arith.constant dense<0.000000e+00> : vector<4x16xf32>
      %118 = tpu.matmul %115, %117, %cst_107 {dimension_numbers = #tpu.dot_dimension_numbers<[1], [0], [0], [1], [0, 0, 1, 1], [], []>} : vector<4x16xbf16>, vector<16x16xbf16>, vector<4x16xf32> -> vector<4x16xf32>
      %119 = arith.addf %112, %118 : vector<4x16xf32>
      %c1_108 = arith.constant 1 : index
      %c2_109 = arith.constant 2 : index
      %c0_110 = arith.constant 0 : index
      %120 = vector.load %arg8[%c1_108, %c2_109, %c0_110] : memref<2x10x16xf32, #tpu.memory_space<vmem>>, vector<1x4x16xf32>
      %121 = vector.shape_cast %120 : vector<1x4x16xf32> to vector<4x16xf32>
      %122 = arith.truncf %121 : vector<4x16xf32> to vector<4x16xbf16>
      %c9 = arith.constant 9 : index
      %c0_111 = arith.constant 0 : index
      %c0_112 = arith.constant 0 : index
      %123 = vector.load %arg2[%c9, %c0_111, %c0_112] : memref<14x16x16xbf16, #tpu.memory_space<vmem>>, vector<1x16x16xbf16>
      %124 = vector.shape_cast %123 : vector<1x16x16xbf16> to vector<16x16xbf16>
      %cst_113 = arith.constant dense<0.000000e+00> : vector<4x16xf32>
      %125 = tpu.matmul %122, %124, %cst_113 {dimension_numbers = #tpu.dot_dimension_numbers<[1], [0], [0], [1], [0, 0, 1, 1], [], []>} : vector<4x16xbf16>, vector<16x16xbf16>, vector<4x16xf32> -> vector<4x16xf32>
      %126 = arith.addf %119, %125 : vector<4x16xf32>
      %c1_114 = arith.constant 1 : index
      %c3_115 = arith.constant 3 : index
      %c0_116 = arith.constant 0 : index
      %127 = vector.load %arg8[%c1_114, %c3_115, %c0_116] : memref<2x10x16xf32, #tpu.memory_space<vmem>>, vector<1x4x16xf32>
      %128 = vector.shape_cast %127 : vector<1x4x16xf32> to vector<4x16xf32>
      %129 = arith.truncf %128 : vector<4x16xf32> to vector<4x16xbf16>
      %c10 = arith.constant 10 : index
      %c0_117 = arith.constant 0 : index
      %c0_118 = arith.constant 0 : index
      %130 = vector.load %arg2[%c10, %c0_117, %c0_118] : memref<14x16x16xbf16, #tpu.memory_space<vmem>>, vector<1x16x16xbf16>
      %131 = vector.shape_cast %130 : vector<1x16x16xbf16> to vector<16x16xbf16>
      %cst_119 = arith.constant dense<0.000000e+00> : vector<4x16xf32>
      %132 = tpu.matmul %129, %131, %cst_119 {dimension_numbers = #tpu.dot_dimension_numbers<[1], [0], [0], [1], [0, 0, 1, 1], [], []>} : vector<4x16xbf16>, vector<16x16xbf16>, vector<4x16xf32> -> vector<4x16xf32>
      %133 = arith.addf %126, %132 : vector<4x16xf32>
      %c1_120 = arith.constant 1 : index
      %c4_121 = arith.constant 4 : index
      %c0_122 = arith.constant 0 : index
      %134 = vector.load %arg8[%c1_120, %c4_121, %c0_122] : memref<2x10x16xf32, #tpu.memory_space<vmem>>, vector<1x4x16xf32>
      %135 = vector.shape_cast %134 : vector<1x4x16xf32> to vector<4x16xf32>
      %136 = arith.truncf %135 : vector<4x16xf32> to vector<4x16xbf16>
      %c11 = arith.constant 11 : index
      %c0_123 = arith.constant 0 : index
      %c0_124 = arith.constant 0 : index
      %137 = vector.load %arg2[%c11, %c0_123, %c0_124] : memref<14x16x16xbf16, #tpu.memory_space<vmem>>, vector<1x16x16xbf16>
      %138 = vector.shape_cast %137 : vector<1x16x16xbf16> to vector<16x16xbf16>
      %cst_125 = arith.constant dense<0.000000e+00> : vector<4x16xf32>
      %139 = tpu.matmul %136, %138, %cst_125 {dimension_numbers = #tpu.dot_dimension_numbers<[1], [0], [0], [1], [0, 0, 1, 1], [], []>} : vector<4x16xbf16>, vector<16x16xbf16>, vector<4x16xf32> -> vector<4x16xf32>
      %140 = arith.addf %133, %139 : vector<4x16xf32>
      %c1_126 = arith.constant 1 : index
      %c5_127 = arith.constant 5 : index
      %c0_128 = arith.constant 0 : index
      %141 = vector.load %arg8[%c1_126, %c5_127, %c0_128] : memref<2x10x16xf32, #tpu.memory_space<vmem>>, vector<1x4x16xf32>
      %142 = vector.shape_cast %141 : vector<1x4x16xf32> to vector<4x16xf32>
      %143 = arith.truncf %142 : vector<4x16xf32> to vector<4x16xbf16>
      %c12 = arith.constant 12 : index
      %c0_129 = arith.constant 0 : index
      %c0_130 = arith.constant 0 : index
      %144 = vector.load %arg2[%c12, %c0_129, %c0_130] : memref<14x16x16xbf16, #tpu.memory_space<vmem>>, vector<1x16x16xbf16>
      %145 = vector.shape_cast %144 : vector<1x16x16xbf16> to vector<16x16xbf16>
      %cst_131 = arith.constant dense<0.000000e+00> : vector<4x16xf32>
      %146 = tpu.matmul %143, %145, %cst_131 {dimension_numbers = #tpu.dot_dimension_numbers<[1], [0], [0], [1], [0, 0, 1, 1], [], []>} : vector<4x16xbf16>, vector<16x16xbf16>, vector<4x16xf32> -> vector<4x16xf32>
      %147 = arith.addf %140, %146 : vector<4x16xf32>
      %c1_132 = arith.constant 1 : index
      %c6_133 = arith.constant 6 : index
      %c0_134 = arith.constant 0 : index
      %148 = vector.load %arg8[%c1_132, %c6_133, %c0_134] : memref<2x10x16xf32, #tpu.memory_space<vmem>>, vector<1x4x16xf32>
      %149 = vector.shape_cast %148 : vector<1x4x16xf32> to vector<4x16xf32>
      %150 = arith.truncf %149 : vector<4x16xf32> to vector<4x16xbf16>
      %c13 = arith.constant 13 : index
      %c0_135 = arith.constant 0 : index
      %c0_136 = arith.constant 0 : index
      %151 = vector.load %arg2[%c13, %c0_135, %c0_136] : memref<14x16x16xbf16, #tpu.memory_space<vmem>>, vector<1x16x16xbf16>
      %152 = vector.shape_cast %151 : vector<1x16x16xbf16> to vector<16x16xbf16>
      %cst_137 = arith.constant dense<0.000000e+00> : vector<4x16xf32>
      %153 = tpu.matmul %150, %152, %cst_137 {dimension_numbers = #tpu.dot_dimension_numbers<[1], [0], [0], [1], [0, 0, 1, 1], [], []>} : vector<4x16xbf16>, vector<16x16xbf16>, vector<4x16xf32> -> vector<4x16xf32>
      %154 = arith.addf %147, %153 : vector<4x16xf32>
      %155 = vector.broadcast %49 : f32 to vector<4x16xf32>
      %156 = arith.addf %154, %155 : vector<4x16xf32>
      %cst_138 = arith.constant 0.000000e+00 : f32
      %157 = vector.broadcast %cst_138 : f32 to vector<4x16xf32>
      %158 = arith.maximumf %156, %157 : vector<4x16xf32>
      %159 = arith.negf %158 : vector<4x16xf32>
      %160 = math.exp %159 : vector<4x16xf32>
      %cst_139 = arith.constant 1.000000e+00 : f32
      %161 = vector.broadcast %cst_139 : f32 to vector<4x16xf32>
      %162 = arith.addf %161, %160 : vector<4x16xf32>
      %163 = arith.divf %161, %162 : vector<4x16xf32>
      %cst_140 = arith.constant dense<0.000000e+00> : vector<4x16xf32>
      %164 = vector.multi_reduction <add>, %44, %cst_140 [1] : vector<4x16x16xf32> to vector<4x16xf32>
      %cst_141 = arith.constant 1.600000e+01 : f32
      %165 = vector.broadcast %cst_141 : f32 to vector<4x16xf32>
      %166 = arith.divf %164, %165 : vector<4x16xf32>
      %cst_142 = arith.constant dense<0xFF800000> : vector<4x16xf32>
      %167 = vector.multi_reduction <maximumf>, %44, %cst_142 [1] : vector<4x16x16xf32> to vector<4x16xf32>
      %c1_143 = arith.constant 1 : index
      %168 = memref.load %arg5[%c1_143] : memref<3xf32, #tpu.memory_space<smem>>
      %c0_144 = arith.constant 0 : index
      %c3_145 = arith.constant 3 : index
      %c0_146 = arith.constant 0 : index
      %169 = vector.load %arg9[%c0_144, %c3_145, %c0_146] : memref<2x10x16xf32, #tpu.memory_space<vmem>>, vector<1x4x16xf32>
      %170 = vector.shape_cast %169 : vector<1x4x16xf32> to vector<4x16xf32>
      %171 = vector.shape_cast %166 : vector<4x16xf32> to vector<1x4x16xf32>
      tpu.vector_store %arg9[%c0_144, %c3_145, %c0_146], %171 {strides = array<i32>} : memref<2x10x16xf32, #tpu.memory_space<vmem>>, vector<1x4x16xf32>,
      %c1_147 = arith.constant 1 : index
      %c3_148 = arith.constant 3 : index
      %c0_149 = arith.constant 0 : index
      %172 = vector.load %arg9[%c1_147, %c3_148, %c0_149] : memref<2x10x16xf32, #tpu.memory_space<vmem>>, vector<1x4x16xf32>
      %173 = vector.shape_cast %172 : vector<1x4x16xf32> to vector<4x16xf32>
      %174 = vector.shape_cast %167 : vector<4x16xf32> to vector<1x4x16xf32>
      tpu.vector_store %arg9[%c1_147, %c3_148, %c0_149], %174 {strides = array<i32>} : memref<2x10x16xf32, #tpu.memory_space<vmem>>, vector<1x4x16xf32>,
      %cst_150 = arith.constant 0.000000e+00 : f32
      %175 = vector.broadcast %cst_150 : f32 to vector<4x16xf32>
      %c0_151 = arith.constant 0 : index
      %c0_152 = arith.constant 0 : index
      %c0_153 = arith.constant 0 : index
      %176 = vector.load %arg9[%c0_151, %c0_152, %c0_153] : memref<2x10x16xf32, #tpu.memory_space<vmem>>, vector<1x4x16xf32>
      %177 = vector.shape_cast %176 : vector<1x4x16xf32> to vector<4x16xf32>
      %178 = arith.truncf %177 : vector<4x16xf32> to vector<4x16xbf16>
      %c0_154 = arith.constant 0 : index
      %c0_155 = arith.constant 0 : index
      %c0_156 = arith.constant 0 : index
      %179 = vector.load %arg3[%c0_154, %c0_155, %c0_156] : memref<14x16x16xbf16, #tpu.memory_space<vmem>>, vector<1x16x16xbf16>
      %180 = vector.shape_cast %179 : vector<1x16x16xbf16> to vector<16x16xbf16>
      %cst_157 = arith.constant dense<0.000000e+00> : vector<4x16xf32>
      %181 = tpu.matmul %178, %180, %cst_157 {dimension_numbers = #tpu.dot_dimension_numbers<[1], [0], [0], [1], [0, 0, 1, 1], [], []>} : vector<4x16xbf16>, vector<16x16xbf16>, vector<4x16xf32> -> vector<4x16xf32>
      %182 = arith.addf %175, %181 : vector<4x16xf32>
      %c0_158 = arith.constant 0 : index
      %c1_159 = arith.constant 1 : index
      %c0_160 = arith.constant 0 : index
      %183 = vector.load %arg9[%c0_158, %c1_159, %c0_160] : memref<2x10x16xf32, #tpu.memory_space<vmem>>, vector<1x4x16xf32>
      %184 = vector.shape_cast %183 : vector<1x4x16xf32> to vector<4x16xf32>
      %185 = arith.truncf %184 : vector<4x16xf32> to vector<4x16xbf16>
      %c1_161 = arith.constant 1 : index
      %c0_162 = arith.constant 0 : index
      %c0_163 = arith.constant 0 : index
      %186 = vector.load %arg3[%c1_161, %c0_162, %c0_163] : memref<14x16x16xbf16, #tpu.memory_space<vmem>>, vector<1x16x16xbf16>
      %187 = vector.shape_cast %186 : vector<1x16x16xbf16> to vector<16x16xbf16>
      %cst_164 = arith.constant dense<0.000000e+00> : vector<4x16xf32>
      %188 = tpu.matmul %185, %187, %cst_164 {dimension_numbers = #tpu.dot_dimension_numbers<[1], [0], [0], [1], [0, 0, 1, 1], [], []>} : vector<4x16xbf16>, vector<16x16xbf16>, vector<4x16xf32> -> vector<4x16xf32>
      %189 = arith.addf %182, %188 : vector<4x16xf32>
      %c0_165 = arith.constant 0 : index
      %c2_166 = arith.constant 2 : index
      %c0_167 = arith.constant 0 : index
      %190 = vector.load %arg9[%c0_165, %c2_166, %c0_167] : memref<2x10x16xf32, #tpu.memory_space<vmem>>, vector<1x4x16xf32>
      %191 = vector.shape_cast %190 : vector<1x4x16xf32> to vector<4x16xf32>
      %192 = arith.truncf %191 : vector<4x16xf32> to vector<4x16xbf16>
      %c2_168 = arith.constant 2 : index
      %c0_169 = arith.constant 0 : index
      %c0_170 = arith.constant 0 : index
      %193 = vector.load %arg3[%c2_168, %c0_169, %c0_170] : memref<14x16x16xbf16, #tpu.memory_space<vmem>>, vector<1x16x16xbf16>
      %194 = vector.shape_cast %193 : vector<1x16x16xbf16> to vector<16x16xbf16>
      %cst_171 = arith.constant dense<0.000000e+00> : vector<4x16xf32>
      %195 = tpu.matmul %192, %194, %cst_171 {dimension_numbers = #tpu.dot_dimension_numbers<[1], [0], [0], [1], [0, 0, 1, 1], [], []>} : vector<4x16xbf16>, vector<16x16xbf16>, vector<4x16xf32> -> vector<4x16xf32>
      %196 = arith.addf %189, %195 : vector<4x16xf32>
      %c0_172 = arith.constant 0 : index
      %c3_173 = arith.constant 3 : index
      %c0_174 = arith.constant 0 : index
      %197 = vector.load %arg9[%c0_172, %c3_173, %c0_174] : memref<2x10x16xf32, #tpu.memory_space<vmem>>, vector<1x4x16xf32>
      %198 = vector.shape_cast %197 : vector<1x4x16xf32> to vector<4x16xf32>
      %199 = arith.truncf %198 : vector<4x16xf32> to vector<4x16xbf16>
      %c3_175 = arith.constant 3 : index
      %c0_176 = arith.constant 0 : index
      %c0_177 = arith.constant 0 : index
      %200 = vector.load %arg3[%c3_175, %c0_176, %c0_177] : memref<14x16x16xbf16, #tpu.memory_space<vmem>>, vector<1x16x16xbf16>
      %201 = vector.shape_cast %200 : vector<1x16x16xbf16> to vector<16x16xbf16>
      %cst_178 = arith.constant dense<0.000000e+00> : vector<4x16xf32>
      %202 = tpu.matmul %199, %201, %cst_178 {dimension_numbers = #tpu.dot_dimension_numbers<[1], [0], [0], [1], [0, 0, 1, 1], [], []>} : vector<4x16xbf16>, vector<16x16xbf16>, vector<4x16xf32> -> vector<4x16xf32>
      %203 = arith.addf %196, %202 : vector<4x16xf32>
      %c0_179 = arith.constant 0 : index
      %c4_180 = arith.constant 4 : index
      %c0_181 = arith.constant 0 : index
      %204 = vector.load %arg9[%c0_179, %c4_180, %c0_181] : memref<2x10x16xf32, #tpu.memory_space<vmem>>, vector<1x4x16xf32>
      %205 = vector.shape_cast %204 : vector<1x4x16xf32> to vector<4x16xf32>
      %206 = arith.truncf %205 : vector<4x16xf32> to vector<4x16xbf16>
      %c4_182 = arith.constant 4 : index
      %c0_183 = arith.constant 0 : index
      %c0_184 = arith.constant 0 : index
      %207 = vector.load %arg3[%c4_182, %c0_183, %c0_184] : memref<14x16x16xbf16, #tpu.memory_space<vmem>>, vector<1x16x16xbf16>
      %208 = vector.shape_cast %207 : vector<1x16x16xbf16> to vector<16x16xbf16>
      %cst_185 = arith.constant dense<0.000000e+00> : vector<4x16xf32>
      %209 = tpu.matmul %206, %208, %cst_185 {dimension_numbers = #tpu.dot_dimension_numbers<[1], [0], [0], [1], [0, 0, 1, 1], [], []>} : vector<4x16xbf16>, vector<16x16xbf16>, vector<4x16xf32> -> vector<4x16xf32>
      %210 = arith.addf %203, %209 : vector<4x16xf32>
      %c0_186 = arith.constant 0 : index
      %c5_187 = arith.constant 5 : index
      %c0_188 = arith.constant 0 : index
      %211 = vector.load %arg9[%c0_186, %c5_187, %c0_188] : memref<2x10x16xf32, #tpu.memory_space<vmem>>, vector<1x4x16xf32>
      %212 = vector.shape_cast %211 : vector<1x4x16xf32> to vector<4x16xf32>
      %213 = arith.truncf %212 : vector<4x16xf32> to vector<4x16xbf16>
      %c5_189 = arith.constant 5 : index
      %c0_190 = arith.constant 0 : index
      %c0_191 = arith.constant 0 : index
      %214 = vector.load %arg3[%c5_189, %c0_190, %c0_191] : memref<14x16x16xbf16, #tpu.memory_space<vmem>>, vector<1x16x16xbf16>
      %215 = vector.shape_cast %214 : vector<1x16x16xbf16> to vector<16x16xbf16>
      %cst_192 = arith.constant dense<0.000000e+00> : vector<4x16xf32>
      %216 = tpu.matmul %213, %215, %cst_192 {dimension_numbers = #tpu.dot_dimension_numbers<[1], [0], [0], [1], [0, 0, 1, 1], [], []>} : vector<4x16xbf16>, vector<16x16xbf16>, vector<4x16xf32> -> vector<4x16xf32>
      %217 = arith.addf %210, %216 : vector<4x16xf32>
      %c0_193 = arith.constant 0 : index
      %c6_194 = arith.constant 6 : index
      %c0_195 = arith.constant 0 : index
      %218 = vector.load %arg9[%c0_193, %c6_194, %c0_195] : memref<2x10x16xf32, #tpu.memory_space<vmem>>, vector<1x4x16xf32>
      %219 = vector.shape_cast %218 : vector<1x4x16xf32> to vector<4x16xf32>
      %220 = arith.truncf %219 : vector<4x16xf32> to vector<4x16xbf16>
      %c6_196 = arith.constant 6 : index
      %c0_197 = arith.constant 0 : index
      %c0_198 = arith.constant 0 : index
      %221 = vector.load %arg3[%c6_196, %c0_197, %c0_198] : memref<14x16x16xbf16, #tpu.memory_space<vmem>>, vector<1x16x16xbf16>
      %222 = vector.shape_cast %221 : vector<1x16x16xbf16> to vector<16x16xbf16>
      %cst_199 = arith.constant dense<0.000000e+00> : vector<4x16xf32>
      %223 = tpu.matmul %220, %222, %cst_199 {dimension_numbers = #tpu.dot_dimension_numbers<[1], [0], [0], [1], [0, 0, 1, 1], [], []>} : vector<4x16xbf16>, vector<16x16xbf16>, vector<4x16xf32> -> vector<4x16xf32>
      %224 = arith.addf %217, %223 : vector<4x16xf32>
      %c1_200 = arith.constant 1 : index
      %c0_201 = arith.constant 0 : index
      %c0_202 = arith.constant 0 : index
      %225 = vector.load %arg9[%c1_200, %c0_201, %c0_202] : memref<2x10x16xf32, #tpu.memory_space<vmem>>, vector<1x4x16xf32>
      %226 = vector.shape_cast %225 : vector<1x4x16xf32> to vector<4x16xf32>
      %227 = arith.truncf %226 : vector<4x16xf32> to vector<4x16xbf16>
      %c7_203 = arith.constant 7 : index
      %c0_204 = arith.constant 0 : index
      %c0_205 = arith.constant 0 : index
      %228 = vector.load %arg3[%c7_203, %c0_204, %c0_205] : memref<14x16x16xbf16, #tpu.memory_space<vmem>>, vector<1x16x16xbf16>
      %229 = vector.shape_cast %228 : vector<1x16x16xbf16> to vector<16x16xbf16>
      %cst_206 = arith.constant dense<0.000000e+00> : vector<4x16xf32>
      %230 = tpu.matmul %227, %229, %cst_206 {dimension_numbers = #tpu.dot_dimension_numbers<[1], [0], [0], [1], [0, 0, 1, 1], [], []>} : vector<4x16xbf16>, vector<16x16xbf16>, vector<4x16xf32> -> vector<4x16xf32>
      %231 = arith.addf %224, %230 : vector<4x16xf32>
      %c1_207 = arith.constant 1 : index
      %c1_208 = arith.constant 1 : index
      %c0_209 = arith.constant 0 : index
      %232 = vector.load %arg9[%c1_207, %c1_208, %c0_209] : memref<2x10x16xf32, #tpu.memory_space<vmem>>, vector<1x4x16xf32>
      %233 = vector.shape_cast %232 : vector<1x4x16xf32> to vector<4x16xf32>
      %234 = arith.truncf %233 : vector<4x16xf32> to vector<4x16xbf16>
      %c8_210 = arith.constant 8 : index
      %c0_211 = arith.constant 0 : index
      %c0_212 = arith.constant 0 : index
      %235 = vector.load %arg3[%c8_210, %c0_211, %c0_212] : memref<14x16x16xbf16, #tpu.memory_space<vmem>>, vector<1x16x16xbf16>
      %236 = vector.shape_cast %235 : vector<1x16x16xbf16> to vector<16x16xbf16>
      %cst_213 = arith.constant dense<0.000000e+00> : vector<4x16xf32>
      %237 = tpu.matmul %234, %236, %cst_213 {dimension_numbers = #tpu.dot_dimension_numbers<[1], [0], [0], [1], [0, 0, 1, 1], [], []>} : vector<4x16xbf16>, vector<16x16xbf16>, vector<4x16xf32> -> vector<4x16xf32>
      %238 = arith.addf %231, %237 : vector<4x16xf32>
      %c1_214 = arith.constant 1 : index
      %c2_215 = arith.constant 2 : index
      %c0_216 = arith.constant 0 : index
      %239 = vector.load %arg9[%c1_214, %c2_215, %c0_216] : memref<2x10x16xf32, #tpu.memory_space<vmem>>, vector<1x4x16xf32>
      %240 = vector.shape_cast %239 : vector<1x4x16xf32> to vector<4x16xf32>
      %241 = arith.truncf %240 : vector<4x16xf32> to vector<4x16xbf16>
      %c9_217 = arith.constant 9 : index
      %c0_218 = arith.constant 0 : index
      %c0_219 = arith.constant 0 : index
      %242 = vector.load %arg3[%c9_217, %c0_218, %c0_219] : memref<14x16x16xbf16, #tpu.memory_space<vmem>>, vector<1x16x16xbf16>
      %243 = vector.shape_cast %242 : vector<1x16x16xbf16> to vector<16x16xbf16>
      %cst_220 = arith.constant dense<0.000000e+00> : vector<4x16xf32>
      %244 = tpu.matmul %241, %243, %cst_220 {dimension_numbers = #tpu.dot_dimension_numbers<[1], [0], [0], [1], [0, 0, 1, 1], [], []>} : vector<4x16xbf16>, vector<16x16xbf16>, vector<4x16xf32> -> vector<4x16xf32>
      %245 = arith.addf %238, %244 : vector<4x16xf32>
      %c1_221 = arith.constant 1 : index
      %c3_222 = arith.constant 3 : index
      %c0_223 = arith.constant 0 : index
      %246 = vector.load %arg9[%c1_221, %c3_222, %c0_223] : memref<2x10x16xf32, #tpu.memory_space<vmem>>, vector<1x4x16xf32>
      %247 = vector.shape_cast %246 : vector<1x4x16xf32> to vector<4x16xf32>
      %248 = arith.truncf %247 : vector<4x16xf32> to vector<4x16xbf16>
      %c10_224 = arith.constant 10 : index
      %c0_225 = arith.constant 0 : index
      %c0_226 = arith.constant 0 : index
      %249 = vector.load %arg3[%c10_224, %c0_225, %c0_226] : memref<14x16x16xbf16, #tpu.memory_space<vmem>>, vector<1x16x16xbf16>
      %250 = vector.shape_cast %249 : vector<1x16x16xbf16> to vector<16x16xbf16>
      %cst_227 = arith.constant dense<0.000000e+00> : vector<4x16xf32>
      %251 = tpu.matmul %248, %250, %cst_227 {dimension_numbers = #tpu.dot_dimension_numbers<[1], [0], [0], [1], [0, 0, 1, 1], [], []>} : vector<4x16xbf16>, vector<16x16xbf16>, vector<4x16xf32> -> vector<4x16xf32>
      %252 = arith.addf %245, %251 : vector<4x16xf32>
      %c1_228 = arith.constant 1 : index
      %c4_229 = arith.constant 4 : index
      %c0_230 = arith.constant 0 : index
      %253 = vector.load %arg9[%c1_228, %c4_229, %c0_230] : memref<2x10x16xf32, #tpu.memory_space<vmem>>, vector<1x4x16xf32>
      %254 = vector.shape_cast %253 : vector<1x4x16xf32> to vector<4x16xf32>
      %255 = arith.truncf %254 : vector<4x16xf32> to vector<4x16xbf16>
      %c11_231 = arith.constant 11 : index
      %c0_232 = arith.constant 0 : index
      %c0_233 = arith.constant 0 : index
      %256 = vector.load %arg3[%c11_231, %c0_232, %c0_233] : memref<14x16x16xbf16, #tpu.memory_space<vmem>>, vector<1x16x16xbf16>
      %257 = vector.shape_cast %256 : vector<1x16x16xbf16> to vector<16x16xbf16>
      %cst_234 = arith.constant dense<0.000000e+00> : vector<4x16xf32>
      %258 = tpu.matmul %255, %257, %cst_234 {dimension_numbers = #tpu.dot_dimension_numbers<[1], [0], [0], [1], [0, 0, 1, 1], [], []>} : vector<4x16xbf16>, vector<16x16xbf16>, vector<4x16xf32> -> vector<4x16xf32>
      %259 = arith.addf %252, %258 : vector<4x16xf32>
      %c1_235 = arith.constant 1 : index
      %c5_236 = arith.constant 5 : index
      %c0_237 = arith.constant 0 : index
      %260 = vector.load %arg9[%c1_235, %c5_236, %c0_237] : memref<2x10x16xf32, #tpu.memory_space<vmem>>, vector<1x4x16xf32>
      %261 = vector.shape_cast %260 : vector<1x4x16xf32> to vector<4x16xf32>
      %262 = arith.truncf %261 : vector<4x16xf32> to vector<4x16xbf16>
      %c12_238 = arith.constant 12 : index
      %c0_239 = arith.constant 0 : index
      %c0_240 = arith.constant 0 : index
      %263 = vector.load %arg3[%c12_238, %c0_239, %c0_240] : memref<14x16x16xbf16, #tpu.memory_space<vmem>>, vector<1x16x16xbf16>
      %264 = vector.shape_cast %263 : vector<1x16x16xbf16> to vector<16x16xbf16>
      %cst_241 = arith.constant dense<0.000000e+00> : vector<4x16xf32>
      %265 = tpu.matmul %262, %264, %cst_241 {dimension_numbers = #tpu.dot_dimension_numbers<[1], [0], [0], [1], [0, 0, 1, 1], [], []>} : vector<4x16xbf16>, vector<16x16xbf16>, vector<4x16xf32> -> vector<4x16xf32>
      %266 = arith.addf %259, %265 : vector<4x16xf32>
      %c1_242 = arith.constant 1 : index
      %c6_243 = arith.constant 6 : index
      %c0_244 = arith.constant 0 : index
      %267 = vector.load %arg9[%c1_242, %c6_243, %c0_244] : memref<2x10x16xf32, #tpu.memory_space<vmem>>, vector<1x4x16xf32>
      %268 = vector.shape_cast %267 : vector<1x4x16xf32> to vector<4x16xf32>
      %269 = arith.truncf %268 : vector<4x16xf32> to vector<4x16xbf16>
      %c13_245 = arith.constant 13 : index
      %c0_246 = arith.constant 0 : index
      %c0_247 = arith.constant 0 : index
      %270 = vector.load %arg3[%c13_245, %c0_246, %c0_247] : memref<14x16x16xbf16, #tpu.memory_space<vmem>>, vector<1x16x16xbf16>
      %271 = vector.shape_cast %270 : vector<1x16x16xbf16> to vector<16x16xbf16>
      %cst_248 = arith.constant dense<0.000000e+00> : vector<4x16xf32>
      %272 = tpu.matmul %269, %271, %cst_248 {dimension_numbers = #tpu.dot_dimension_numbers<[1], [0], [0], [1], [0, 0, 1, 1], [], []>} : vector<4x16xbf16>, vector<16x16xbf16>, vector<4x16xf32> -> vector<4x16xf32>
      %273 = arith.addf %266, %272 : vector<4x16xf32>
      %274 = vector.broadcast %168 : f32 to vector<4x16xf32>
      %275 = arith.addf %273, %274 : vector<4x16xf32>
      %cst_249 = arith.constant 0.000000e+00 : f32
      %276 = vector.broadcast %cst_249 : f32 to vector<4x16xf32>
      %277 = arith.maximumf %275, %276 : vector<4x16xf32>
      %278 = arith.negf %277 : vector<4x16xf32>
      %279 = math.exp %278 : vector<4x16xf32>
      %cst_250 = arith.constant 1.000000e+00 : f32
      %280 = vector.broadcast %cst_250 : f32 to vector<4x16xf32>
      %281 = arith.addf %280, %279 : vector<4x16xf32>
      %282 = arith.divf %280, %281 : vector<4x16xf32>
      %cst_251 = arith.constant dense<0.000000e+00> : vector<16x16xf32>
      %283 = vector.multi_reduction <add>, %44, %cst_251 [0] : vector<4x16x16xf32> to vector<16x16xf32>
      %cst_252 = arith.constant 4.000000e+00 : f32
      %284 = vector.broadcast %cst_252 : f32 to vector<16x16xf32>
      %285 = arith.divf %283, %284 : vector<16x16xf32>
      %cst_253 = arith.constant dense<0xFF800000> : vector<16x16xf32>
      %286 = vector.multi_reduction <maximumf>, %44, %cst_253 [0] : vector<4x16x16xf32> to vector<16x16xf32>
      %c2_254 = arith.constant 2 : index
      %287 = memref.load %arg5[%c2_254] : memref<3xf32, #tpu.memory_space<smem>>
      %c0_255 = arith.constant 0 : index
      %c3_256 = arith.constant 3 : index
      %c0_257 = arith.constant 0 : index
      %288 = vector.load %arg10[%c0_255, %c3_256, %c0_257] : memref<2x22x16xf32, #tpu.memory_space<vmem>>, vector<1x16x16xf32>
      %289 = vector.shape_cast %288 : vector<1x16x16xf32> to vector<16x16xf32>
      %290 = vector.shape_cast %285 : vector<16x16xf32> to vector<1x16x16xf32>
      tpu.vector_store %arg10[%c0_255, %c3_256, %c0_257], %290 {strides = array<i32>} : memref<2x22x16xf32, #tpu.memory_space<vmem>>, vector<1x16x16xf32>,
      %c1_258 = arith.constant 1 : index
      %c3_259 = arith.constant 3 : index
      %c0_260 = arith.constant 0 : index
      %291 = vector.load %arg10[%c1_258, %c3_259, %c0_260] : memref<2x22x16xf32, #tpu.memory_space<vmem>>, vector<1x16x16xf32>
      %292 = vector.shape_cast %291 : vector<1x16x16xf32> to vector<16x16xf32>
      %293 = vector.shape_cast %286 : vector<16x16xf32> to vector<1x16x16xf32>
      tpu.vector_store %arg10[%c1_258, %c3_259, %c0_260], %293 {strides = array<i32>} : memref<2x22x16xf32, #tpu.memory_space<vmem>>, vector<1x16x16xf32>,
      %cst_261 = arith.constant 0.000000e+00 : f32
      %294 = vector.broadcast %cst_261 : f32 to vector<16x16xf32>
      %c0_262 = arith.constant 0 : index
      %c0_263 = arith.constant 0 : index
      %c0_264 = arith.constant 0 : index
      %295 = vector.load %arg10[%c0_262, %c0_263, %c0_264] : memref<2x22x16xf32, #tpu.memory_space<vmem>>, vector<1x16x16xf32>
      %296 = vector.shape_cast %295 : vector<1x16x16xf32> to vector<16x16xf32>
      %297 = arith.truncf %296 : vector<16x16xf32> to vector<16x16xbf16>
      %c0_265 = arith.constant 0 : index
      %c0_266 = arith.constant 0 : index
      %c0_267 = arith.constant 0 : index
      %298 = vector.load %arg4[%c0_265, %c0_266, %c0_267] : memref<14x16x16xbf16, #tpu.memory_space<vmem>>, vector<1x16x16xbf16>
      %299 = vector.shape_cast %298 : vector<1x16x16xbf16> to vector<16x16xbf16>
      %cst_268 = arith.constant dense<0.000000e+00> : vector<16x16xf32>
      %300 = tpu.matmul %297, %299, %cst_268 {dimension_numbers = #tpu.dot_dimension_numbers<[1], [0], [0], [1], [0, 0, 1, 1], [], []>} : vector<16x16xbf16>, vector<16x16xbf16>, vector<16x16xf32> -> vector<16x16xf32>
      %301 = arith.addf %294, %300 : vector<16x16xf32>
      %c0_269 = arith.constant 0 : index
      %c1_270 = arith.constant 1 : index
      %c0_271 = arith.constant 0 : index
      %302 = vector.load %arg10[%c0_269, %c1_270, %c0_271] : memref<2x22x16xf32, #tpu.memory_space<vmem>>, vector<1x16x16xf32>
      %303 = vector.shape_cast %302 : vector<1x16x16xf32> to vector<16x16xf32>
      %304 = arith.truncf %303 : vector<16x16xf32> to vector<16x16xbf16>
      %c1_272 = arith.constant 1 : index
      %c0_273 = arith.constant 0 : index
      %c0_274 = arith.constant 0 : index
      %305 = vector.load %arg4[%c1_272, %c0_273, %c0_274] : memref<14x16x16xbf16, #tpu.memory_space<vmem>>, vector<1x16x16xbf16>
      %306 = vector.shape_cast %305 : vector<1x16x16xbf16> to vector<16x16xbf16>
      %cst_275 = arith.constant dense<0.000000e+00> : vector<16x16xf32>
      %307 = tpu.matmul %304, %306, %cst_275 {dimension_numbers = #tpu.dot_dimension_numbers<[1], [0], [0], [1], [0, 0, 1, 1], [], []>} : vector<16x16xbf16>, vector<16x16xbf16>, vector<16x16xf32> -> vector<16x16xf32>
      %308 = arith.addf %301, %307 : vector<16x16xf32>
      %c0_276 = arith.constant 0 : index
      %c2_277 = arith.constant 2 : index
      %c0_278 = arith.constant 0 : index
      %309 = vector.load %arg10[%c0_276, %c2_277, %c0_278] : memref<2x22x16xf32, #tpu.memory_space<vmem>>, vector<1x16x16xf32>
      %310 = vector.shape_cast %309 : vector<1x16x16xf32> to vector<16x16xf32>
      %311 = arith.truncf %310 : vector<16x16xf32> to vector<16x16xbf16>
      %c2_279 = arith.constant 2 : index
      %c0_280 = arith.constant 0 : index
      %c0_281 = arith.constant 0 : index
      %312 = vector.load %arg4[%c2_279, %c0_280, %c0_281] : memref<14x16x16xbf16, #tpu.memory_space<vmem>>, vector<1x16x16xbf16>
      %313 = vector.shape_cast %312 : vector<1x16x16xbf16> to vector<16x16xbf16>
      %cst_282 = arith.constant dense<0.000000e+00> : vector<16x16xf32>
      %314 = tpu.matmul %311, %313, %cst_282 {dimension_numbers = #tpu.dot_dimension_numbers<[1], [0], [0], [1], [0, 0, 1, 1], [], []>} : vector<16x16xbf16>, vector<16x16xbf16>, vector<16x16xf32> -> vector<16x16xf32>
      %315 = arith.addf %308, %314 : vector<16x16xf32>
      %c0_283 = arith.constant 0 : index
      %c3_284 = arith.constant 3 : index
      %c0_285 = arith.constant 0 : index
      %316 = vector.load %arg10[%c0_283, %c3_284, %c0_285] : memref<2x22x16xf32, #tpu.memory_space<vmem>>, vector<1x16x16xf32>
      %317 = vector.shape_cast %316 : vector<1x16x16xf32> to vector<16x16xf32>
      %318 = arith.truncf %317 : vector<16x16xf32> to vector<16x16xbf16>
      %c3_286 = arith.constant 3 : index
      %c0_287 = arith.constant 0 : index
      %c0_288 = arith.constant 0 : index
      %319 = vector.load %arg4[%c3_286, %c0_287, %c0_288] : memref<14x16x16xbf16, #tpu.memory_space<vmem>>, vector<1x16x16xbf16>
      %320 = vector.shape_cast %319 : vector<1x16x16xbf16> to vector<16x16xbf16>
      %cst_289 = arith.constant dense<0.000000e+00> : vector<16x16xf32>
      %321 = tpu.matmul %318, %320, %cst_289 {dimension_numbers = #tpu.dot_dimension_numbers<[1], [0], [0], [1], [0, 0, 1, 1], [], []>} : vector<16x16xbf16>, vector<16x16xbf16>, vector<16x16xf32> -> vector<16x16xf32>
      %322 = arith.addf %315, %321 : vector<16x16xf32>
      %c0_290 = arith.constant 0 : index
      %c4_291 = arith.constant 4 : index
      %c0_292 = arith.constant 0 : index
      %323 = vector.load %arg10[%c0_290, %c4_291, %c0_292] : memref<2x22x16xf32, #tpu.memory_space<vmem>>, vector<1x16x16xf32>
      %324 = vector.shape_cast %323 : vector<1x16x16xf32> to vector<16x16xf32>
      %325 = arith.truncf %324 : vector<16x16xf32> to vector<16x16xbf16>
      %c4_293 = arith.constant 4 : index
      %c0_294 = arith.constant 0 : index
      %c0_295 = arith.constant 0 : index
      %326 = vector.load %arg4[%c4_293, %c0_294, %c0_295] : memref<14x16x16xbf16, #tpu.memory_space<vmem>>, vector<1x16x16xbf16>
      %327 = vector.shape_cast %326 : vector<1x16x16xbf16> to vector<16x16xbf16>
      %cst_296 = arith.constant dense<0.000000e+00> : vector<16x16xf32>
      %328 = tpu.matmul %325, %327, %cst_296 {dimension_numbers = #tpu.dot_dimension_numbers<[1], [0], [0], [1], [0, 0, 1, 1], [], []>} : vector<16x16xbf16>, vector<16x16xbf16>, vector<16x16xf32> -> vector<16x16xf32>
      %329 = arith.addf %322, %328 : vector<16x16xf32>
      %c0_297 = arith.constant 0 : index
      %c5_298 = arith.constant 5 : index
      %c0_299 = arith.constant 0 : index
      %330 = vector.load %arg10[%c0_297, %c5_298, %c0_299] : memref<2x22x16xf32, #tpu.memory_space<vmem>>, vector<1x16x16xf32>
      %331 = vector.shape_cast %330 : vector<1x16x16xf32> to vector<16x16xf32>
      %332 = arith.truncf %331 : vector<16x16xf32> to vector<16x16xbf16>
      %c5_300 = arith.constant 5 : index
      %c0_301 = arith.constant 0 : index
      %c0_302 = arith.constant 0 : index
      %333 = vector.load %arg4[%c5_300, %c0_301, %c0_302] : memref<14x16x16xbf16, #tpu.memory_space<vmem>>, vector<1x16x16xbf16>
      %334 = vector.shape_cast %333 : vector<1x16x16xbf16> to vector<16x16xbf16>
      %cst_303 = arith.constant dense<0.000000e+00> : vector<16x16xf32>
      %335 = tpu.matmul %332, %334, %cst_303 {dimension_numbers = #tpu.dot_dimension_numbers<[1], [0], [0], [1], [0, 0, 1, 1], [], []>} : vector<16x16xbf16>, vector<16x16xbf16>, vector<16x16xf32> -> vector<16x16xf32>
      %336 = arith.addf %329, %335 : vector<16x16xf32>
      %c0_304 = arith.constant 0 : index
      %c6_305 = arith.constant 6 : index
      %c0_306 = arith.constant 0 : index
      %337 = vector.load %arg10[%c0_304, %c6_305, %c0_306] : memref<2x22x16xf32, #tpu.memory_space<vmem>>, vector<1x16x16xf32>
      %338 = vector.shape_cast %337 : vector<1x16x16xf32> to vector<16x16xf32>
      %339 = arith.truncf %338 : vector<16x16xf32> to vector<16x16xbf16>
      %c6_307 = arith.constant 6 : index
      %c0_308 = arith.constant 0 : index
      %c0_309 = arith.constant 0 : index
      %340 = vector.load %arg4[%c6_307, %c0_308, %c0_309] : memref<14x16x16xbf16, #tpu.memory_space<vmem>>, vector<1x16x16xbf16>
      %341 = vector.shape_cast %340 : vector<1x16x16xbf16> to vector<16x16xbf16>
      %cst_310 = arith.constant dense<0.000000e+00> : vector<16x16xf32>
      %342 = tpu.matmul %339, %341, %cst_310 {dimension_numbers = #tpu.dot_dimension_numbers<[1], [0], [0], [1], [0, 0, 1, 1], [], []>} : vector<16x16xbf16>, vector<16x16xbf16>, vector<16x16xf32> -> vector<16x16xf32>
      %343 = arith.addf %336, %342 : vector<16x16xf32>
      %c1_311 = arith.constant 1 : index
      %c0_312 = arith.constant 0 : index
      %c0_313 = arith.constant 0 : index
      %344 = vector.load %arg10[%c1_311, %c0_312, %c0_313] : memref<2x22x16xf32, #tpu.memory_space<vmem>>, vector<1x16x16xf32>
      %345 = vector.shape_cast %344 : vector<1x16x16xf32> to vector<16x16xf32>
      %346 = arith.truncf %345 : vector<16x16xf32> to vector<16x16xbf16>
      %c7_314 = arith.constant 7 : index
      %c0_315 = arith.constant 0 : index
      %c0_316 = arith.constant 0 : index
      %347 = vector.load %arg4[%c7_314, %c0_315, %c0_316] : memref<14x16x16xbf16, #tpu.memory_space<vmem>>, vector<1x16x16xbf16>
      %348 = vector.shape_cast %347 : vector<1x16x16xbf16> to vector<16x16xbf16>
      %cst_317 = arith.constant dense<0.000000e+00> : vector<16x16xf32>
      %349 = tpu.matmul %346, %348, %cst_317 {dimension_numbers = #tpu.dot_dimension_numbers<[1], [0], [0], [1], [0, 0, 1, 1], [], []>} : vector<16x16xbf16>, vector<16x16xbf16>, vector<16x16xf32> -> vector<16x16xf32>
      %350 = arith.addf %343, %349 : vector<16x16xf32>
      %c1_318 = arith.constant 1 : index
      %c1_319 = arith.constant 1 : index
      %c0_320 = arith.constant 0 : index
      %351 = vector.load %arg10[%c1_318, %c1_319, %c0_320] : memref<2x22x16xf32, #tpu.memory_space<vmem>>, vector<1x16x16xf32>
      %352 = vector.shape_cast %351 : vector<1x16x16xf32> to vector<16x16xf32>
      %353 = arith.truncf %352 : vector<16x16xf32> to vector<16x16xbf16>
      %c8_321 = arith.constant 8 : index
      %c0_322 = arith.constant 0 : index
      %c0_323 = arith.constant 0 : index
      %354 = vector.load %arg4[%c8_321, %c0_322, %c0_323] : memref<14x16x16xbf16, #tpu.memory_space<vmem>>, vector<1x16x16xbf16>
      %355 = vector.shape_cast %354 : vector<1x16x16xbf16> to vector<16x16xbf16>
      %cst_324 = arith.constant dense<0.000000e+00> : vector<16x16xf32>
      %356 = tpu.matmul %353, %355, %cst_324 {dimension_numbers = #tpu.dot_dimension_numbers<[1], [0], [0], [1], [0, 0, 1, 1], [], []>} : vector<16x16xbf16>, vector<16x16xbf16>, vector<16x16xf32> -> vector<16x16xf32>
      %357 = arith.addf %350, %356 : vector<16x16xf32>
      %c1_325 = arith.constant 1 : index
      %c2_326 = arith.constant 2 : index
      %c0_327 = arith.constant 0 : index
      %358 = vector.load %arg10[%c1_325, %c2_326, %c0_327] : memref<2x22x16xf32, #tpu.memory_space<vmem>>, vector<1x16x16xf32>
      %359 = vector.shape_cast %358 : vector<1x16x16xf32> to vector<16x16xf32>
      %360 = arith.truncf %359 : vector<16x16xf32> to vector<16x16xbf16>
      %c9_328 = arith.constant 9 : index
      %c0_329 = arith.constant 0 : index
      %c0_330 = arith.constant 0 : index
      %361 = vector.load %arg4[%c9_328, %c0_329, %c0_330] : memref<14x16x16xbf16, #tpu.memory_space<vmem>>, vector<1x16x16xbf16>
      %362 = vector.shape_cast %361 : vector<1x16x16xbf16> to vector<16x16xbf16>
      %cst_331 = arith.constant dense<0.000000e+00> : vector<16x16xf32>
      %363 = tpu.matmul %360, %362, %cst_331 {dimension_numbers = #tpu.dot_dimension_numbers<[1], [0], [0], [1], [0, 0, 1, 1], [], []>} : vector<16x16xbf16>, vector<16x16xbf16>, vector<16x16xf32> -> vector<16x16xf32>
      %364 = arith.addf %357, %363 : vector<16x16xf32>
      %c1_332 = arith.constant 1 : index
      %c3_333 = arith.constant 3 : index
      %c0_334 = arith.constant 0 : index
      %365 = vector.load %arg10[%c1_332, %c3_333, %c0_334] : memref<2x22x16xf32, #tpu.memory_space<vmem>>, vector<1x16x16xf32>
      %366 = vector.shape_cast %365 : vector<1x16x16xf32> to vector<16x16xf32>
      %367 = arith.truncf %366 : vector<16x16xf32> to vector<16x16xbf16>
      %c10_335 = arith.constant 10 : index
      %c0_336 = arith.constant 0 : index
      %c0_337 = arith.constant 0 : index
      %368 = vector.load %arg4[%c10_335, %c0_336, %c0_337] : memref<14x16x16xbf16, #tpu.memory_space<vmem>>, vector<1x16x16xbf16>
      %369 = vector.shape_cast %368 : vector<1x16x16xbf16> to vector<16x16xbf16>
      %cst_338 = arith.constant dense<0.000000e+00> : vector<16x16xf32>
      %370 = tpu.matmul %367, %369, %cst_338 {dimension_numbers = #tpu.dot_dimension_numbers<[1], [0], [0], [1], [0, 0, 1, 1], [], []>} : vector<16x16xbf16>, vector<16x16xbf16>, vector<16x16xf32> -> vector<16x16xf32>
      %371 = arith.addf %364, %370 : vector<16x16xf32>
      %c1_339 = arith.constant 1 : index
      %c4_340 = arith.constant 4 : index
      %c0_341 = arith.constant 0 : index
      %372 = vector.load %arg10[%c1_339, %c4_340, %c0_341] : memref<2x22x16xf32, #tpu.memory_space<vmem>>, vector<1x16x16xf32>
      %373 = vector.shape_cast %372 : vector<1x16x16xf32> to vector<16x16xf32>
      %374 = arith.truncf %373 : vector<16x16xf32> to vector<16x16xbf16>
      %c11_342 = arith.constant 11 : index
      %c0_343 = arith.constant 0 : index
      %c0_344 = arith.constant 0 : index
      %375 = vector.load %arg4[%c11_342, %c0_343, %c0_344] : memref<14x16x16xbf16, #tpu.memory_space<vmem>>, vector<1x16x16xbf16>
      %376 = vector.shape_cast %375 : vector<1x16x16xbf16> to vector<16x16xbf16>
      %cst_345 = arith.constant dense<0.000000e+00> : vector<16x16xf32>
      %377 = tpu.matmul %374, %376, %cst_345 {dimension_numbers = #tpu.dot_dimension_numbers<[1], [0], [0], [1], [0, 0, 1, 1], [], []>} : vector<16x16xbf16>, vector<16x16xbf16>, vector<16x16xf32> -> vector<16x16xf32>
      %378 = arith.addf %371, %377 : vector<16x16xf32>
      %c1_346 = arith.constant 1 : index
      %c5_347 = arith.constant 5 : index
      %c0_348 = arith.constant 0 : index
      %379 = vector.load %arg10[%c1_346, %c5_347, %c0_348] : memref<2x22x16xf32, #tpu.memory_space<vmem>>, vector<1x16x16xf32>
      %380 = vector.shape_cast %379 : vector<1x16x16xf32> to vector<16x16xf32>
      %381 = arith.truncf %380 : vector<16x16xf32> to vector<16x16xbf16>
      %c12_349 = arith.constant 12 : index
      %c0_350 = arith.constant 0 : index
      %c0_351 = arith.constant 0 : index
      %382 = vector.load %arg4[%c12_349, %c0_350, %c0_351] : memref<14x16x16xbf16, #tpu.memory_space<vmem>>, vector<1x16x16xbf16>
      %383 = vector.shape_cast %382 : vector<1x16x16xbf16> to vector<16x16xbf16>
      %cst_352 = arith.constant dense<0.000000e+00> : vector<16x16xf32>
      %384 = tpu.matmul %381, %383, %cst_352 {dimension_numbers = #tpu.dot_dimension_numbers<[1], [0], [0], [1], [0, 0, 1, 1], [], []>} : vector<16x16xbf16>, vector<16x16xbf16>, vector<16x16xf32> -> vector<16x16xf32>
      %385 = arith.addf %378, %384 : vector<16x16xf32>
      %c1_353 = arith.constant 1 : index
      %c6_354 = arith.constant 6 : index
      %c0_355 = arith.constant 0 : index
      %386 = vector.load %arg10[%c1_353, %c6_354, %c0_355] : memref<2x22x16xf32, #tpu.memory_space<vmem>>, vector<1x16x16xf32>
      %387 = vector.shape_cast %386 : vector<1x16x16xf32> to vector<16x16xf32>
      %388 = arith.truncf %387 : vector<16x16xf32> to vector<16x16xbf16>
      %c13_356 = arith.constant 13 : index
      %c0_357 = arith.constant 0 : index
      %c0_358 = arith.constant 0 : index
      %389 = vector.load %arg4[%c13_356, %c0_357, %c0_358] : memref<14x16x16xbf16, #tpu.memory_space<vmem>>, vector<1x16x16xbf16>
      %390 = vector.shape_cast %389 : vector<1x16x16xbf16> to vector<16x16xbf16>
      %cst_359 = arith.constant dense<0.000000e+00> : vector<16x16xf32>
      %391 = tpu.matmul %388, %390, %cst_359 {dimension_numbers = #tpu.dot_dimension_numbers<[1], [0], [0], [1], [0, 0, 1, 1], [], []>} : vector<16x16xbf16>, vector<16x16xbf16>, vector<16x16xf32> -> vector<16x16xf32>
      %392 = arith.addf %385, %391 : vector<16x16xf32>
      %393 = vector.broadcast %287 : f32 to vector<16x16xf32>
      %394 = arith.addf %392, %393 : vector<16x16xf32>
      %cst_360 = arith.constant 0.000000e+00 : f32
      %395 = vector.broadcast %cst_360 : f32 to vector<16x16xf32>
      %396 = arith.maximumf %394, %395 : vector<16x16xf32>
      %397 = arith.negf %396 : vector<16x16xf32>
      %398 = math.exp %397 : vector<16x16xf32>
      %cst_361 = arith.constant 1.000000e+00 : f32
      %399 = vector.broadcast %cst_361 : f32 to vector<16x16xf32>
      %400 = arith.addf %399, %398 : vector<16x16xf32>
      %401 = arith.divf %399, %400 : vector<16x16xf32>
      %402 = vector.broadcast %39 : f32 to vector<4x16xf32>
      %403 = arith.mulf %402, %163 : vector<4x16xf32>
      %404 = vector.broadcast %40 : f32 to vector<4x16xf32>
      %405 = arith.mulf %404, %282 : vector<4x16xf32>
      %406 = vector.broadcast %40 : f32 to vector<16x16xf32>
      %407 = arith.mulf %406, %401 : vector<16x16xf32>
      %408 = vector.shape_cast %403 : vector<4x16xf32> to vector<4x16x1xf32>
      %409 = vector.shape_cast %405 : vector<4x16xf32> to vector<4x1x16xf32>
      %410 = vector.broadcast %408 : vector<4x16x1xf32> to vector<4x16x16xf32>
      %411 = vector.broadcast %409 : vector<4x1x16xf32> to vector<4x16x16xf32>
      %412 = arith.addf %410, %411 : vector<4x16x16xf32>
      %413 = vector.shape_cast %407 : vector<16x16xf32> to vector<1x16x16xf32>
      %414 = vector.broadcast %413 : vector<1x16x16xf32> to vector<4x16x16xf32>
      %415 = arith.addf %412, %414 : vector<4x16x16xf32>
      %416 = arith.mulf %44, %415 : vector<4x16x16xf32>
      %417 = arith.index_cast %arg11 : i32 to index
      %c0_362 = arith.constant 0 : index
      %c0_363 = arith.constant 0 : index
      %c0_364 = arith.constant 0 : index
      %418 = vector.load %arg7[%417, %c0_362, %c0_363, %c0_364] : memref<2x4x16x16xf32, #tpu.memory_space<vmem>>, vector<1x4x16x16xf32>
      %419 = vector.shape_cast %418 : vector<1x4x16x16xf32> to vector<4x16x16xf32>
      %420 = vector.shape_cast %416 : vector<4x16x16xf32> to vector<1x4x16x16xf32>
      tpu.vector_store %arg7[%417, %c0_362, %c0_363, %c0_364], %420 {strides = array<i32>} : memref<2x4x16x16xf32, #tpu.memory_space<vmem>>, vector<1x4x16x16xf32>,
    }
    %c2_i32_36 = arith.constant 2 : i32
    return
  }
  func.func @transform_0(%arg0: i32) -> (i32, i32, i32, i32) {
    %c0_i32 = arith.constant 0 : i32
    %c0_i32_0 = arith.constant 0 : i32
    %c0_i32_1 = arith.constant 0 : i32
    %c0_i32_2 = arith.constant 0 : i32
    return %arg0, %c0_i32, %c0_i32_0, %c0_i32_1 : i32, i32, i32, i32
  }
  func.func @transform_1(%arg0: i32) -> (i32, i32, i32) {
    %c0_i32 = arith.constant 0 : i32
    %c0_i32_0 = arith.constant 0 : i32
    %c0_i32_1 = arith.constant 0 : i32
    %c0_i32_2 = arith.constant 0 : i32
    return %c0_i32, %c0_i32_0, %c0_i32_1 : i32, i32, i32
  }
  func.func @transform_2(%arg0: i32) -> (i32, i32, i32) {
    %c0_i32 = arith.constant 0 : i32
    %c0_i32_0 = arith.constant 0 : i32
    %c0_i32_1 = arith.constant 0 : i32
    %c0_i32_2 = arith.constant 0 : i32
    return %c0_i32, %c0_i32_0, %c0_i32_1 : i32, i32, i32
  }
  func.func @transform_3(%arg0: i32) -> (i32, i32, i32) {
    %c0_i32 = arith.constant 0 : i32
    %c0_i32_0 = arith.constant 0 : i32
    %c0_i32_1 = arith.constant 0 : i32
    %c0_i32_2 = arith.constant 0 : i32
    return %c0_i32, %c0_i32_0, %c0_i32_1 : i32, i32, i32
  }
  func.func @transform_4(%arg0: i32) -> i32 {
    %c0_i32 = arith.constant 0 : i32
    %c0_i32_0 = arith.constant 0 : i32
    return %c0_i32 : i32
  }
  func.func @transform_5(%arg0: i32) -> i32 {
    %c0_i32 = arith.constant 0 : i32
    %c0_i32_0 = arith.constant 0 : i32
    return %c0_i32 : i32
  }
  func.func @transform_6(%arg0: i32) -> (i32, i32, i32, i32) {
    %c0_i32 = arith.constant 0 : i32
    %c0_i32_0 = arith.constant 0 : i32
    %c0_i32_1 = arith.constant 0 : i32
    %c0_i32_2 = arith.constant 0 : i32
    return %arg0, %c0_i32, %c0_i32_0, %c0_i32_1 : i32, i32, i32, i32
  }
}

</mosaic_0001>

<llo_original>
// kernel: tpu_custom_call.1
$region0: #{tpu_custom_call.1}
  #allocation0 [shape = 'u32[]', space=smem, size = 0x4, offset = 0x4, fixed_abs, tag = 'smem constant byte address 0x4 - core index']
  #allocation1 [shape = 'u32[144,128]{1,0:T(1,128)}', space=vmem, size = 0x12000, scoped, tag = 'internal scratch']
  #allocation2 [shape = 'f32[2,10,16]{2,1,0:T(8,128)}', space=vmem, size = 0x4000, scoped, tag = 'scratch operand']
  #allocation3 [shape = 'f32[2,10,16]{2,1,0:T(8,128)}', space=vmem, size = 0x4000, scoped, tag = 'scratch operand']
  #allocation4 [shape = 'f32[2,22,16]{2,1,0:T(8,128)}', space=vmem, size = 0x6000, scoped, tag = 'scratch operand']
  %s0 = inlined_call_operand.hbm [shape: f32[2,4,16,16], index: 0, kind: input, shape index: {}]
  %s1 = inlined_call_operand.hbm [shape: bf16[14,16,16], index: 1, kind: input, shape index: {}]
  %s2 = inlined_call_operand.hbm [shape: bf16[14,16,16], index: 2, kind: input, shape index: {}]
  %s3 = inlined_call_operand.hbm [shape: bf16[14,16,16], index: 3, kind: input, shape index: {}]
  %s4 = inlined_call_operand.hbm [shape: f32[3], index: 4, kind: input, shape index: {}]
  %s5 = inlined_call_operand.hbm [shape: f32[3], index: 5, kind: input, shape index: {}]
  %s6 = inlined_call_operand.hbm [shape: f32[2,4,16,16], index: 6, kind: output, shape index: {}]
  %s7 = sld [smem:[#allocation0]]
  $region65: #{tpu_custom_call.1} parent=0
    _
  %s9 = ssub.s32 1, %s7
  %s10 = scalar_select 0, %s9, %s7
  $region1: #{tpu_custom_call.1} parent=0
    #allocation5 [shape = 'u8[65536]{0}', space=vmem, size = 0x10000, scoped, tag = 'input window, operand 0, single buffered']
    #allocation6 [shape = 's32[1]{0}', space=sflag, size = 0x4, scoped, tag = 'scoped memory for tpu_custom_call.1']
    #allocation7 [shape = 's32[1]{0}', space=sflag, size = 0x4, scoped, tag = 'scoped memory for tpu_custom_call.1']
    #allocation8 [shape = 's32[1]{0}', space=sflag, size = 0x4, scoped, tag = 'scoped memory for tpu_custom_call.1']
    #allocation9 [shape = 'u8[57344]{0}', space=vmem, size = 0xe000, scoped, tag = 'input window, operand 1, single buffered']
    #allocation10 [shape = 's32[1]{0}', space=sflag, size = 0x4, scoped, tag = 'scoped memory for tpu_custom_call.1']
    #allocation11 [shape = 'u8[57344]{0}', space=vmem, size = 0xe000, scoped, tag = 'input window, operand 2, single buffered']
    #allocation12 [shape = 'u8[57344]{0}', space=vmem, size = 0xe000, scoped, tag = 'input window, operand 3, single buffered']
    #allocation13 [shape = 's32[1]{0}', space=sflag, size = 0x4, scoped, tag = 'scoped memory for tpu_custom_call.1']
    #allocation14 [shape = 'u8[512]{0}', space=smem, size = 0x200, scoped, tag = 'input window, operand 4, single buffered']
    #allocation15 [shape = 'u8[512]{0}', space=smem, size = 0x200, scoped, tag = 'input window, operand 5, single buffered']
    #allocation16 [shape = 's32[1]{0}', space=sflag, size = 0x4, scoped, tag = 'scoped memory for tpu_custom_call.1']
    #allocation17 [shape = 'u8[65536]{0}', space=vmem, size = 0x10000, scoped, tag = 'output window, operand 0, single buffered']
    %11 = vsyncpa [#allocation6], 0
    %12 = vsyncpa [#allocation10], 0
    %13 = vsyncpa [#allocation13], 0
    %14 = vsyncpa [#allocation8], 0
    %15 = vsyncpa [#allocation16], 0
    %16 = vsyncpa [#allocation7], 0
    // Predicated region
    $region2: #{tpu_custom_call.1} parent=1 // pred_check
      _
    $region3: #{tpu_custom_call.1} parent=1 // pred_check_branch
      %18 = sbr.rel (0) target = $region5
    $region4: #{tpu_custom_call.1} parent=1 // pred_region
      %s20 = ssub.s32 2048, 2048
      %21 = vsyncadd [#allocation6], %s20
      %s22 = sshll.u32 [#allocation5], 4
      %s23 = int_to_ptr.vmem [resolvable:$true] %s22
      %28 = dma.hbm_to_vmem [thread:$0]  %s0, 2048, %s23, [#allocation6], 128, 128, 8
    $region5: #{tpu_custom_call.1} parent=1 // pred_fallthru
      _
    // Predicated region
    $region6: #{tpu_custom_call.1} parent=1 // pred_check
      _
    $region7: #{tpu_custom_call.1} parent=1 // pred_check_branch
      %30 = sbr.rel (0) target = $region9
    $region8: #{tpu_custom_call.1} parent=1 // pred_region
      %s32 = ssub.s32 1792, 1792
      %33 = vsyncadd [#allocation10], %s32
      %s34 = sshll.u32 [#allocation9], 4
      %s35 = int_to_ptr.vmem [resolvable:$true] %s34
      %40 = dma.hbm_to_vmem [thread:$0]  %s1, 1792, %s35, [#allocation10], 64, 64, 4
    $region9: #{tpu_custom_call.1} parent=1 // pred_fallthru
      _
    // Predicated region
    $region10: #{tpu_custom_call.1} parent=1 // pred_check
      _
    $region11: #{tpu_custom_call.1} parent=1 // pred_check_branch
      %42 = sbr.rel (0) target = $region13
    $region12: #{tpu_custom_call.1} parent=1 // pred_region
      %s44 = ssub.s32 1792, 1792
      %45 = vsyncadd [#allocation10], %s44
      %s46 = sshll.u32 [#allocation11], 4
      %s47 = int_to_ptr.vmem [resolvable:$true] %s46
      %52 = dma.hbm_to_vmem [thread:$0]  %s2, 1792, %s47, [#allocation10], 64, 64, 4
    $region13: #{tpu_custom_call.1} parent=1 // pred_fallthru
      _
    // Predicated region
    $region14: #{tpu_custom_call.1} parent=1 // pred_check
      _
    $region15: #{tpu_custom_call.1} parent=1 // pred_check_branch
      %54 = sbr.rel (0) target = $region17
    $region16: #{tpu_custom_call.1} parent=1 // pred_region
      %s56 = ssub.s32 1792, 1792
      %57 = vsyncadd [#allocation13], %s56
      %s58 = sshll.u32 [#allocation12], 4
      %s59 = int_to_ptr.vmem [resolvable:$true] %s58
      %64 = dma.hbm_to_vmem [thread:$0]  %s3, 1792, %s59, [#allocation13], 64, 64, 4
    $region17: #{tpu_custom_call.1} parent=1 // pred_fallthru
      _
    // Predicated region
    $region18: #{tpu_custom_call.1} parent=1 // pred_check
      _
    $region19: #{tpu_custom_call.1} parent=1 // pred_check_branch
      %66 = sbr.rel (0) target = $region21
    $region20: #{tpu_custom_call.1} parent=1 // pred_region
      %s68 = ssub.s32 16, 16
      %69 = vsyncadd [#allocation8], %s68
      %72 = dma.hbm_to_smem %s4, 16, [#allocation14], [#allocation8]
    $region21: #{tpu_custom_call.1} parent=1 // pred_fallthru
      _
    // Predicated region
    $region22: #{tpu_custom_call.1} parent=1 // pred_check
      _
    $region23: #{tpu_custom_call.1} parent=1 // pred_check_branch
      %74 = sbr.rel (0) target = $region25
    $region24: #{tpu_custom_call.1} parent=1 // pred_region
      %s76 = ssub.s32 16, 16
      %77 = vsyncadd [#allocation16], %s76
      %80 = dma.hbm_to_smem %s5, 16, [#allocation15], [#allocation16]
    $region25: #{tpu_custom_call.1} parent=1 // pred_fallthru
      _
    // Predicated region
    $region26: #{tpu_custom_call.1} parent=1 // pred_check
      _
    $region27: #{tpu_custom_call.1} parent=1 // pred_check_branch
      %82 = sbr.rel (0) target = $region29
    $region28: #{tpu_custom_call.1} parent=1 // pred_region
      %83 = dma.done [#allocation6], 2048
    $region29: #{tpu_custom_call.1} parent=1 // pred_fallthru
      _
    // Predicated region
    $region30: #{tpu_custom_call.1} parent=1 // pred_check
      _
    $region31: #{tpu_custom_call.1} parent=1 // pred_check_branch
      %85 = sbr.rel (0) target = $region33
    $region32: #{tpu_custom_call.1} parent=1 // pred_region
      %86 = dma.done [#allocation10], 1792
    $region33: #{tpu_custom_call.1} parent=1 // pred_fallthru
      _
    // Predicated region
    $region34: #{tpu_custom_call.1} parent=1 // pred_check
      _
    $region35: #{tpu_custom_call.1} parent=1 // pred_check_branch
      %88 = sbr.rel (0) target = $region37
    $region36: #{tpu_custom_call.1} parent=1 // pred_region
      %89 = dma.done [#allocation10], 1792
    $region37: #{tpu_custom_call.1} parent=1 // pred_fallthru
      _
    // Predicated region
    $region38: #{tpu_custom_call.1} parent=1 // pred_check
      _
    $region39: #{tpu_custom_call.1} parent=1 // pred_check_branch
      %91 = sbr.rel (0) target = $region41
    $region40: #{tpu_custom_call.1} parent=1 // pred_region
      %92 = dma.done [#allocation13], 1792
    $region41: #{tpu_custom_call.1} parent=1 // pred_fallthru
      _
    // Predicated region
    $region42: #{tpu_custom_call.1} parent=1 // pred_check
      _
    $region43: #{tpu_custom_call.1} parent=1 // pred_check_branch
      %94 = sbr.rel (0) target = $region45
    $region44: #{tpu_custom_call.1} parent=1 // pred_region
      %95 = dma.done [#allocation8], 16
    $region45: #{tpu_custom_call.1} parent=1 // pred_fallthru
      _
    // Predicated region
    $region46: #{tpu_custom_call.1} parent=1 // pred_check
      _
    $region47: #{tpu_custom_call.1} parent=1 // pred_check_branch
      %97 = sbr.rel (0) target = $region49
    $region48: #{tpu_custom_call.1} parent=1 // pred_region
      %98 = dma.done [#allocation16], 16
    $region49: #{tpu_custom_call.1} parent=1 // pred_fallthru
      _
    %99 = sfence
    %vm101 = vcmask 124928
    %102 = vst.msk [vmem:[#allocation2] sm:$0x7] %vm101, 0.0
    %103 = vst.msk [vmem:[#allocation2 + $0x7] sm:$0x7] %vm101, 0.0
    %s104 = scalar_lea.vmem [#allocation2], 16
    %105 = vst.msk [vmem:[%s104] sm:$0x7] %vm101, 0.0
    %106 = vst.msk [vmem:[%s104 + $0x7] sm:$0x7] %vm101, 0.0
    %107 = vst.msk [vmem:[#allocation3] sm:$0x7] %vm101, 0.0
    %108 = vst.msk [vmem:[#allocation3 + $0x7] sm:$0x7] %vm101, 0.0
    %s109 = scalar_lea.vmem [#allocation3], 16
    %110 = vst.msk [vmem:[%s109] sm:$0x7] %vm101, 0.0
    %111 = vst.msk [vmem:[%s109 + $0x7] sm:$0x7] %vm101, 0.0
    %112 = vst.msk [vmem:[#allocation4] sm:$0x7] %vm101, 0.0
    %113 = vst.msk [vmem:[#allocation4 + $0x13] sm:$0x7] %vm101, 0.0
    %s114 = scalar_lea.vmem [#allocation4], 24
    %115 = vst.msk [vmem:[%s114] sm:$0x7] %vm101, 0.0
    %116 = vst.msk [vmem:[%s114 + $0x13] sm:$0x7] %vm101, 0.0
    %s117 = sld [smem:[#allocation15]]
    %s118 = sld [smem:[#allocation15 + $0x1]]
    loop: start=0, step=1, limit=2
    $region50: #{tpu_custom_call.1} parent=1 // loop_pre_header
      _
    $region51: #{tpu_custom_call.1} parent=1 // loop_header
      %s120 = sphi 0, %s124
      %p121 = scmp.ge.s32.totalorder %s120, 2
    $region52: #{tpu_custom_call.1} parent=1 // loop_header_branch
      %123 = sbr.rel (%p121) target = $region56
    $region53: #{tpu_custom_call.1} parent=1 // loop_body
      %s125 = smul.u32 %s120, 64
      %s126 = scalar_lea.vmem [#allocation5], %s125
      %v127 = vld [vmem:[%s126] sm:$0xff]
      %v128 = vld [vmem:[%s126 + $0x8] sm:$0xff]
      %v129 = vld [vmem:[%s126 + $0x10] sm:$0xff]
      %v130 = vld [vmem:[%s126 + $0x18] sm:$0xff]
      %v131 = vld [vmem:[%s126 + $0x20] sm:$0xff]
      %v132 = vld [vmem:[%s126 + $0x28] sm:$0xff]
      %v133 = vld [vmem:[%s126 + $0x30] sm:$0xff]
      %v134 = vld [vmem:[%s126 + $0x38] sm:$0xff]
      %vm135 = vcmask 130048
      %v136 = vsel %vm135, %v127, 0.0
      %137 = vadd.xlane.f32.xlu0 %v136
      %v138 = vpop.xlane.xlu0 %137
      %v139 = vsel %vm135, %v128, 0.0
      %140 = vadd.xlane.f32.xlu0 %v139
      %v141 = vpop.xlane.xlu0 %140
      %v142 = vsel %vm135, %v129, 0.0
      %143 = vadd.xlane.f32.xlu0 %v142
      %v144 = vpop.xlane.xlu0 %143
      %v145 = vsel %vm135, %v130, 0.0
      %146 = vadd.xlane.f32.xlu0 %v145
      %v147 = vpop.xlane.xlu0 %146
      %v148 = vsel %vm135, %v131, 0.0
      %149 = vadd.xlane.f32.xlu0 %v148
      %v150 = vpop.xlane.xlu0 %149
      %v151 = vsel %vm135, %v132, 0.0
      %152 = vadd.xlane.f32.xlu0 %v151
      %v153 = vpop.xlane.xlu0 %152
      %v154 = vsel %vm135, %v133, 0.0
      %155 = vadd.xlane.f32.xlu0 %v154
      %v156 = vpop.xlane.xlu0 %155
      %v157 = vsel %vm135, %v134, 0.0
      %158 = vadd.xlane.f32.xlu0 %v157
      %v159 = vpop.xlane.xlu0 %158
      %v160 = vrcp.pop 16.0
      %v161 = vmul.f32 %v138, %v160
      %v162 = vmul.f32 %v141, %v160
      %v163 = vmul.f32 %v144, %v160
      %v164 = vmul.f32 %v147, %v160
      %v165 = vmul.f32 %v150, %v160
      %v166 = vmul.f32 %v153, %v160
      %v167 = vmul.f32 %v156, %v160
      %v168 = vmul.f32 %v159, %v160
      %v169 = vsel %vm135, %v127, -inf
      %170 = vmax.xlane.f32.xlu0 %v169
      %v171 = vpop.xlane.xlu0 %170
      %v172 = vsel %vm135, %v128, -inf
      %173 = vmax.xlane.f32.xlu0 %v172
      %v174 = vpop.xlane.xlu0 %173
      %v175 = vsel %vm135, %v129, -inf
      %176 = vmax.xlane.f32.xlu0 %v175
      %v177 = vpop.xlane.xlu0 %176
      %v178 = vsel %vm135, %v130, -inf
      %179 = vmax.xlane.f32.xlu0 %v178
      %v180 = vpop.xlane.xlu0 %179
      %v181 = vsel %vm135, %v131, -inf
      %182 = vmax.xlane.f32.xlu0 %v181
      %v183 = vpop.xlane.xlu0 %182
      %v184 = vsel %vm135, %v132, -inf
      %185 = vmax.xlane.f32.xlu0 %v184
      %v186 = vpop.xlane.xlu0 %185
      %v187 = vsel %vm135, %v133, -inf
      %188 = vmax.xlane.f32.xlu0 %v187
      %v189 = vpop.xlane.xlu0 %188
      %v190 = vsel %vm135, %v134, -inf
      %191 = vmax.xlane.f32.xlu0 %v190
      %v192 = vpop.xlane.xlu0 %191
      %s193 = sld [smem:[#allocation14]]
      %v202 = vlaneseq
      %v203 = vand.u32 %v202, 127
      %v204 = vlaneseq
      %v205 = vshrl.u32 %v204, 7
      %v206 = vsub.s32 %v203, %v205
      %v207 = vrot.slane %v161, %v206
      %v208 = vadd.s32 %v203, 4294967288
      %v209 = vlaneseq
      %v210 = vshrl.u32 %v209, 7
      %v211 = vsub.s32 %v208, %v210
      %v212 = vrot.slane %v162, %v211
      %vm213 = vcmask 130112
      %v214 = vsel %vm213, %v212, %v207
      %v215 = vlaneseq
      %v216 = vshrl.u32 %v215, 7
      %v217 = vsub.s32 %v203, %v216
      %v218 = vrot.slane %v163, %v217
      %v219 = vlaneseq
      %v220 = vshrl.u32 %v219, 7
      %v221 = vsub.s32 %v208, %v220
      %v222 = vrot.slane %v164, %v221
      %v223 = vsel %vm213, %v222, %v218
      %v224 = vlaneseq
      %v225 = vshrl.u32 %v224, 7
      %v226 = vsub.s32 %v203, %v225
      %v227 = vrot.slane %v165, %v226
      %v228 = vlaneseq
      %v229 = vshrl.u32 %v228, 7
      %v230 = vsub.s32 %v208, %v229
      %v231 = vrot.slane %v166, %v230
      %v232 = vsel %vm213, %v231, %v227
      %v233 = vlaneseq
      %v234 = vshrl.u32 %v233, 7
      %v235 = vsub.s32 %v203, %v234
      %v236 = vrot.slane %v167, %v235
      %v237 = vlaneseq
      %v238 = vshrl.u32 %v237, 7
      %v239 = vsub.s32 %v208, %v238
      %v240 = vrot.slane %v168, %v239
      %v241 = vsel %vm213, %v240, %v236
      %vm242 = vcmask 1041409
      %v243 = vsel %vm242, %v223, %v214
      %vm244 = vcmask 1042434
      %v245 = vsel %vm244, %v232, %v243
      %vm246 = vcmask 1043459
      %v247 = vsel %vm246, %v241, %v245
      %vm249 = vcmask 125952
      %250 = vst.msk [vmem:[#allocation2 + $0x3] sm:$0xf] %vm249, %v247
      %v259 = vlaneseq
      %v260 = vshrl.u32 %v259, 7
      %v261 = vsub.s32 %v203, %v260
      %v262 = vrot.slane %v171, %v261
      %v263 = vlaneseq
      %v264 = vshrl.u32 %v263, 7
      %v265 = vsub.s32 %v208, %v264
      %v266 = vrot.slane %v174, %v265
      %v267 = vsel %vm213, %v266, %v262
      %v268 = vlaneseq
      %v269 = vshrl.u32 %v268, 7
      %v270 = vsub.s32 %v203, %v269
      %v271 = vrot.slane %v177, %v270
      %v272 = vlaneseq
      %v273 = vshrl.u32 %v272, 7
      %v274 = vsub.s32 %v208, %v273
      %v275 = vrot.slane %v180, %v274
      %v276 = vsel %vm213, %v275, %v271
      %v277 = vlaneseq
      %v278 = vshrl.u32 %v277, 7
      %v279 = vsub.s32 %v203, %v278
      %v280 = vrot.slane %v183, %v279
      %v281 = vlaneseq
      %v282 = vshrl.u32 %v281, 7
      %v283 = vsub.s32 %v208, %v282
      %v284 = vrot.slane %v186, %v283
      %v285 = vsel %vm213, %v284, %v280
      %v286 = vlaneseq
      %v287 = vshrl.u32 %v286, 7
      %v288 = vsub.s32 %v203, %v287
      %v289 = vrot.slane %v189, %v288
      %v290 = vlaneseq
      %v291 = vshrl.u32 %v290, 7
      %v292 = vsub.s32 %v208, %v291
      %v293 = vrot.slane %v192, %v292
      %v294 = vsel %vm213, %v293, %v289
      %v295 = vsel %vm242, %v276, %v267
      %v296 = vsel %vm244, %v285, %v295
      %v297 = vsel %vm246, %v294, %v296
      %299 = vst.msk [vmem:[%s104 + $0x3] sm:$0xf] %vm249, %v297
      %v300 = vld [vmem:[#allocation2] sm:$0xf]
      %v301 = vpack.c.bf16 %v300, %v300
      %v302 = vld [vmem:[#allocation9] sm:$0xf]
      %v303 = vld [vmem:[#allocation9 + $0x4] sm:$0xf]
      %v304 = vld [vmem:[#allocation2 + $0x1] sm:$0xf]
      %v305 = vpack.c.bf16 %v304, %v304
      %s306 = scalar_lea.vmem [#allocation9], 8
      %v307 = vld [vmem:[%s306] sm:$0xf]
      %v308 = vld [vmem:[%s306 + $0x4] sm:$0xf]
      %v311 = vunpack.c.l.b16 %v307
      %v312 = vunpack.c.l.b16 %v308
      %v313 = vpack.c.b16 %v312, %v311
      %v316 = vsel %vm135, %v305, 0
      %318 = vmatprep.subr.bf16.mxu0 0
      %319 = vmatpush1.bf16.msra.mxu0 %v313
      %320 = vmatprep.subr.bf16.mxu0 0
      %321 = vmatpush1.bf16.msra.mxu0 0
      %322 = vmatprep.subr.bf16.mxu0 0
      %323 = vmatpush1.bf16.msra.mxu0 0
      %324 = vmatprep.subr.bf16.mxu0 0
      %325 = vmatpush1.bf16.msra.mxu0 0
      %326 = vmatprep.subr.bf16.mxu0 0
      %327 = vmatpush1.bf16.msra.mxu0 0
      %328 = vmatprep.subr.bf16.mxu0 0
      %329 = vmatpush1.bf16.msra.mxu0 0
      %330 = vmatprep.subr.bf16.mxu0 0
      %331 = vmatpush1.bf16.msra.mxu0 0
      %332 = vmatprep.subr.bf16.mxu0 0
      %333 = vmatpush1.bf16.msra.mxu0 0
      %334 = vmatprep.subr.bf16.mxu0 0
      %335 = vmatpush1.bf16.msra.mxu0 0
      %336 = vmatprep.subr.bf16.mxu0 0
      %337 = vmatpush1.bf16.msra.mxu0 0
      %338 = vmatprep.subr.bf16.mxu0 0
      %339 = vmatpush1.bf16.msra.mxu0 0
      %340 = vmatprep.subr.bf16.mxu0 0
      %341 = vmatpush1.bf16.msra.mxu0 0
      %342 = vmatprep.subr.bf16.mxu0 0
      %343 = vmatpush1.bf16.msra.mxu0 0
      %344 = vmatprep.subr.bf16.mxu0 0
      %345 = vmatpush1.bf16.msra.mxu0 0
      %346 = vmatprep.subr.bf16.mxu0 0
      %347 = vmatpush1.bf16.msra.mxu0 0
      %348 = vmatprep.subr.bf16.mxu0 0
      %349 = vmatpush1.bf16.msra.mxu0 0
      %350 = vmatprep.mubr.bf16.mxu0 0
      %351 = vmatmul.mubr.bf16.gmra.mrb[0].mxu0 %v316
      %v352 = vpop.f32.mrb[0].mxu0
      %v353 = vadd.f32 0.0, %v352
      %v354 = vpop.f32.mrb[0].mxu0
      %v355 = vpop.f32.mrb[0].mxu0
      %v356 = vpop.f32.mrb[0].mxu0
      %357 = vdwg.mxu0
      %v360 = vunpack.c.l.b16 %v302
      %v361 = vunpack.c.l.b16 %v303
      %v362 = vpack.c.b16 %v361, %v360
      %v365 = vsel %vm135, %v301, 0
      %367 = vmatprep.subr.bf16.mxu0 0
      %368 = vmatpush1.bf16.msra.mxu0 %v362
      %369 = vmatprep.subr.bf16.mxu0 0
      %370 = vmatpush1.bf16.msra.mxu0 0
      %371 = vmatprep.subr.bf16.mxu0 0
      %372 = vmatpush1.bf16.msra.mxu0 0
      %373 = vmatprep.subr.bf16.mxu0 0
      %374 = vmatpush1.bf16.msra.mxu0 0
      %375 = vmatprep.subr.bf16.mxu0 0
      %376 = vmatpush1.bf16.msra.mxu0 0
      %377 = vmatprep.subr.bf16.mxu0 0
      %378 = vmatpush1.bf16.msra.mxu0 0
      %379 = vmatprep.subr.bf16.mxu0 0
      %380 = vmatpush1.bf16.msra.mxu0 0
      %381 = vmatprep.subr.bf16.mxu0 0
      %382 = vmatpush1.bf16.msra.mxu0 0
      %383 = vmatprep.subr.bf16.mxu0 0
      %384 = vmatpush1.bf16.msra.mxu0 0
      %385 = vmatprep.subr.bf16.mxu0 0
      %386 = vmatpush1.bf16.msra.mxu0 0
      %387 = vmatprep.subr.bf16.mxu0 0
      %388 = vmatpush1.bf16.msra.mxu0 0
      %389 = vmatprep.subr.bf16.mxu0 0
      %390 = vmatpush1.bf16.msra.mxu0 0
      %391 = vmatprep.subr.bf16.mxu0 0
      %392 = vmatpush1.bf16.msra.mxu0 0
      %393 = vmatprep.subr.bf16.mxu0 0
      %394 = vmatpush1.bf16.msra.mxu0 0
      %395 = vmatprep.subr.bf16.mxu0 0
      %396 = vmatpush1.bf16.msra.mxu0 0
      %397 = vmatprep.subr.bf16.mxu0 0
      %398 = vmatpush1.bf16.msra.mxu0 0
      %399 = vmatprep.mubr.bf16.mxu0 0
      %400 = vmatmul.mubr.bf16.gmra.mrb[0].mxu0 %v365
      %v401 = vpop.f32.mrb[0].mxu0
      %v402 = vadd.f32 %v353, %v401
      %v403 = vpop.f32.mrb[0].mxu0
      %v404 = vpop.f32.mrb[0].mxu0
      %v405 = vpop.f32.mrb[0].mxu0
      %406 = vdwg.mxu0
      %v407 = vld [vmem:[#allocation2 + $0x2] sm:$0xf]
      %v408 = vpack.c.bf16 %v407, %v407
      %s409 = scalar_lea.vmem [#allocation9], 16
      %v410 = vld [vmem:[%s409] sm:$0xf]
      %v411 = vld [vmem:[%s409 + $0x4] sm:$0xf]
      %v414 = vunpack.c.l.b16 %v410
      %v415 = vunpack.c.l.b16 %v411
      %v416 = vpack.c.b16 %v415, %v414
      %v419 = vsel %vm135, %v408, 0
      %421 = vmatprep.subr.bf16.mxu0 0
      %422 = vmatpush1.bf16.msra.mxu0 %v416
      %423 = vmatprep.subr.bf16.mxu0 0
      %424 = vmatpush1.bf16.msra.mxu0 0
      %425 = vmatprep.subr.bf16.mxu0 0
      %426 = vmatpush1.bf16.msra.mxu0 0
      %427 = vmatprep.subr.bf16.mxu0 0
      %428 = vmatpush1.bf16.msra.mxu0 0
      %429 = vmatprep.subr.bf16.mxu0 0
      %430 = vmatpush1.bf16.msra.mxu0 0
      %431 = vmatprep.subr.bf16.mxu0 0
      %432 = vmatpush1.bf16.msra.mxu0 0
      %433 = vmatprep.subr.bf16.mxu0 0
      %434 = vmatpush1.bf16.msra.mxu0 0
      %435 = vmatprep.subr.bf16.mxu0 0
      %436 = vmatpush1.bf16.msra.mxu0 0
      %437 = vmatprep.subr.bf16.mxu0 0
      %438 = vmatpush1.bf16.msra.mxu0 0
      %439 = vmatprep.subr.bf16.mxu0 0
      %440 = vmatpush1.bf16.msra.mxu0 0
      %441 = vmatprep.subr.bf16.mxu0 0
      %442 = vmatpush1.bf16.msra.mxu0 0
      %443 = vmatprep.subr.bf16.mxu0 0
      %444 = vmatpush1.bf16.msra.mxu0 0
      %445 = vmatprep.subr.bf16.mxu0 0
      %446 = vmatpush1.bf16.msra.mxu0 0
      %447 = vmatprep.subr.bf16.mxu0 0
      %448 = vmatpush1.bf16.msra.mxu0 0
      %449 = vmatprep.subr.bf16.mxu0 0
      %450 = vmatpush1.bf16.msra.mxu0 0
      %451 = vmatprep.subr.bf16.mxu0 0
      %452 = vmatpush1.bf16.msra.mxu0 0
      %453 = vmatprep.mubr.bf16.mxu0 0
      %454 = vmatmul.mubr.bf16.gmra.mrb[0].mxu0 %v419
      %v455 = vpop.f32.mrb[0].mxu0
      %v456 = vadd.f32 0.0, %v455
      %v457 = vpop.f32.mrb[0].mxu0
      %v458 = vpop.f32.mrb[0].mxu0
      %v459 = vpop.f32.mrb[0].mxu0
      %460 = vdwg.mxu0
      %v461 = vadd.f32 %v402, %v456
      %v462 = vld [vmem:[#allocation2 + $0x3] sm:$0xf]
      %v463 = vpack.c.bf16 %v462, %v462
      %s464 = scalar_lea.vmem [#allocation9], 24
      %v465 = vld [vmem:[%s464] sm:$0xf]
      %v466 = vld [vmem:[%s464 + $0x4] sm:$0xf]
      %v469 = vunpack.c.l.b16 %v465
      %v470 = vunpack.c.l.b16 %v466
      %v471 = vpack.c.b16 %v470, %v469
      %v474 = vsel %vm135, %v463, 0
      %476 = vmatprep.subr.bf16.mxu0 0
      %477 = vmatpush1.bf16.msra.mxu0 %v471
      %478 = vmatprep.subr.bf16.mxu0 0
      %479 = vmatpush1.bf16.msra.mxu0 0
      %480 = vmatprep.subr.bf16.mxu0 0
      %481 = vmatpush1.bf16.msra.mxu0 0
      %482 = vmatprep.subr.bf16.mxu0 0
      %483 = vmatpush1.bf16.msra.mxu0 0
      %484 = vmatprep.subr.bf16.mxu0 0
      %485 = vmatpush1.bf16.msra.mxu0 0
      %486 = vmatprep.subr.bf16.mxu0 0
      %487 = vmatpush1.bf16.msra.mxu0 0
      %488 = vmatprep.subr.bf16.mxu0 0
      %489 = vmatpush1.bf16.msra.mxu0 0
      %490 = vmatprep.subr.bf16.mxu0 0
      %491 = vmatpush1.bf16.msra.mxu0 0
      %492 = vmatprep.subr.bf16.mxu0 0
      %493 = vmatpush1.bf16.msra.mxu0 0
      %494 = vmatprep.subr.bf16.mxu0 0
      %495 = vmatpush1.bf16.msra.mxu0 0
      %496 = vmatprep.subr.bf16.mxu0 0
      %497 = vmatpush1.bf16.msra.mxu0 0
      %498 = vmatprep.subr.bf16.mxu0 0
      %499 = vmatpush1.bf16.msra.mxu0 0
      %500 = vmatprep.subr.bf16.mxu0 0
      %501 = vmatpush1.bf16.msra.mxu0 0
      %502 = vmatprep.subr.bf16.mxu0 0
      %503 = vmatpush1.bf16.msra.mxu0 0
      %504 = vmatprep.subr.bf16.mxu0 0
      %505 = vmatpush1.bf16.msra.mxu0 0
      %506 = vmatprep.subr.bf16.mxu0 0
      %507 = vmatpush1.bf16.msra.mxu0 0
      %508 = vmatprep.mubr.bf16.mxu0 0
      %509 = vmatmul.mubr.bf16.gmra.mrb[0].mxu0 %v474
      %v510 = vpop.f32.mrb[0].mxu0
      %v511 = vadd.f32 0.0, %v510
      %v512 = vpop.f32.mrb[0].mxu0
      %v513 = vpop.f32.mrb[0].mxu0
      %v514 = vpop.f32.mrb[0].mxu0
      %515 = vdwg.mxu0
      %v516 = vadd.f32 %v461, %v511
      %v517 = vld [vmem:[#allocation2 + $0x4] sm:$0xf]
      %v518 = vpack.c.bf16 %v517, %v517
      %s519 = scalar_lea.vmem [#allocation9], 32
      %v520 = vld [vmem:[%s519] sm:$0xf]
      %v521 = vld [vmem:[%s519 + $0x4] sm:$0xf]
      %v524 = vunpack.c.l.b16 %v520
      %v525 = vunpack.c.l.b16 %v521
      %v526 = vpack.c.b16 %v525, %v524
      %v529 = vsel %vm135, %v518, 0
      %531 = vmatprep.subr.bf16.mxu0 0
      %532 = vmatpush1.bf16.msra.mxu0 %v526
      %533 = vmatprep.subr.bf16.mxu0 0
      %534 = vmatpush1.bf16.msra.mxu0 0
      %535 = vmatprep.subr.bf16.mxu0 0
      %536 = vmatpush1.bf16.msra.mxu0 0
      %537 = vmatprep.subr.bf16.mxu0 0
      %538 = vmatpush1.bf16.msra.mxu0 0
      %539 = vmatprep.subr.bf16.mxu0 0
      %540 = vmatpush1.bf16.msra.mxu0 0
      %541 = vmatprep.subr.bf16.mxu0 0
      %542 = vmatpush1.bf16.msra.mxu0 0
      %543 = vmatprep.subr.bf16.mxu0 0
      %544 = vmatpush1.bf16.msra.mxu0 0
      %545 = vmatprep.subr.bf16.mxu0 0
      %546 = vmatpush1.bf16.msra.mxu0 0
      %547 = vmatprep.subr.bf16.mxu0 0
      %548 = vmatpush1.bf16.msra.mxu0 0
      %549 = vmatprep.subr.bf16.mxu0 0
      %550 = vmatpush1.bf16.msra.mxu0 0
      %551 = vmatprep.subr.bf16.mxu0 0
      %552 = vmatpush1.bf16.msra.mxu0 0
      %553 = vmatprep.subr.bf16.mxu0 0
      %554 = vmatpush1.bf16.msra.mxu0 0
      %555 = vmatprep.subr.bf16.mxu0 0
      %556 = vmatpush1.bf16.msra.mxu0 0
      %557 = vmatprep.subr.bf16.mxu0 0
      %558 = vmatpush1.bf16.msra.mxu0 0
      %559 = vmatprep.subr.bf16.mxu0 0
      %560 = vmatpush1.bf16.msra.mxu0 0
      %561 = vmatprep.subr.bf16.mxu0 0
      %562 = vmatpush1.bf16.msra.mxu0 0
      %563 = vmatprep.mubr.bf16.mxu0 0
      %564 = vmatmul.mubr.bf16.gmra.mrb[0].mxu0 %v529
      %v565 = vpop.f32.mrb[0].mxu0
      %v566 = vadd.f32 0.0, %v565
      %v567 = vpop.f32.mrb[0].mxu0
      %v568 = vpop.f32.mrb[0].mxu0
      %v569 = vpop.f32.mrb[0].mxu0
      %570 = vdwg.mxu0
      %v571 = vadd.f32 %v516, %v566
      %v572 = vld [vmem:[#allocation2 + $0x5] sm:$0xf]
      %v573 = vpack.c.bf16 %v572, %v572
      %s574 = scalar_lea.vmem [#allocation9], 40
      %v575 = vld [vmem:[%s574] sm:$0xf]
      %v576 = vld [vmem:[%s574 + $0x4] sm:$0xf]
      %v579 = vunpack.c.l.b16 %v575
      %v580 = vunpack.c.l.b16 %v576
      %v581 = vpack.c.b16 %v580, %v579
      %v584 = vsel %vm135, %v573, 0
      %586 = vmatprep.subr.bf16.mxu0 0
      %587 = vmatpush1.bf16.msra.mxu0 %v581
      %588 = vmatprep.subr.bf16.mxu0 0
      %589 = vmatpush1.bf16.msra.mxu0 0
      %590 = vmatprep.subr.bf16.mxu0 0
      %591 = vmatpush1.bf16.msra.mxu0 0
      %592 = vmatprep.subr.bf16.mxu0 0
      %593 = vmatpush1.bf16.msra.mxu0 0
      %594 = vmatprep.subr.bf16.mxu0 0
      %595 = vmatpush1.bf16.msra.mxu0 0
      %596 = vmatprep.subr.bf16.mxu0 0
      %597 = vmatpush1.bf16.msra.mxu0 0
      %598 = vmatprep.subr.bf16.mxu0 0
      %599 = vmatpush1.bf16.msra.mxu0 0
      %600 = vmatprep.subr.bf16.mxu0 0
      %601 = vmatpush1.bf16.msra.mxu0 0
      %602 = vmatprep.subr.bf16.mxu0 0
      %603 = vmatpush1.bf16.msra.mxu0 0
      %604 = vmatprep.subr.bf16.mxu0 0
      %605 = vmatpush1.bf16.msra.mxu0 0
      %606 = vmatprep.subr.bf16.mxu0 0
      %607 = vmatpush1.bf16.msra.mxu0 0
      %608 = vmatprep.subr.bf16.mxu0 0
      %609 = vmatpush1.bf16.msra.mxu0 0
      %610 = vmatprep.subr.bf16.mxu0 0
      %611 = vmatpush1.bf16.msra.mxu0 0
      %612 = vmatprep.subr.bf16.mxu0 0
      %613 = vmatpush1.bf16.msra.mxu0 0
      %614 = vmatprep.subr.bf16.mxu0 0
      %615 = vmatpush1.bf16.msra.mxu0 0
      %616 = vmatprep.subr.bf16.mxu0 0
      %617 = vmatpush1.bf16.msra.mxu0 0
      %618 = vmatprep.mubr.bf16.mxu0 0
      %619 = vmatmul.mubr.bf16.gmra.mrb[0].mxu0 %v584
      %v620 = vpop.f32.mrb[0].mxu0
      %v621 = vadd.f32 0.0, %v620
      %v622 = vpop.f32.mrb[0].mxu0
      %v623 = vpop.f32.mrb[0].mxu0
      %v624 = vpop.f32.mrb[0].mxu0
      %625 = vdwg.mxu0
      %v626 = vadd.f32 %v571, %v621
      %v627 = vld [vmem:[#allocation2 + $0x6] sm:$0xf]
      %v628 = vpack.c.bf16 %v627, %v627
      %s629 = scalar_lea.vmem [#allocation9], 48
      %v630 = vld [vmem:[%s629] sm:$0xf]
      %v631 = vld [vmem:[%s629 + $0x4] sm:$0xf]
      %v634 = vunpack.c.l.b16 %v630
      %v635 = vunpack.c.l.b16 %v631
      %v636 = vpack.c.b16 %v635, %v634
      %v639 = vsel %vm135, %v628, 0
      %641 = vmatprep.subr.bf16.mxu0 0
      %642 = vmatpush1.bf16.msra.mxu0 %v636
      %643 = vmatprep.subr.bf16.mxu0 0
      %644 = vmatpush1.bf16.msra.mxu0 0
      %645 = vmatprep.subr.bf16.mxu0 0
      %646 = vmatpush1.bf16.msra.mxu0 0
      %647 = vmatprep.subr.bf16.mxu0 0
      %648 = vmatpush1.bf16.msra.mxu0 0
      %649 = vmatprep.subr.bf16.mxu0 0
      %650 = vmatpush1.bf16.msra.mxu0 0
      %651 = vmatprep.subr.bf16.mxu0 0
      %652 = vmatpush1.bf16.msra.mxu0 0
      %653 = vmatprep.subr.bf16.mxu0 0
      %654 = vmatpush1.bf16.msra.mxu0 0
      %655 = vmatprep.subr.bf16.mxu0 0
      %656 = vmatpush1.bf16.msra.mxu0 0
      %657 = vmatprep.subr.bf16.mxu0 0
      %658 = vmatpush1.bf16.msra.mxu0 0
      %659 = vmatprep.subr.bf16.mxu0 0
      %660 = vmatpush1.bf16.msra.mxu0 0
      %661 = vmatprep.subr.bf16.mxu0 0
      %662 = vmatpush1.bf16.msra.mxu0 0
      %663 = vmatprep.subr.bf16.mxu0 0
      %664 = vmatpush1.bf16.msra.mxu0 0
      %665 = vmatprep.subr.bf16.mxu0 0
      %666 = vmatpush1.bf16.msra.mxu0 0
      %667 = vmatprep.subr.bf16.mxu0 0
      %668 = vmatpush1.bf16.msra.mxu0 0
      %669 = vmatprep.subr.bf16.mxu0 0
      %670 = vmatpush1.bf16.msra.mxu0 0
      %671 = vmatprep.subr.bf16.mxu0 0
      %672 = vmatpush1.bf16.msra.mxu0 0
      %673 = vmatprep.mubr.bf16.mxu0 0
      %674 = vmatmul.mubr.bf16.gmra.mrb[0].mxu0 %v639
      %v675 = vpop.f32.mrb[0].mxu0
      %v676 = vadd.f32 0.0, %v675
      %v677 = vpop.f32.mrb[0].mxu0
      %v678 = vpop.f32.mrb[0].mxu0
      %v679 = vpop.f32.mrb[0].mxu0
      %680 = vdwg.mxu0
      %v681 = vadd.f32 %v626, %v676
      %v682 = vld [vmem:[%s104] sm:$0xf]
      %v683 = vpack.c.bf16 %v682, %v682
      %s684 = scalar_lea.vmem [#allocation9], 56
      %v685 = vld [vmem:[%s684] sm:$0xf]
      %v686 = vld [vmem:[%s684 + $0x4] sm:$0xf]
      %v689 = vunpack.c.l.b16 %v685
      %v690 = vunpack.c.l.b16 %v686
      %v691 = vpack.c.b16 %v690, %v689
      %v694 = vsel %vm135, %v683, 0
      %696 = vmatprep.subr.bf16.mxu0 0
      %697 = vmatpush1.bf16.msra.mxu0 %v691
      %698 = vmatprep.subr.bf16.mxu0 0
      %699 = vmatpush1.bf16.msra.mxu0 0
      %700 = vmatprep.subr.bf16.mxu0 0
      %701 = vmatpush1.bf16.msra.mxu0 0
      %702 = vmatprep.subr.bf16.mxu0 0
      %703 = vmatpush1.bf16.msra.mxu0 0
      %704 = vmatprep.subr.bf16.mxu0 0
      %705 = vmatpush1.bf16.msra.mxu0 0
      %706 = vmatprep.subr.bf16.mxu0 0
      %707 = vmatpush1.bf16.msra.mxu0 0
      %708 = vmatprep.subr.bf16.mxu0 0
      %709 = vmatpush1.bf16.msra.mxu0 0
      %710 = vmatprep.subr.bf16.mxu0 0
      %711 = vmatpush1.bf16.msra.mxu0 0
      %712 = vmatprep.subr.bf16.mxu0 0
      %713 = vmatpush1.bf16.msra.mxu0 0
      %714 = vmatprep.subr.bf16.mxu0 0
      %715 = vmatpush1.bf16.msra.mxu0 0
      %716 = vmatprep.subr.bf16.mxu0 0
      %717 = vmatpush1.bf16.msra.mxu0 0
      %718 = vmatprep.subr.bf16.mxu0 0
      %719 = vmatpush1.bf16.msra.mxu0 0
      %720 = vmatprep.subr.bf16.mxu0 0
      %721 = vmatpush1.bf16.msra.mxu0 0
      %722 = vmatprep.subr.bf16.mxu0 0
      %723 = vmatpush1.bf16.msra.mxu0 0
      %724 = vmatprep.subr.bf16.mxu0 0
      %725 = vmatpush1.bf16.msra.mxu0 0
      %726 = vmatprep.subr.bf16.mxu0 0
      %727 = vmatpush1.bf16.msra.mxu0 0
      %728 = vmatprep.mubr.bf16.mxu0 0
      %729 = vmatmul.mubr.bf16.gmra.mrb[0].mxu0 %v694
      %v730 = vpop.f32.mrb[0].mxu0
      %v731 = vadd.f32 0.0, %v730
      %v732 = vpop.f32.mrb[0].mxu0
      %v733 = vpop.f32.mrb[0].mxu0
      %v734 = vpop.f32.mrb[0].mxu0
      %735 = vdwg.mxu0
      %v736 = vadd.f32 %v681, %v731
      %v737 = vld [vmem:[%s104 + $0x1] sm:$0xf]
      %v738 = vpack.c.bf16 %v737, %v737
      %s739 = scalar_lea.vmem [#allocation9], 64
      %v740 = vld [vmem:[%s739] sm:$0xf]
      %v741 = vld [vmem:[%s739 + $0x4] sm:$0xf]
      %v744 = vunpack.c.l.b16 %v740
      %v745 = vunpack.c.l.b16 %v741
      %v746 = vpack.c.b16 %v745, %v744
      %v749 = vsel %vm135, %v738, 0
      %751 = vmatprep.subr.bf16.mxu0 0
      %752 = vmatpush1.bf16.msra.mxu0 %v746
      %753 = vmatprep.subr.bf16.mxu0 0
      %754 = vmatpush1.bf16.msra.mxu0 0
      %755 = vmatprep.subr.bf16.mxu0 0
      %756 = vmatpush1.bf16.msra.mxu0 0
      %757 = vmatprep.subr.bf16.mxu0 0
      %758 = vmatpush1.bf16.msra.mxu0 0
      %759 = vmatprep.subr.bf16.mxu0 0
      %760 = vmatpush1.bf16.msra.mxu0 0
      %761 = vmatprep.subr.bf16.mxu0 0
      %762 = vmatpush1.bf16.msra.mxu0 0
      %763 = vmatprep.subr.bf16.mxu0 0
      %764 = vmatpush1.bf16.msra.mxu0 0
      %765 = vmatprep.subr.bf16.mxu0 0
      %766 = vmatpush1.bf16.msra.mxu0 0
      %767 = vmatprep.subr.bf16.mxu0 0
      %768 = vmatpush1.bf16.msra.mxu0 0
      %769 = vmatprep.subr.bf16.mxu0 0
      %770 = vmatpush1.bf16.msra.mxu0 0
      %771 = vmatprep.subr.bf16.mxu0 0
      %772 = vmatpush1.bf16.msra.mxu0 0
      %773 = vmatprep.subr.bf16.mxu0 0
      %774 = vmatpush1.bf16.msra.mxu0 0
      %775 = vmatprep.subr.bf16.mxu0 0
      %776 = vmatpush1.bf16.msra.mxu0 0
      %777 = vmatprep.subr.bf16.mxu0 0
      %778 = vmatpush1.bf16.msra.mxu0 0
      %779 = vmatprep.subr.bf16.mxu0 0
      %780 = vmatpush1.bf16.msra.mxu0 0
      %781 = vmatprep.subr.bf16.mxu0 0
      %782 = vmatpush1.bf16.msra.mxu0 0
      %783 = vmatprep.mubr.bf16.mxu0 0
      %784 = vmatmul.mubr.bf16.gmra.mrb[0].mxu0 %v749
      %v785 = vpop.f32.mrb[0].mxu0
      %v786 = vadd.f32 0.0, %v785
      %v787 = vpop.f32.mrb[0].mxu0
      %v788 = vpop.f32.mrb[0].mxu0
      %v789 = vpop.f32.mrb[0].mxu0
      %790 = vdwg.mxu0
      %v791 = vadd.f32 %v736, %v786
      %v792 = vld [vmem:[%s104 + $0x2] sm:$0xf]
      %v793 = vpack.c.bf16 %v792, %v792
      %s794 = scalar_lea.vmem [#allocation9], 72
      %v795 = vld [vmem:[%s794] sm:$0xf]
      %v796 = vld [vmem:[%s794 + $0x4] sm:$0xf]
      %v799 = vunpack.c.l.b16 %v795
      %v800 = vunpack.c.l.b16 %v796
      %v801 = vpack.c.b16 %v800, %v799
      %v804 = vsel %vm135, %v793, 0
      %806 = vmatprep.subr.bf16.mxu0 0
      %807 = vmatpush1.bf16.msra.mxu0 %v801
      %808 = vmatprep.subr.bf16.mxu0 0
      %809 = vmatpush1.bf16.msra.mxu0 0
      %810 = vmatprep.subr.bf16.mxu0 0
      %811 = vmatpush1.bf16.msra.mxu0 0
      %812 = vmatprep.subr.bf16.mxu0 0
      %813 = vmatpush1.bf16.msra.mxu0 0
      %814 = vmatprep.subr.bf16.mxu0 0
      %815 = vmatpush1.bf16.msra.mxu0 0
      %816 = vmatprep.subr.bf16.mxu0 0
      %817 = vmatpush1.bf16.msra.mxu0 0
      %818 = vmatprep.subr.bf16.mxu0 0
      %819 = vmatpush1.bf16.msra.mxu0 0
      %820 = vmatprep.subr.bf16.mxu0 0
      %821 = vmatpush1.bf16.msra.mxu0 0
      %822 = vmatprep.subr.bf16.mxu0 0
      %823 = vmatpush1.bf16.msra.mxu0 0
      %824 = vmatprep.subr.bf16.mxu0 0
      %825 = vmatpush1.bf16.msra.mxu0 0
      %826 = vmatprep.subr.bf16.mxu0 0
      %827 = vmatpush1.bf16.msra.mxu0 0
      %828 = vmatprep.subr.bf16.mxu0 0
      %829 = vmatpush1.bf16.msra.mxu0 0
      %830 = vmatprep.subr.bf16.mxu0 0
      %831 = vmatpush1.bf16.msra.mxu0 0
      %832 = vmatprep.subr.bf16.mxu0 0
      %833 = vmatpush1.bf16.msra.mxu0 0
      %834 = vmatprep.subr.bf16.mxu0 0
      %835 = vmatpush1.bf16.msra.mxu0 0
      %836 = vmatprep.subr.bf16.mxu0 0
      %837 = vmatpush1.bf16.msra.mxu0 0
      %838 = vmatprep.mubr.bf16.mxu0 0
      %839 = vmatmul.mubr.bf16.gmra.mrb[0].mxu0 %v804
      %v840 = vpop.f32.mrb[0].mxu0
      %v841 = vadd.f32 0.0, %v840
      %v842 = vpop.f32.mrb[0].mxu0
      %v843 = vpop.f32.mrb[0].mxu0
      %v844 = vpop.f32.mrb[0].mxu0
      %845 = vdwg.mxu0
      %v846 = vadd.f32 %v791, %v841
      %v847 = vld [vmem:[%s104 + $0x3] sm:$0xf]
      %v848 = vpack.c.bf16 %v847, %v847
      %s849 = scalar_lea.vmem [#allocation9], 80
      %v850 = vld [vmem:[%s849] sm:$0xf]
      %v851 = vld [vmem:[%s849 + $0x4] sm:$0xf]
      %v854 = vunpack.c.l.b16 %v850
      %v855 = vunpack.c.l.b16 %v851
      %v856 = vpack.c.b16 %v855, %v854
      %v859 = vsel %vm135, %v848, 0
      %861 = vmatprep.subr.bf16.mxu0 0
      %862 = vmatpush1.bf16.msra.mxu0 %v856
      %863 = vmatprep.subr.bf16.mxu0 0
      %864 = vmatpush1.bf16.msra.mxu0 0
      %865 = vmatprep.subr.bf16.mxu0 0
      %866 = vmatpush1.bf16.msra.mxu0 0
      %867 = vmatprep.subr.bf16.mxu0 0
      %868 = vmatpush1.bf16.msra.mxu0 0
      %869 = vmatprep.subr.bf16.mxu0 0
      %870 = vmatpush1.bf16.msra.mxu0 0
      %871 = vmatprep.subr.bf16.mxu0 0
      %872 = vmatpush1.bf16.msra.mxu0 0
      %873 = vmatprep.subr.bf16.mxu0 0
      %874 = vmatpush1.bf16.msra.mxu0 0
      %875 = vmatprep.subr.bf16.mxu0 0
      %876 = vmatpush1.bf16.msra.mxu0 0
      %877 = vmatprep.subr.bf16.mxu0 0
      %878 = vmatpush1.bf16.msra.mxu0 0
      %879 = vmatprep.subr.bf16.mxu0 0
      %880 = vmatpush1.bf16.msra.mxu0 0
      %881 = vmatprep.subr.bf16.mxu0 0
      %882 = vmatpush1.bf16.msra.mxu0 0
      %883 = vmatprep.subr.bf16.mxu0 0
      %884 = vmatpush1.bf16.msra.mxu0 0
      %885 = vmatprep.subr.bf16.mxu0 0
      %886 = vmatpush1.bf16.msra.mxu0 0
      %887 = vmatprep.subr.bf16.mxu0 0
      %888 = vmatpush1.bf16.msra.mxu0 0
      %889 = vmatprep.subr.bf16.mxu0 0
      %890 = vmatpush1.bf16.msra.mxu0 0
      %891 = vmatprep.subr.bf16.mxu0 0
      %892 = vmatpush1.bf16.msra.mxu0 0
      %893 = vmatprep.mubr.bf16.mxu0 0
      %894 = vmatmul.mubr.bf16.gmra.mrb[0].mxu0 %v859
      %v895 = vpop.f32.mrb[0].mxu0
      %v896 = vadd.f32 0.0, %v895
      %v897 = vpop.f32.mrb[0].mxu0
      %v898 = vpop.f32.mrb[0].mxu0
      %v899 = vpop.f32.mrb[0].mxu0
      %900 = vdwg.mxu0
      %v901 = vadd.f32 %v846, %v896
      %v902 = vld [vmem:[%s104 + $0x4] sm:$0xf]
      %v903 = vpack.c.bf16 %v902, %v902
      %s904 = scalar_lea.vmem [#allocation9], 88
      %v905 = vld [vmem:[%s904] sm:$0xf]
      %v906 = vld [vmem:[%s904 + $0x4] sm:$0xf]
      %v909 = vunpack.c.l.b16 %v905
      %v910 = vunpack.c.l.b16 %v906
      %v911 = vpack.c.b16 %v910, %v909
      %v914 = vsel %vm135, %v903, 0
      %916 = vmatprep.subr.bf16.mxu0 0
      %917 = vmatpush1.bf16.msra.mxu0 %v911
      %918 = vmatprep.subr.bf16.mxu0 0
      %919 = vmatpush1.bf16.msra.mxu0 0
      %920 = vmatprep.subr.bf16.mxu0 0
      %921 = vmatpush1.bf16.msra.mxu0 0
      %922 = vmatprep.subr.bf16.mxu0 0
      %923 = vmatpush1.bf16.msra.mxu0 0
      %924 = vmatprep.subr.bf16.mxu0 0
      %925 = vmatpush1.bf16.msra.mxu0 0
      %926 = vmatprep.subr.bf16.mxu0 0
      %927 = vmatpush1.bf16.msra.mxu0 0
      %928 = vmatprep.subr.bf16.mxu0 0
      %929 = vmatpush1.bf16.msra.mxu0 0
      %930 = vmatprep.subr.bf16.mxu0 0
      %931 = vmatpush1.bf16.msra.mxu0 0
      %932 = vmatprep.subr.bf16.mxu0 0
      %933 = vmatpush1.bf16.msra.mxu0 0
      %934 = vmatprep.subr.bf16.mxu0 0
      %935 = vmatpush1.bf16.msra.mxu0 0
      %936 = vmatprep.subr.bf16.mxu0 0
      %937 = vmatpush1.bf16.msra.mxu0 0
      %938 = vmatprep.subr.bf16.mxu0 0
      %939 = vmatpush1.bf16.msra.mxu0 0
      %940 = vmatprep.subr.bf16.mxu0 0
      %941 = vmatpush1.bf16.msra.mxu0 0
      %942 = vmatprep.subr.bf16.mxu0 0
      %943 = vmatpush1.bf16.msra.mxu0 0
      %944 = vmatprep.subr.bf16.mxu0 0
      %945 = vmatpush1.bf16.msra.mxu0 0
      %946 = vmatprep.subr.bf16.mxu0 0
      %947 = vmatpush1.bf16.msra.mxu0 0
      %948 = vmatprep.mubr.bf16.mxu0 0
      %949 = vmatmul.mubr.bf16.gmra.mrb[0].mxu0 %v914
      %v950 = vpop.f32.mrb[0].mxu0
      %v951 = vadd.f32 0.0, %v950
      %v952 = vpop.f32.mrb[0].mxu0
      %v953 = vpop.f32.mrb[0].mxu0
      %v954 = vpop.f32.mrb[0].mxu0
      %955 = vdwg.mxu0
      %v956 = vadd.f32 %v901, %v951
      %v957 = vld [vmem:[%s104 + $0x5] sm:$0xf]
      %v958 = vpack.c.bf16 %v957, %v957
      %s959 = scalar_lea.vmem [#allocation9], 96
      %v960 = vld [vmem:[%s959] sm:$0xf]
      %v961 = vld [vmem:[%s959 + $0x4] sm:$0xf]
      %v964 = vunpack.c.l.b16 %v960
      %v965 = vunpack.c.l.b16 %v961
      %v966 = vpack.c.b16 %v965, %v964
      %v969 = vsel %vm135, %v958, 0
      %971 = vmatprep.subr.bf16.mxu0 0
      %972 = vmatpush1.bf16.msra.mxu0 %v966
      %973 = vmatprep.subr.bf16.mxu0 0
      %974 = vmatpush1.bf16.msra.mxu0 0
      %975 = vmatprep.subr.bf16.mxu0 0
      %976 = vmatpush1.bf16.msra.mxu0 0
      %977 = vmatprep.subr.bf16.mxu0 0
      %978 = vmatpush1.bf16.msra.mxu0 0
      %979 = vmatprep.subr.bf16.mxu0 0
      %980 = vmatpush1.bf16.msra.mxu0 0
      %981 = vmatprep.subr.bf16.mxu0 0
      %982 = vmatpush1.bf16.msra.mxu0 0
      %983 = vmatprep.subr.bf16.mxu0 0
      %984 = vmatpush1.bf16.msra.mxu0 0
      %985 = vmatprep.subr.bf16.mxu0 0
      %986 = vmatpush1.bf16.msra.mxu0 0
      %987 = vmatprep.subr.bf16.mxu0 0
      %988 = vmatpush1.bf16.msra.mxu0 0
      %989 = vmatprep.subr.bf16.mxu0 0
      %990 = vmatpush1.bf16.msra.mxu0 0
      %991 = vmatprep.subr.bf16.mxu0 0
      %992 = vmatpush1.bf16.msra.mxu0 0
      %993 = vmatprep.subr.bf16.mxu0 0
      %994 = vmatpush1.bf16.msra.mxu0 0
      %995 = vmatprep.subr.bf16.mxu0 0
      %996 = vmatpush1.bf16.msra.mxu0 0
      %997 = vmatprep.subr.bf16.mxu0 0
      %998 = vmatpush1.bf16.msra.mxu0 0
      %999 = vmatprep.subr.bf16.mxu0 0
      %1000 = vmatpush1.bf16.msra.mxu0 0
      %1001 = vmatprep.subr.bf16.mxu0 0
      %1002 = vmatpush1.bf16.msra.mxu0 0
      %1003 = vmatprep.mubr.bf16.mxu0 0
      %1004 = vmatmul.mubr.bf16.gmra.mrb[0].mxu0 %v969
      %v1005 = vpop.f32.mrb[0].mxu0
      %v1006 = vadd.f32 0.0, %v1005
      %v1007 = vpop.f32.mrb[0].mxu0
      %v1008 = vpop.f32.mrb[0].mxu0
      %v1009 = vpop.f32.mrb[0].mxu0
      %1010 = vdwg.mxu0
      %v1011 = vadd.f32 %v956, %v1006
      %v1012 = vld [vmem:[%s104 + $0x6] sm:$0xf]
      %v1013 = vpack.c.bf16 %v1012, %v1012
      %s1014 = scalar_lea.vmem [#allocation9], 104
      %v1015 = vld [vmem:[%s1014] sm:$0xf]
      %v1016 = vld [vmem:[%s1014 + $0x4] sm:$0xf]
      %v1019 = vunpack.c.l.b16 %v1015
      %v1020 = vunpack.c.l.b16 %v1016
      %v1021 = vpack.c.b16 %v1020, %v1019
      %v1024 = vsel %vm135, %v1013, 0
      %1026 = vmatprep.subr.bf16.mxu0 0
      %1027 = vmatpush1.bf16.msra.mxu0 %v1021
      %1028 = vmatprep.subr.bf16.mxu0 0
      %1029 = vmatpush1.bf16.msra.mxu0 0
      %1030 = vmatprep.subr.bf16.mxu0 0
      %1031 = vmatpush1.bf16.msra.mxu0 0
      %1032 = vmatprep.subr.bf16.mxu0 0
      %1033 = vmatpush1.bf16.msra.mxu0 0
      %1034 = vmatprep.subr.bf16.mxu0 0
      %1035 = vmatpush1.bf16.msra.mxu0 0
      %1036 = vmatprep.subr.bf16.mxu0 0
      %1037 = vmatpush1.bf16.msra.mxu0 0
      %1038 = vmatprep.subr.bf16.mxu0 0
      %1039 = vmatpush1.bf16.msra.mxu0 0
      %1040 = vmatprep.subr.bf16.mxu0 0
      %1041 = vmatpush1.bf16.msra.mxu0 0
      %1042 = vmatprep.subr.bf16.mxu0 0
      %1043 = vmatpush1.bf16.msra.mxu0 0
      %1044 = vmatprep.subr.bf16.mxu0 0
      %1045 = vmatpush1.bf16.msra.mxu0 0
      %1046 = vmatprep.subr.bf16.mxu0 0
      %1047 = vmatpush1.bf16.msra.mxu0 0
      %1048 = vmatprep.subr.bf16.mxu0 0
      %1049 = vmatpush1.bf16.msra.mxu0 0
      %1050 = vmatprep.subr.bf16.mxu0 0
      %1051 = vmatpush1.bf16.msra.mxu0 0
      %1052 = vmatprep.subr.bf16.mxu0 0
      %1053 = vmatpush1.bf16.msra.mxu0 0
      %1054 = vmatprep.subr.bf16.mxu0 0
      %1055 = vmatpush1.bf16.msra.mxu0 0
      %1056 = vmatprep.subr.bf16.mxu0 0
      %1057 = vmatpush1.bf16.msra.mxu0 0
      %1058 = vmatprep.mubr.bf16.mxu0 0
      %1059 = vmatmul.mubr.bf16.gmra.mrb[0].mxu0 %v1024
      %v1060 = vpop.f32.mrb[0].mxu0
      %v1061 = vadd.f32 0.0, %v1060
      %v1062 = vpop.f32.mrb[0].mxu0
      %v1063 = vpop.f32.mrb[0].mxu0
      %v1064 = vpop.f32.mrb[0].mxu0
      %1065 = vdwg.mxu0
      %v1066 = vadd.f32 %v1011, %v1061
      %v1067 = vstv %s193
      %v1068 = vadd.f32 %v1066, %v1067
      %v1069 = vmax.f32 %v1068, 0.0
      %v1070 = vxor.u32 %v1069, 2147483648
      %v1071 = vmul.f32 %v1070, 1.442695
      %v1072 = vpow.pop %v1071
      %v1073 = vadd.f32 %v1072, 1.0
      %v1074 = vrcp.pop %v1073
      %v1075 = vmul.f32 1.0, %v1074
      %v1076 = vadd.f32 %v136, %v139
      %v1077 = vrot.slane %v1076, 4
      %v1078 = vadd.f32 %v1076, %v1077
      %v1079 = vrot.slane %v1078, 2
      %v1080 = vadd.f32 %v1078, %v1079
      %v1081 = vrot.slane %v1080, 1
      %v1082 = vadd.f32 %v1080, %v1081
      %v1083 = vadd.f32 %v142, %v145
      %v1084 = vrot.slane %v1083, 4
      %v1085 = vadd.f32 %v1083, %v1084
      %v1086 = vrot.slane %v1085, 2
      %v1087 = vadd.f32 %v1085, %v1086
      %v1088 = vrot.slane %v1087, 1
      %v1089 = vadd.f32 %v1087, %v1088
      %v1090 = vadd.f32 %v148, %v151
      %v1091 = vrot.slane %v1090, 4
      %v1092 = vadd.f32 %v1090, %v1091
      %v1093 = vrot.slane %v1092, 2
      %v1094 = vadd.f32 %v1092, %v1093
      %v1095 = vrot.slane %v1094, 1
      %v1096 = vadd.f32 %v1094, %v1095
      %v1097 = vadd.f32 %v154, %v157
      %v1098 = vrot.slane %v1097, 4
      %v1099 = vadd.f32 %v1097, %v1098
      %v1100 = vrot.slane %v1099, 2
      %v1101 = vadd.f32 %v1099, %v1100
      %v1102 = vrot.slane %v1101, 1
      %v1103 = vadd.f32 %v1101, %v1102
      %v1104 = vmul.f32 %v1082, %v160
      %v1105 = vmul.f32 %v1089, %v160
      %v1106 = vmul.f32 %v1096, %v160
      %v1107 = vmul.f32 %v1103, %v160
      %v1108 = vmax.f32 %v169, %v172
      %v1109 = vrot.slane %v1108, 4
      %v1110 = vmax.f32 %v1108, %v1109
      %v1111 = vrot.slane %v1110, 2
      %v1112 = vmax.f32 %v1110, %v1111
      %v1113 = vrot.slane %v1112, 1
      %v1114 = vmax.f32 %v1112, %v1113
      %v1115 = vmax.f32 %v175, %v178
      %v1116 = vrot.slane %v1115, 4
      %v1117 = vmax.f32 %v1115, %v1116
      %v1118 = vrot.slane %v1117, 2
      %v1119 = vmax.f32 %v1117, %v1118
      %v1120 = vrot.slane %v1119, 1
      %v1121 = vmax.f32 %v1119, %v1120
      %v1122 = vmax.f32 %v181, %v184
      %v1123 = vrot.slane %v1122, 4
      %v1124 = vmax.f32 %v1122, %v1123
      %v1125 = vrot.slane %v1124, 2
      %v1126 = vmax.f32 %v1124, %v1125
      %v1127 = vrot.slane %v1126, 1
      %v1128 = vmax.f32 %v1126, %v1127
      %v1129 = vmax.f32 %v187, %v190
      %v1130 = vrot.slane %v1129, 4
      %v1131 = vmax.f32 %v1129, %v1130
      %v1132 = vrot.slane %v1131, 2
      %v1133 = vmax.f32 %v1131, %v1132
      %v1134 = vrot.slane %v1133, 1
      %v1135 = vmax.f32 %v1133, %v1134
      %s1136 = sld [smem:[#allocation14 + $0x1]]
      %v1141 = vsel %vm242, %v1105, %v1104
      %v1142 = vsel %vm244, %v1106, %v1141
      %v1143 = vsel %vm246, %v1107, %v1142
      %1145 = vst.msk [vmem:[#allocation3 + $0x3] sm:$0xf] %vm249, %v1143
      %v1150 = vsel %vm242, %v1121, %v1114
      %v1151 = vsel %vm244, %v1128, %v1150
      %v1152 = vsel %vm246, %v1135, %v1151
      %1154 = vst.msk [vmem:[%s109 + $0x3] sm:$0xf] %vm249, %v1152
      %v1155 = vld [vmem:[#allocation3] sm:$0xf]
      %v1156 = vpack.c.bf16 %v1155, %v1155
      %v1157 = vld [vmem:[#allocation11] sm:$0xf]
      %v1158 = vld [vmem:[#allocation11 + $0x4] sm:$0xf]
      %v1159 = vld [vmem:[#allocation3 + $0x1] sm:$0xf]
      %v1160 = vpack.c.bf16 %v1159, %v1159
      %s1161 = scalar_lea.vmem [#allocation11], 8
      %v1162 = vld [vmem:[%s1161] sm:$0xf]
      %v1163 = vld [vmem:[%s1161 + $0x4] sm:$0xf]
      %v1166 = vunpack.c.l.b16 %v1162
      %v1167 = vunpack.c.l.b16 %v1163
      %v1168 = vpack.c.b16 %v1167, %v1166
      %v1171 = vsel %vm135, %v1160, 0
      %1173 = vmatprep.subr.bf16.mxu0 0
      %1174 = vmatpush1.bf16.msra.mxu0 %v1168
      %1175 = vmatprep.subr.bf16.mxu0 0
      %1176 = vmatpush1.bf16.msra.mxu0 0
      %1177 = vmatprep.subr.bf16.mxu0 0
      %1178 = vmatpush1.bf16.msra.mxu0 0
      %1179 = vmatprep.subr.bf16.mxu0 0
      %1180 = vmatpush1.bf16.msra.mxu0 0
      %1181 = vmatprep.subr.bf16.mxu0 0
      %1182 = vmatpush1.bf16.msra.mxu0 0
      %1183 = vmatprep.subr.bf16.mxu0 0
      %1184 = vmatpush1.bf16.msra.mxu0 0
      %1185 = vmatprep.subr.bf16.mxu0 0
      %1186 = vmatpush1.bf16.msra.mxu0 0
      %1187 = vmatprep.subr.bf16.mxu0 0
      %1188 = vmatpush1.bf16.msra.mxu0 0
      %1189 = vmatprep.subr.bf16.mxu0 0
      %1190 = vmatpush1.bf16.msra.mxu0 0
      %1191 = vmatprep.subr.bf16.mxu0 0
      %1192 = vmatpush1.bf16.msra.mxu0 0
      %1193 = vmatprep.subr.bf16.mxu0 0
      %1194 = vmatpush1.bf16.msra.mxu0 0
      %1195 = vmatprep.subr.bf16.mxu0 0
      %1196 = vmatpush1.bf16.msra.mxu0 0
      %1197 = vmatprep.subr.bf16.mxu0 0
      %1198 = vmatpush1.bf16.msra.mxu0 0
      %1199 = vmatprep.subr.bf16.mxu0 0
      %1200 = vmatpush1.bf16.msra.mxu0 0
      %1201 = vmatprep.subr.bf16.mxu0 0
      %1202 = vmatpush1.bf16.msra.mxu0 0
      %1203 = vmatprep.subr.bf16.mxu0 0
      %1204 = vmatpush1.bf16.msra.mxu0 0
      %1205 = vmatprep.mubr.bf16.mxu0 0
      %1206 = vmatmul.mubr.bf16.gmra.mrb[0].mxu0 %v1171
      %v1207 = vpop.f32.mrb[0].mxu0
      %v1208 = vadd.f32 0.0, %v1207
      %v1209 = vpop.f32.mrb[0].mxu0
      %v1210 = vpop.f32.mrb[0].mxu0
      %v1211 = vpop.f32.mrb[0].mxu0
      %1212 = vdwg.mxu0
      %v1215 = vunpack.c.l.b16 %v1157
      %v1216 = vunpack.c.l.b16 %v1158
      %v1217 = vpack.c.b16 %v1216, %v1215
      %v1220 = vsel %vm135, %v1156, 0
      %1222 = vmatprep.subr.bf16.mxu0 0
      %1223 = vmatpush1.bf16.msra.mxu0 %v1217
      %1224 = vmatprep.subr.bf16.mxu0 0
      %1225 = vmatpush1.bf16.msra.mxu0 0
      %1226 = vmatprep.subr.bf16.mxu0 0
      %1227 = vmatpush1.bf16.msra.mxu0 0
      %1228 = vmatprep.subr.bf16.mxu0 0
      %1229 = vmatpush1.bf16.msra.mxu0 0
      %1230 = vmatprep.subr.bf16.mxu0 0
      %1231 = vmatpush1.bf16.msra.mxu0 0
      %1232 = vmatprep.subr.bf16.mxu0 0
      %1233 = vmatpush1.bf16.msra.mxu0 0
      %1234 = vmatprep.subr.bf16.mxu0 0
      %1235 = vmatpush1.bf16.msra.mxu0 0
      %1236 = vmatprep.subr.bf16.mxu0 0
      %1237 = vmatpush1.bf16.msra.mxu0 0
      %1238 = vmatprep.subr.bf16.mxu0 0
      %1239 = vmatpush1.bf16.msra.mxu0 0
      %1240 = vmatprep.subr.bf16.mxu0 0
      %1241 = vmatpush1.bf16.msra.mxu0 0
      %1242 = vmatprep.subr.bf16.mxu0 0
      %1243 = vmatpush1.bf16.msra.mxu0 0
      %1244 = vmatprep.subr.bf16.mxu0 0
      %1245 = vmatpush1.bf16.msra.mxu0 0
      %1246 = vmatprep.subr.bf16.mxu0 0
      %1247 = vmatpush1.bf16.msra.mxu0 0
      %1248 = vmatprep.subr.bf16.mxu0 0
      %1249 = vmatpush1.bf16.msra.mxu0 0
      %1250 = vmatprep.subr.bf16.mxu0 0
      %1251 = vmatpush1.bf16.msra.mxu0 0
      %1252 = vmatprep.subr.bf16.mxu0 0
      %1253 = vmatpush1.bf16.msra.mxu0 0
      %1254 = vmatprep.mubr.bf16.mxu0 0
      %1255 = vmatmul.mubr.bf16.gmra.mrb[0].mxu0 %v1220
      %v1256 = vpop.f32.mrb[0].mxu0
      %v1257 = vadd.f32 %v1208, %v1256
      %v1258 = vpop.f32.mrb[0].mxu0
      %v1259 = vpop.f32.mrb[0].mxu0
      %v1260 = vpop.f32.mrb[0].mxu0
      %1261 = vdwg.mxu0
      %v1262 = vld [vmem:[#allocation3 + $0x2] sm:$0xf]
      %v1263 = vpack.c.bf16 %v1262, %v1262
      %s1264 = scalar_lea.vmem [#allocation11], 16
      %v1265 = vld [vmem:[%s1264] sm:$0xf]
      %v1266 = vld [vmem:[%s1264 + $0x4] sm:$0xf]
      %v1269 = vunpack.c.l.b16 %v1265
      %v1270 = vunpack.c.l.b16 %v1266
      %v1271 = vpack.c.b16 %v1270, %v1269
      %v1274 = vsel %vm135, %v1263, 0
      %1276 = vmatprep.subr.bf16.mxu0 0
      %1277 = vmatpush1.bf16.msra.mxu0 %v1271
      %1278 = vmatprep.subr.bf16.mxu0 0
      %1279 = vmatpush1.bf16.msra.mxu0 0
      %1280 = vmatprep.subr.bf16.mxu0 0
      %1281 = vmatpush1.bf16.msra.mxu0 0
      %1282 = vmatprep.subr.bf16.mxu0 0
      %1283 = vmatpush1.bf16.msra.mxu0 0
      %1284 = vmatprep.subr.bf16.mxu0 0
      %1285 = vmatpush1.bf16.msra.mxu0 0
      %1286 = vmatprep.subr.bf16.mxu0 0
      %1287 = vmatpush1.bf16.msra.mxu0 0
      %1288 = vmatprep.subr.bf16.mxu0 0
      %1289 = vmatpush1.bf16.msra.mxu0 0
      %1290 = vmatprep.subr.bf16.mxu0 0
      %1291 = vmatpush1.bf16.msra.mxu0 0
      %1292 = vmatprep.subr.bf16.mxu0 0
      %1293 = vmatpush1.bf16.msra.mxu0 0
      %1294 = vmatprep.subr.bf16.mxu0 0
      %1295 = vmatpush1.bf16.msra.mxu0 0
      %1296 = vmatprep.subr.bf16.mxu0 0
      %1297 = vmatpush1.bf16.msra.mxu0 0
      %1298 = vmatprep.subr.bf16.mxu0 0
      %1299 = vmatpush1.bf16.msra.mxu0 0
      %1300 = vmatprep.subr.bf16.mxu0 0
      %1301 = vmatpush1.bf16.msra.mxu0 0
      %1302 = vmatprep.subr.bf16.mxu0 0
      %1303 = vmatpush1.bf16.msra.mxu0 0
      %1304 = vmatprep.subr.bf16.mxu0 0
      %1305 = vmatpush1.bf16.msra.mxu0 0
      %1306 = vmatprep.subr.bf16.mxu0 0
      %1307 = vmatpush1.bf16.msra.mxu0 0
      %1308 = vmatprep.mubr.bf16.mxu0 0
      %1309 = vmatmul.mubr.bf16.gmra.mrb[0].mxu0 %v1274
      %v1310 = vpop.f32.mrb[0].mxu0
      %v1311 = vadd.f32 0.0, %v1310
      %v1312 = vpop.f32.mrb[0].mxu0
      %v1313 = vpop.f32.mrb[0].mxu0
      %v1314 = vpop.f32.mrb[0].mxu0
      %1315 = vdwg.mxu0
      %v1316 = vadd.f32 %v1257, %v1311
      %v1317 = vld [vmem:[#allocation3 + $0x3] sm:$0xf]
      %v1318 = vpack.c.bf16 %v1317, %v1317
      %s1319 = scalar_lea.vmem [#allocation11], 24
      %v1320 = vld [vmem:[%s1319] sm:$0xf]
      %v1321 = vld [vmem:[%s1319 + $0x4] sm:$0xf]
      %v1324 = vunpack.c.l.b16 %v1320
      %v1325 = vunpack.c.l.b16 %v1321
      %v1326 = vpack.c.b16 %v1325, %v1324
      %v1329 = vsel %vm135, %v1318, 0
      %1331 = vmatprep.subr.bf16.mxu0 0
      %1332 = vmatpush1.bf16.msra.mxu0 %v1326
      %1333 = vmatprep.subr.bf16.mxu0 0
      %1334 = vmatpush1.bf16.msra.mxu0 0
      %1335 = vmatprep.subr.bf16.mxu0 0
      %1336 = vmatpush1.bf16.msra.mxu0 0
      %1337 = vmatprep.subr.bf16.mxu0 0
      %1338 = vmatpush1.bf16.msra.mxu0 0
      %1339 = vmatprep.subr.bf16.mxu0 0
      %1340 = vmatpush1.bf16.msra.mxu0 0
      %1341 = vmatprep.subr.bf16.mxu0 0
      %1342 = vmatpush1.bf16.msra.mxu0 0
      %1343 = vmatprep.subr.bf16.mxu0 0
      %1344 = vmatpush1.bf16.msra.mxu0 0
      %1345 = vmatprep.subr.bf16.mxu0 0
      %1346 = vmatpush1.bf16.msra.mxu0 0
      %1347 = vmatprep.subr.bf16.mxu0 0
      %1348 = vmatpush1.bf16.msra.mxu0 0
      %1349 = vmatprep.subr.bf16.mxu0 0
      %1350 = vmatpush1.bf16.msra.mxu0 0
      %1351 = vmatprep.subr.bf16.mxu0 0
      %1352 = vmatpush1.bf16.msra.mxu0 0
      %1353 = vmatprep.subr.bf16.mxu0 0
      %1354 = vmatpush1.bf16.msra.mxu0 0
      %1355 = vmatprep.subr.bf16.mxu0 0
      %1356 = vmatpush1.bf16.msra.mxu0 0
      %1357 = vmatprep.subr.bf16.mxu0 0
      %1358 = vmatpush1.bf16.msra.mxu0 0
      %1359 = vmatprep.subr.bf16.mxu0 0
      %1360 = vmatpush1.bf16.msra.mxu0 0
      %1361 = vmatprep.subr.bf16.mxu0 0
      %1362 = vmatpush1.bf16.msra.mxu0 0
      %1363 = vmatprep.mubr.bf16.mxu0 0
      %1364 = vmatmul.mubr.bf16.gmra.mrb[0].mxu0 %v1329
      %v1365 = vpop.f32.mrb[0].mxu0
      %v1366 = vadd.f32 0.0, %v1365
      %v1367 = vpop.f32.mrb[0].mxu0
      %v1368 = vpop.f32.mrb[0].mxu0
      %v1369 = vpop.f32.mrb[0].mxu0
      %1370 = vdwg.mxu0
      %v1371 = vadd.f32 %v1316, %v1366
      %v1372 = vld [vmem:[#allocation3 + $0x4] sm:$0xf]
      %v1373 = vpack.c.bf16 %v1372, %v1372
      %s1374 = scalar_lea.vmem [#allocation11], 32
      %v1375 = vld [vmem:[%s1374] sm:$0xf]
      %v1376 = vld [vmem:[%s1374 + $0x4] sm:$0xf]
      %v1379 = vunpack.c.l.b16 %v1375
      %v1380 = vunpack.c.l.b16 %v1376
      %v1381 = vpack.c.b16 %v1380, %v1379
      %v1384 = vsel %vm135, %v1373, 0
      %1386 = vmatprep.subr.bf16.mxu0 0
      %1387 = vmatpush1.bf16.msra.mxu0 %v1381
      %1388 = vmatprep.subr.bf16.mxu0 0
      %1389 = vmatpush1.bf16.msra.mxu0 0
      %1390 = vmatprep.subr.bf16.mxu0 0
      %1391 = vmatpush1.bf16.msra.mxu0 0
      %1392 = vmatprep.subr.bf16.mxu0 0
      %1393 = vmatpush1.bf16.msra.mxu0 0
      %1394 = vmatprep.subr.bf16.mxu0 0
      %1395 = vmatpush1.bf16.msra.mxu0 0
      %1396 = vmatprep.subr.bf16.mxu0 0
      %1397 = vmatpush1.bf16.msra.mxu0 0
      %1398 = vmatprep.subr.bf16.mxu0 0
      %1399 = vmatpush1.bf16.msra.mxu0 0
      %1400 = vmatprep.subr.bf16.mxu0 0
      %1401 = vmatpush1.bf16.msra.mxu0 0
      %1402 = vmatprep.subr.bf16.mxu0 0
      %1403 = vmatpush1.bf16.msra.mxu0 0
      %1404 = vmatprep.subr.bf16.mxu0 0
      %1405 = vmatpush1.bf16.msra.mxu0 0
      %1406 = vmatprep.subr.bf16.mxu0 0
      %1407 = vmatpush1.bf16.msra.mxu0 0
      %1408 = vmatprep.subr.bf16.mxu0 0
      %1409 = vmatpush1.bf16.msra.mxu0 0
      %1410 = vmatprep.subr.bf16.mxu0 0
      %1411 = vmatpush1.bf16.msra.mxu0 0
      %1412 = vmatprep.subr.bf16.mxu0 0
      %1413 = vmatpush1.bf16.msra.mxu0 0
      %1414 = vmatprep.subr.bf16.mxu0 0
      %1415 = vmatpush1.bf16.msra.mxu0 0
      %1416 = vmatprep.subr.bf16.mxu0 0
      %1417 = vmatpush1.bf16.msra.mxu0 0
      %1418 = vmatprep.mubr.bf16.mxu0 0
      %1419 = vmatmul.mubr.bf16.gmra.mrb[0].mxu0 %v1384
      %v1420 = vpop.f32.mrb[0].mxu0
      %v1421 = vadd.f32 0.0, %v1420
      %v1422 = vpop.f32.mrb[0].mxu0
      %v1423 = vpop.f32.mrb[0].mxu0
      %v1424 = vpop.f32.mrb[0].mxu0
      %1425 = vdwg.mxu0
      %v1426 = vadd.f32 %v1371, %v1421
      %v1427 = vld [vmem:[#allocation3 + $0x5] sm:$0xf]
      %v1428 = vpack.c.bf16 %v1427, %v1427
      %s1429 = scalar_lea.vmem [#allocation11], 40
      %v1430 = vld [vmem:[%s1429] sm:$0xf]
      %v1431 = vld [vmem:[%s1429 + $0x4] sm:$0xf]
      %v1434 = vunpack.c.l.b16 %v1430
      %v1435 = vunpack.c.l.b16 %v1431
      %v1436 = vpack.c.b16 %v1435, %v1434
      %v1439 = vsel %vm135, %v1428, 0
      %1441 = vmatprep.subr.bf16.mxu0 0
      %1442 = vmatpush1.bf16.msra.mxu0 %v1436
      %1443 = vmatprep.subr.bf16.mxu0 0
      %1444 = vmatpush1.bf16.msra.mxu0 0
      %1445 = vmatprep.subr.bf16.mxu0 0
      %1446 = vmatpush1.bf16.msra.mxu0 0
      %1447 = vmatprep.subr.bf16.mxu0 0
      %1448 = vmatpush1.bf16.msra.mxu0 0
      %1449 = vmatprep.subr.bf16.mxu0 0
      %1450 = vmatpush1.bf16.msra.mxu0 0
      %1451 = vmatprep.subr.bf16.mxu0 0
      %1452 = vmatpush1.bf16.msra.mxu0 0
      %1453 = vmatprep.subr.bf16.mxu0 0
      %1454 = vmatpush1.bf16.msra.mxu0 0
      %1455 = vmatprep.subr.bf16.mxu0 0
      %1456 = vmatpush1.bf16.msra.mxu0 0
      %1457 = vmatprep.subr.bf16.mxu0 0
      %1458 = vmatpush1.bf16.msra.mxu0 0
      %1459 = vmatprep.subr.bf16.mxu0 0
      %1460 = vmatpush1.bf16.msra.mxu0 0
      %1461 = vmatprep.subr.bf16.mxu0 0
      %1462 = vmatpush1.bf16.msra.mxu0 0
      %1463 = vmatprep.subr.bf16.mxu0 0
      %1464 = vmatpush1.bf16.msra.mxu0 0
      %1465 = vmatprep.subr.bf16.mxu0 0
      %1466 = vmatpush1.bf16.msra.mxu0 0
      %1467 = vmatprep.subr.bf16.mxu0 0
      %1468 = vmatpush1.bf16.msra.mxu0 0
      %1469 = vmatprep.subr.bf16.mxu0 0
      %1470 = vmatpush1.bf16.msra.mxu0 0
      %1471 = vmatprep.subr.bf16.mxu0 0
      %1472 = vmatpush1.bf16.msra.mxu0 0
      %1473 = vmatprep.mubr.bf16.mxu0 0
      %1474 = vmatmul.mubr.bf16.gmra.mrb[0].mxu0 %v1439
      %v1475 = vpop.f32.mrb[0].mxu0
      %v1476 = vadd.f32 0.0, %v1475
      %v1477 = vpop.f32.mrb[0].mxu0
      %v1478 = vpop.f32.mrb[0].mxu0
      %v1479 = vpop.f32.mrb[0].mxu0
      %1480 = vdwg.mxu0
      %v1481 = vadd.f32 %v1426, %v1476
      %v1482 = vld [vmem:[#allocation3 + $0x6] sm:$0xf]
      %v1483 = vpack.c.bf16 %v1482, %v1482
      %s1484 = scalar_lea.vmem [#allocation11], 48
      %v1485 = vld [vmem:[%s1484] sm:$0xf]
      %v1486 = vld [vmem:[%s1484 + $0x4] sm:$0xf]
      %v1489 = vunpack.c.l.b16 %v1485
      %v1490 = vunpack.c.l.b16 %v1486
      %v1491 = vpack.c.b16 %v1490, %v1489
      %v1494 = vsel %vm135, %v1483, 0
      %1496 = vmatprep.subr.bf16.mxu0 0
      %1497 = vmatpush1.bf16.msra.mxu0 %v1491
      %1498 = vmatprep.subr.bf16.mxu0 0
      %1499 = vmatpush1.bf16.msra.mxu0 0
      %1500 = vmatprep.subr.bf16.mxu0 0
      %1501 = vmatpush1.bf16.msra.mxu0 0
      %1502 = vmatprep.subr.bf16.mxu0 0
      %1503 = vmatpush1.bf16.msra.mxu0 0
      %1504 = vmatprep.subr.bf16.mxu0 0
      %1505 = vmatpush1.bf16.msra.mxu0 0
      %1506 = vmatprep.subr.bf16.mxu0 0
      %1507 = vmatpush1.bf16.msra.mxu0 0
      %1508 = vmatprep.subr.bf16.mxu0 0
      %1509 = vmatpush1.bf16.msra.mxu0 0
      %1510 = vmatprep.subr.bf16.mxu0 0
      %1511 = vmatpush1.bf16.msra.mxu0 0
      %1512 = vmatprep.subr.bf16.mxu0 0
      %1513 = vmatpush1.bf16.msra.mxu0 0
      %1514 = vmatprep.subr.bf16.mxu0 0
      %1515 = vmatpush1.bf16.msra.mxu0 0
      %1516 = vmatprep.subr.bf16.mxu0 0
      %1517 = vmatpush1.bf16.msra.mxu0 0
      %1518 = vmatprep.subr.bf16.mxu0 0
      %1519 = vmatpush1.bf16.msra.mxu0 0
      %1520 = vmatprep.subr.bf16.mxu0 0
      %1521 = vmatpush1.bf16.msra.mxu0 0
      %1522 = vmatprep.subr.bf16.mxu0 0
      %1523 = vmatpush1.bf16.msra.mxu0 0
      %1524 = vmatprep.subr.bf16.mxu0 0
      %1525 = vmatpush1.bf16.msra.mxu0 0
      %1526 = vmatprep.subr.bf16.mxu0 0
      %1527 = vmatpush1.bf16.msra.mxu0 0
      %1528 = vmatprep.mubr.bf16.mxu0 0
      %1529 = vmatmul.mubr.bf16.gmra.mrb[0].mxu0 %v1494
      %v1530 = vpop.f32.mrb[0].mxu0
      %v1531 = vadd.f32 0.0, %v1530
      %v1532 = vpop.f32.mrb[0].mxu0
      %v1533 = vpop.f32.mrb[0].mxu0
      %v1534 = vpop.f32.mrb[0].mxu0
      %1535 = vdwg.mxu0
      %v1536 = vadd.f32 %v1481, %v1531
      %v1537 = vld [vmem:[%s109] sm:$0xf]
      %v1538 = vpack.c.bf16 %v1537, %v1537
      %s1539 = scalar_lea.vmem [#allocation11], 56
      %v1540 = vld [vmem:[%s1539] sm:$0xf]
      %v1541 = vld [vmem:[%s1539 + $0x4] sm:$0xf]
      %v1544 = vunpack.c.l.b16 %v1540
      %v1545 = vunpack.c.l.b16 %v1541
      %v1546 = vpack.c.b16 %v1545, %v1544
      %v1549 = vsel %vm135, %v1538, 0
      %1551 = vmatprep.subr.bf16.mxu0 0
      %1552 = vmatpush1.bf16.msra.mxu0 %v1546
      %1553 = vmatprep.subr.bf16.mxu0 0
      %1554 = vmatpush1.bf16.msra.mxu0 0
      %1555 = vmatprep.subr.bf16.mxu0 0
      %1556 = vmatpush1.bf16.msra.mxu0 0
      %1557 = vmatprep.subr.bf16.mxu0 0
      %1558 = vmatpush1.bf16.msra.mxu0 0
      %1559 = vmatprep.subr.bf16.mxu0 0
      %1560 = vmatpush1.bf16.msra.mxu0 0
      %1561 = vmatprep.subr.bf16.mxu0 0
      %1562 = vmatpush1.bf16.msra.mxu0 0
      %1563 = vmatprep.subr.bf16.mxu0 0
      %1564 = vmatpush1.bf16.msra.mxu0 0
      %1565 = vmatprep.subr.bf16.mxu0 0
      %1566 = vmatpush1.bf16.msra.mxu0 0
      %1567 = vmatprep.subr.bf16.mxu0 0
      %1568 = vmatpush1.bf16.msra.mxu0 0
      %1569 = vmatprep.subr.bf16.mxu0 0
      %1570 = vmatpush1.bf16.msra.mxu0 0
      %1571 = vmatprep.subr.bf16.mxu0 0
      %1572 = vmatpush1.bf16.msra.mxu0 0
      %1573 = vmatprep.subr.bf16.mxu0 0
      %1574 = vmatpush1.bf16.msra.mxu0 0
      %1575 = vmatprep.subr.bf16.mxu0 0
      %1576 = vmatpush1.bf16.msra.mxu0 0
      %1577 = vmatprep.subr.bf16.mxu0 0
      %1578 = vmatpush1.bf16.msra.mxu0 0
      %1579 = vmatprep.subr.bf16.mxu0 0
      %1580 = vmatpush1.bf16.msra.mxu0 0
      %1581 = vmatprep.subr.bf16.mxu0 0
      %1582 = vmatpush1.bf16.msra.mxu0 0
      %1583 = vmatprep.mubr.bf16.mxu0 0
      %1584 = vmatmul.mubr.bf16.gmra.mrb[0].mxu0 %v1549
      %v1585 = vpop.f32.mrb[0].mxu0
      %v1586 = vadd.f32 0.0, %v1585
      %v1587 = vpop.f32.mrb[0].mxu0
      %v1588 = vpop.f32.mrb[0].mxu0
      %v1589 = vpop.f32.mrb[0].mxu0
      %1590 = vdwg.mxu0
      %v1591 = vadd.f32 %v1536, %v1586
      %v1592 = vld [vmem:[%s109 + $0x1] sm:$0xf]
      %v1593 = vpack.c.bf16 %v1592, %v1592
      %s1594 = scalar_lea.vmem [#allocation11], 64
      %v1595 = vld [vmem:[%s1594] sm:$0xf]
      %v1596 = vld [vmem:[%s1594 + $0x4] sm:$0xf]
      %v1599 = vunpack.c.l.b16 %v1595
      %v1600 = vunpack.c.l.b16 %v1596
      %v1601 = vpack.c.b16 %v1600, %v1599
      %v1604 = vsel %vm135, %v1593, 0
      %1606 = vmatprep.subr.bf16.mxu0 0
      %1607 = vmatpush1.bf16.msra.mxu0 %v1601
      %1608 = vmatprep.subr.bf16.mxu0 0
      %1609 = vmatpush1.bf16.msra.mxu0 0
      %1610 = vmatprep.subr.bf16.mxu0 0
      %1611 = vmatpush1.bf16.msra.mxu0 0
      %1612 = vmatprep.subr.bf16.mxu0 0
      %1613 = vmatpush1.bf16.msra.mxu0 0
      %1614 = vmatprep.subr.bf16.mxu0 0
      %1615 = vmatpush1.bf16.msra.mxu0 0
      %1616 = vmatprep.subr.bf16.mxu0 0
      %1617 = vmatpush1.bf16.msra.mxu0 0
      %1618 = vmatprep.subr.bf16.mxu0 0
      %1619 = vmatpush1.bf16.msra.mxu0 0
      %1620 = vmatprep.subr.bf16.mxu0 0
      %1621 = vmatpush1.bf16.msra.mxu0 0
      %1622 = vmatprep.subr.bf16.mxu0 0
      %1623 = vmatpush1.bf16.msra.mxu0 0
      %1624 = vmatprep.subr.bf16.mxu0 0
      %1625 = vmatpush1.bf16.msra.mxu0 0
      %1626 = vmatprep.subr.bf16.mxu0 0
      %1627 = vmatpush1.bf16.msra.mxu0 0
      %1628 = vmatprep.subr.bf16.mxu0 0
      %1629 = vmatpush1.bf16.msra.mxu0 0
      %1630 = vmatprep.subr.bf16.mxu0 0
      %1631 = vmatpush1.bf16.msra.mxu0 0
      %1632 = vmatprep.subr.bf16.mxu0 0
      %1633 = vmatpush1.bf16.msra.mxu0 0
      %1634 = vmatprep.subr.bf16.mxu0 0
      %1635 = vmatpush1.bf16.msra.mxu0 0
      %1636 = vmatprep.subr.bf16.mxu0 0
      %1637 = vmatpush1.bf16.msra.mxu0 0
      %1638 = vmatprep.mubr.bf16.mxu0 0
      %1639 = vmatmul.mubr.bf16.gmra.mrb[0].mxu0 %v1604
      %v1640 = vpop.f32.mrb[0].mxu0
      %v1641 = vadd.f32 0.0, %v1640
      %v1642 = vpop.f32.mrb[0].mxu0
      %v1643 = vpop.f32.mrb[0].mxu0
      %v1644 = vpop.f32.mrb[0].mxu0
      %1645 = vdwg.mxu0
      %v1646 = vadd.f32 %v1591, %v1641
      %v1647 = vld [vmem:[%s109 + $0x2] sm:$0xf]
      %v1648 = vpack.c.bf16 %v1647, %v1647
      %s1649 = scalar_lea.vmem [#allocation11], 72
      %v1650 = vld [vmem:[%s1649] sm:$0xf]
      %v1651 = vld [vmem:[%s1649 + $0x4] sm:$0xf]
      %v1654 = vunpack.c.l.b16 %v1650
      %v1655 = vunpack.c.l.b16 %v1651
      %v1656 = vpack.c.b16 %v1655, %v1654
      %v1659 = vsel %vm135, %v1648, 0
      %1661 = vmatprep.subr.bf16.mxu0 0
      %1662 = vmatpush1.bf16.msra.mxu0 %v1656
      %1663 = vmatprep.subr.bf16.mxu0 0
      %1664 = vmatpush1.bf16.msra.mxu0 0
      %1665 = vmatprep.subr.bf16.mxu0 0
      %1666 = vmatpush1.bf16.msra.mxu0 0
      %1667 = vmatprep.subr.bf16.mxu0 0
      %1668 = vmatpush1.bf16.msra.mxu0 0
      %1669 = vmatprep.subr.bf16.mxu0 0
      %1670 = vmatpush1.bf16.msra.mxu0 0
      %1671 = vmatprep.subr.bf16.mxu0 0
      %1672 = vmatpush1.bf16.msra.mxu0 0
      %1673 = vmatprep.subr.bf16.mxu0 0
      %1674 = vmatpush1.bf16.msra.mxu0 0
      %1675 = vmatprep.subr.bf16.mxu0 0
      %1676 = vmatpush1.bf16.msra.mxu0 0
      %1677 = vmatprep.subr.bf16.mxu0 0
      %1678 = vmatpush1.bf16.msra.mxu0 0
      %1679 = vmatprep.subr.bf16.mxu0 0
      %1680 = vmatpush1.bf16.msra.mxu0 0
      %1681 = vmatprep.subr.bf16.mxu0 0
      %1682 = vmatpush1.bf16.msra.mxu0 0
      %1683 = vmatprep.subr.bf16.mxu0 0
      %1684 = vmatpush1.bf16.msra.mxu0 0
      %1685 = vmatprep.subr.bf16.mxu0 0
      %1686 = vmatpush1.bf16.msra.mxu0 0
      %1687 = vmatprep.subr.bf16.mxu0 0
      %1688 = vmatpush1.bf16.msra.mxu0 0
      %1689 = vmatprep.subr.bf16.mxu0 0
      %1690 = vmatpush1.bf16.msra.mxu0 0
      %1691 = vmatprep.subr.bf16.mxu0 0
      %1692 = vmatpush1.bf16.msra.mxu0 0
      %1693 = vmatprep.mubr.bf16.mxu0 0
      %1694 = vmatmul.mubr.bf16.gmra.mrb[0].mxu0 %v1659
      %v1695 = vpop.f32.mrb[0].mxu0
      %v1696 = vadd.f32 0.0, %v1695
      %v1697 = vpop.f32.mrb[0].mxu0
      %v1698 = vpop.f32.mrb[0].mxu0
      %v1699 = vpop.f32.mrb[0].mxu0
      %1700 = vdwg.mxu0
      %v1701 = vadd.f32 %v1646, %v1696
      %v1702 = vld [vmem:[%s109 + $0x3] sm:$0xf]
      %v1703 = vpack.c.bf16 %v1702, %v1702
      %s1704 = scalar_lea.vmem [#allocation11], 80
      %v1705 = vld [vmem:[%s1704] sm:$0xf]
      %v1706 = vld [vmem:[%s1704 + $0x4] sm:$0xf]
      %v1709 = vunpack.c.l.b16 %v1705
      %v1710 = vunpack.c.l.b16 %v1706
      %v1711 = vpack.c.b16 %v1710, %v1709
      %v1714 = vsel %vm135, %v1703, 0
      %1716 = vmatprep.subr.bf16.mxu0 0
      %1717 = vmatpush1.bf16.msra.mxu0 %v1711
      %1718 = vmatprep.subr.bf16.mxu0 0
      %1719 = vmatpush1.bf16.msra.mxu0 0
      %1720 = vmatprep.subr.bf16.mxu0 0
      %1721 = vmatpush1.bf16.msra.mxu0 0
      %1722 = vmatprep.subr.bf16.mxu0 0
      %1723 = vmatpush1.bf16.msra.mxu0 0
      %1724 = vmatprep.subr.bf16.mxu0 0
      %1725 = vmatpush1.bf16.msra.mxu0 0
      %1726 = vmatprep.subr.bf16.mxu0 0
      %1727 = vmatpush1.bf16.msra.mxu0 0
      %1728 = vmatprep.subr.bf16.mxu0 0
      %1729 = vmatpush1.bf16.msra.mxu0 0
      %1730 = vmatprep.subr.bf16.mxu0 0
      %1731 = vmatpush1.bf16.msra.mxu0 0
      %1732 = vmatprep.subr.bf16.mxu0 0
      %1733 = vmatpush1.bf16.msra.mxu0 0
      %1734 = vmatprep.subr.bf16.mxu0 0
      %1735 = vmatpush1.bf16.msra.mxu0 0
      %1736 = vmatprep.subr.bf16.mxu0 0
      %1737 = vmatpush1.bf16.msra.mxu0 0
      %1738 = vmatprep.subr.bf16.mxu0 0
      %1739 = vmatpush1.bf16.msra.mxu0 0
      %1740 = vmatprep.subr.bf16.mxu0 0
      %1741 = vmatpush1.bf16.msra.mxu0 0
      %1742 = vmatprep.subr.bf16.mxu0 0
      %1743 = vmatpush1.bf16.msra.mxu0 0
      %1744 = vmatprep.subr.bf16.mxu0 0
      %1745 = vmatpush1.bf16.msra.mxu0 0
      %1746 = vmatprep.subr.bf16.mxu0 0
      %1747 = vmatpush1.bf16.msra.mxu0 0
      %1748 = vmatprep.mubr.bf16.mxu0 0
      %1749 = vmatmul.mubr.bf16.gmra.mrb[0].mxu0 %v1714
      %v1750 = vpop.f32.mrb[0].mxu0
      %v1751 = vadd.f32 0.0, %v1750
      %v1752 = vpop.f32.mrb[0].mxu0
      %v1753 = vpop.f32.mrb[0].mxu0
      %v1754 = vpop.f32.mrb[0].mxu0
      %1755 = vdwg.mxu0
      %v1756 = vadd.f32 %v1701, %v1751
      %v1757 = vld [vmem:[%s109 + $0x4] sm:$0xf]
      %v1758 = vpack.c.bf16 %v1757, %v1757
      %s1759 = scalar_lea.vmem [#allocation11], 88
      %v1760 = vld [vmem:[%s1759] sm:$0xf]
      %v1761 = vld [vmem:[%s1759 + $0x4] sm:$0xf]
      %v1764 = vunpack.c.l.b16 %v1760
      %v1765 = vunpack.c.l.b16 %v1761
      %v1766 = vpack.c.b16 %v1765, %v1764
      %v1769 = vsel %vm135, %v1758, 0
      %1771 = vmatprep.subr.bf16.mxu0 0
      %1772 = vmatpush1.bf16.msra.mxu0 %v1766
      %1773 = vmatprep.subr.bf16.mxu0 0
      %1774 = vmatpush1.bf16.msra.mxu0 0
      %1775 = vmatprep.subr.bf16.mxu0 0
      %1776 = vmatpush1.bf16.msra.mxu0 0
      %1777 = vmatprep.subr.bf16.mxu0 0
      %1778 = vmatpush1.bf16.msra.mxu0 0
      %1779 = vmatprep.subr.bf16.mxu0 0
      %1780 = vmatpush1.bf16.msra.mxu0 0
      %1781 = vmatprep.subr.bf16.mxu0 0
      %1782 = vmatpush1.bf16.msra.mxu0 0
      %1783 = vmatprep.subr.bf16.mxu0 0
      %1784 = vmatpush1.bf16.msra.mxu0 0
      %1785 = vmatprep.subr.bf16.mxu0 0
      %1786 = vmatpush1.bf16.msra.mxu0 0
      %1787 = vmatprep.subr.bf16.mxu0 0
      %1788 = vmatpush1.bf16.msra.mxu0 0
      %1789 = vmatprep.subr.bf16.mxu0 0
      %1790 = vmatpush1.bf16.msra.mxu0 0
      %1791 = vmatprep.subr.bf16.mxu0 0
      %1792 = vmatpush1.bf16.msra.mxu0 0
      %1793 = vmatprep.subr.bf16.mxu0 0
      %1794 = vmatpush1.bf16.msra.mxu0 0
      %1795 = vmatprep.subr.bf16.mxu0 0
      %1796 = vmatpush1.bf16.msra.mxu0 0
      %1797 = vmatprep.subr.bf16.mxu0 0
      %1798 = vmatpush1.bf16.msra.mxu0 0
      %1799 = vmatprep.subr.bf16.mxu0 0
      %1800 = vmatpush1.bf16.msra.mxu0 0
      %1801 = vmatprep.subr.bf16.mxu0 0
      %1802 = vmatpush1.bf16.msra.mxu0 0
      %1803 = vmatprep.mubr.bf16.mxu0 0
      %1804 = vmatmul.mubr.bf16.gmra.mrb[0].mxu0 %v1769
      %v1805 = vpop.f32.mrb[0].mxu0
      %v1806 = vadd.f32 0.0, %v1805
      %v1807 = vpop.f32.mrb[0].mxu0
      %v1808 = vpop.f32.mrb[0].mxu0
      %v1809 = vpop.f32.mrb[0].mxu0
      %1810 = vdwg.mxu0
      %v1811 = vadd.f32 %v1756, %v1806
      %v1812 = vld [vmem:[%s109 + $0x5] sm:$0xf]
      %v1813 = vpack.c.bf16 %v1812, %v1812
      %s1814 = scalar_lea.vmem [#allocation11], 96
      %v1815 = vld [vmem:[%s1814] sm:$0xf]
      %v1816 = vld [vmem:[%s1814 + $0x4] sm:$0xf]
      %v1819 = vunpack.c.l.b16 %v1815
      %v1820 = vunpack.c.l.b16 %v1816
      %v1821 = vpack.c.b16 %v1820, %v1819
      %v1824 = vsel %vm135, %v1813, 0
      %1826 = vmatprep.subr.bf16.mxu0 0
      %1827 = vmatpush1.bf16.msra.mxu0 %v1821
      %1828 = vmatprep.subr.bf16.mxu0 0
      %1829 = vmatpush1.bf16.msra.mxu0 0
      %1830 = vmatprep.subr.bf16.mxu0 0
      %1831 = vmatpush1.bf16.msra.mxu0 0
      %1832 = vmatprep.subr.bf16.mxu0 0
      %1833 = vmatpush1.bf16.msra.mxu0 0
      %1834 = vmatprep.subr.bf16.mxu0 0
      %1835 = vmatpush1.bf16.msra.mxu0 0
      %1836 = vmatprep.subr.bf16.mxu0 0
      %1837 = vmatpush1.bf16.msra.mxu0 0
      %1838 = vmatprep.subr.bf16.mxu0 0
      %1839 = vmatpush1.bf16.msra.mxu0 0
      %1840 = vmatprep.subr.bf16.mxu0 0
      %1841 = vmatpush1.bf16.msra.mxu0 0
      %1842 = vmatprep.subr.bf16.mxu0 0
      %1843 = vmatpush1.bf16.msra.mxu0 0
      %1844 = vmatprep.subr.bf16.mxu0 0
      %1845 = vmatpush1.bf16.msra.mxu0 0
      %1846 = vmatprep.subr.bf16.mxu0 0
      %1847 = vmatpush1.bf16.msra.mxu0 0
      %1848 = vmatprep.subr.bf16.mxu0 0
      %1849 = vmatpush1.bf16.msra.mxu0 0
      %1850 = vmatprep.subr.bf16.mxu0 0
      %1851 = vmatpush1.bf16.msra.mxu0 0
      %1852 = vmatprep.subr.bf16.mxu0 0
      %1853 = vmatpush1.bf16.msra.mxu0 0
      %1854 = vmatprep.subr.bf16.mxu0 0
      %1855 = vmatpush1.bf16.msra.mxu0 0
      %1856 = vmatprep.subr.bf16.mxu0 0
      %1857 = vmatpush1.bf16.msra.mxu0 0
      %1858 = vmatprep.mubr.bf16.mxu0 0
      %1859 = vmatmul.mubr.bf16.gmra.mrb[0].mxu0 %v1824
      %v1860 = vpop.f32.mrb[0].mxu0
      %v1861 = vadd.f32 0.0, %v1860
      %v1862 = vpop.f32.mrb[0].mxu0
      %v1863 = vpop.f32.mrb[0].mxu0
      %v1864 = vpop.f32.mrb[0].mxu0
      %1865 = vdwg.mxu0
      %v1866 = vadd.f32 %v1811, %v1861
      %v1867 = vld [vmem:[%s109 + $0x6] sm:$0xf]
      %v1868 = vpack.c.bf16 %v1867, %v1867
      %s1869 = scalar_lea.vmem [#allocation11], 104
      %v1870 = vld [vmem:[%s1869] sm:$0xf]
      %v1871 = vld [vmem:[%s1869 + $0x4] sm:$0xf]
      %v1874 = vunpack.c.l.b16 %v1870
      %v1875 = vunpack.c.l.b16 %v1871
      %v1876 = vpack.c.b16 %v1875, %v1874
      %v1879 = vsel %vm135, %v1868, 0
      %1881 = vmatprep.subr.bf16.mxu0 0
      %1882 = vmatpush1.bf16.msra.mxu0 %v1876
      %1883 = vmatprep.subr.bf16.mxu0 0
      %1884 = vmatpush1.bf16.msra.mxu0 0
      %1885 = vmatprep.subr.bf16.mxu0 0
      %1886 = vmatpush1.bf16.msra.mxu0 0
      %1887 = vmatprep.subr.bf16.mxu0 0
      %1888 = vmatpush1.bf16.msra.mxu0 0
      %1889 = vmatprep.subr.bf16.mxu0 0
      %1890 = vmatpush1.bf16.msra.mxu0 0
      %1891 = vmatprep.subr.bf16.mxu0 0
      %1892 = vmatpush1.bf16.msra.mxu0 0
      %1893 = vmatprep.subr.bf16.mxu0 0
      %1894 = vmatpush1.bf16.msra.mxu0 0
      %1895 = vmatprep.subr.bf16.mxu0 0
      %1896 = vmatpush1.bf16.msra.mxu0 0
      %1897 = vmatprep.subr.bf16.mxu0 0
      %1898 = vmatpush1.bf16.msra.mxu0 0
      %1899 = vmatprep.subr.bf16.mxu0 0
      %1900 = vmatpush1.bf16.msra.mxu0 0
      %1901 = vmatprep.subr.bf16.mxu0 0
      %1902 = vmatpush1.bf16.msra.mxu0 0
      %1903 = vmatprep.subr.bf16.mxu0 0
      %1904 = vmatpush1.bf16.msra.mxu0 0
      %1905 = vmatprep.subr.bf16.mxu0 0
      %1906 = vmatpush1.bf16.msra.mxu0 0
      %1907 = vmatprep.subr.bf16.mxu0 0
      %1908 = vmatpush1.bf16.msra.mxu0 0
      %1909 = vmatprep.subr.bf16.mxu0 0
      %1910 = vmatpush1.bf16.msra.mxu0 0
      %1911 = vmatprep.subr.bf16.mxu0 0
      %1912 = vmatpush1.bf16.msra.mxu0 0
      %1913 = vmatprep.mubr.bf16.mxu0 0
      %1914 = vmatmul.mubr.bf16.gmra.mrb[0].mxu0 %v1879
      %v1915 = vpop.f32.mrb[0].mxu0
      %v1916 = vadd.f32 0.0, %v1915
      %v1917 = vpop.f32.mrb[0].mxu0
      %v1918 = vpop.f32.mrb[0].mxu0
      %v1919 = vpop.f32.mrb[0].mxu0
      %1920 = vdwg.mxu0
      %v1921 = vadd.f32 %v1866, %v1916
      %v1922 = vstv %s1136
      %v1923 = vadd.f32 %v1921, %v1922
      %v1924 = vmax.f32 %v1923, 0.0
      %v1925 = vxor.u32 %v1924, 2147483648
      %v1926 = vmul.f32 %v1925, 1.442695
      %v1927 = vpow.pop %v1926
      %v1928 = vadd.f32 %v1927, 1.0
      %v1929 = vrcp.pop %v1928
      %v1930 = vmul.f32 1.0, %v1929
      %v1931 = vadd.f32 %v136, %v142
      %v1932 = vadd.f32 %v1931, %v148
      %v1933 = vadd.f32 %v1932, %v154
      %v1934 = vadd.f32 %v139, %v145
      %v1935 = vadd.f32 %v1934, %v151
      %v1936 = vadd.f32 %v1935, %v157
      %v1937 = vrcp.pop 4.0
      %v1938 = vmul.f32 %v1933, %v1937
      %v1939 = vmul.f32 %v1936, %v1937
      %v1940 = vmax.f32 %v169, %v181
      %v1941 = vmax.f32 %v175, %v187
      %v1942 = vmax.f32 %v1940, %v1941
      %v1943 = vmax.f32 %v172, %v184
      %v1944 = vmax.f32 %v178, %v190
      %v1945 = vmax.f32 %v1943, %v1944
      %s1946 = sld [smem:[#allocation14 + $0x2]]
      %1947 = vst.msk [vmem:[#allocation4 + $0x3] sm:$0xff] %vm135, %v1938
      %1948 = vst.msk [vmem:[#allocation4 + $0xb] sm:$0xff] %vm135, %v1939
      %1949 = vst.msk [vmem:[%s114 + $0x3] sm:$0xff] %vm135, %v1942
      %1950 = vst.msk [vmem:[%s114 + $0xb] sm:$0xff] %vm135, %v1945
      %v1951 = vld [vmem:[#allocation4] sm:$0xff]
      %v1952 = vld [vmem:[#allocation4 + $0x8] sm:$0xff]
      %v1953 = vpack.c.bf16 %v1952, %v1951
      %v1954 = vld [vmem:[#allocation12] sm:$0xf]
      %v1955 = vld [vmem:[#allocation12 + $0x4] sm:$0xf]
      %v1956 = vld [vmem:[#allocation4 + $0x1] sm:$0xff]
      %v1957 = vld [vmem:[#allocation4 + $0x9] sm:$0xff]
      %v1958 = vpack.c.bf16 %v1957, %v1956
      %s1959 = scalar_lea.vmem [#allocation12], 8
      %v1960 = vld [vmem:[%s1959] sm:$0xf]
      %v1961 = vld [vmem:[%s1959 + $0x4] sm:$0xf]
      %v1964 = vunpack.c.l.b16 %v1960
      %v1965 = vunpack.c.l.b16 %v1961
      %v1966 = vpack.c.b16 %v1965, %v1964
      %v1969 = vsel %vm135, %v1958, 0
      %1971 = vmatprep.subr.bf16.mxu0 0
      %1972 = vmatpush1.bf16.msra.mxu0 %v1966
      %1973 = vmatprep.subr.bf16.mxu0 0
      %1974 = vmatpush1.bf16.msra.mxu0 0
      %1975 = vmatprep.subr.bf16.mxu0 0
      %1976 = vmatpush1.bf16.msra.mxu0 0
      %1977 = vmatprep.subr.bf16.mxu0 0
      %1978 = vmatpush1.bf16.msra.mxu0 0
      %1979 = vmatprep.subr.bf16.mxu0 0
      %1980 = vmatpush1.bf16.msra.mxu0 0
      %1981 = vmatprep.subr.bf16.mxu0 0
      %1982 = vmatpush1.bf16.msra.mxu0 0
      %1983 = vmatprep.subr.bf16.mxu0 0
      %1984 = vmatpush1.bf16.msra.mxu0 0
      %1985 = vmatprep.subr.bf16.mxu0 0
      %1986 = vmatpush1.bf16.msra.mxu0 0
      %1987 = vmatprep.subr.bf16.mxu0 0
      %1988 = vmatpush1.bf16.msra.mxu0 0
      %1989 = vmatprep.subr.bf16.mxu0 0
      %1990 = vmatpush1.bf16.msra.mxu0 0
      %1991 = vmatprep.subr.bf16.mxu0 0
      %1992 = vmatpush1.bf16.msra.mxu0 0
      %1993 = vmatprep.subr.bf16.mxu0 0
      %1994 = vmatpush1.bf16.msra.mxu0 0
      %1995 = vmatprep.subr.bf16.mxu0 0
      %1996 = vmatpush1.bf16.msra.mxu0 0
      %1997 = vmatprep.subr.bf16.mxu0 0
      %1998 = vmatpush1.bf16.msra.mxu0 0
      %1999 = vmatprep.subr.bf16.mxu0 0
      %2000 = vmatpush1.bf16.msra.mxu0 0
      %2001 = vmatprep.subr.bf16.mxu0 0
      %2002 = vmatpush1.bf16.msra.mxu0 0
      %2003 = vmatprep.mubr.bf16.mxu0 0
      %2004 = vmatmul.mubr.bf16.gmra.mrb[0].mxu0 %v1969
      %v2005 = vpop.f32.mrb[0].mxu0
      %v2006 = vadd.f32 0.0, %v2005
      %v2007 = vpop.f32.mrb[0].mxu0
      %v2008 = vpop.f32.mrb[0].mxu0
      %v2009 = vadd.f32 0.0, %v2008
      %v2010 = vpop.f32.mrb[0].mxu0
      %2011 = vdwg.mxu0
      %v2014 = vunpack.c.l.b16 %v1954
      %v2015 = vunpack.c.l.b16 %v1955
      %v2016 = vpack.c.b16 %v2015, %v2014
      %v2019 = vsel %vm135, %v1953, 0
      %2021 = vmatprep.subr.bf16.mxu0 0
      %2022 = vmatpush1.bf16.msra.mxu0 %v2016
      %2023 = vmatprep.subr.bf16.mxu0 0
      %2024 = vmatpush1.bf16.msra.mxu0 0
      %2025 = vmatprep.subr.bf16.mxu0 0
      %2026 = vmatpush1.bf16.msra.mxu0 0
      %2027 = vmatprep.subr.bf16.mxu0 0
      %2028 = vmatpush1.bf16.msra.mxu0 0
      %2029 = vmatprep.subr.bf16.mxu0 0
      %2030 = vmatpush1.bf16.msra.mxu0 0
      %2031 = vmatprep.subr.bf16.mxu0 0
      %2032 = vmatpush1.bf16.msra.mxu0 0
      %2033 = vmatprep.subr.bf16.mxu0 0
      %2034 = vmatpush1.bf16.msra.mxu0 0
      %2035 = vmatprep.subr.bf16.mxu0 0
      %2036 = vmatpush1.bf16.msra.mxu0 0
      %2037 = vmatprep.subr.bf16.mxu0 0
      %2038 = vmatpush1.bf16.msra.mxu0 0
      %2039 = vmatprep.subr.bf16.mxu0 0
      %2040 = vmatpush1.bf16.msra.mxu0 0
      %2041 = vmatprep.subr.bf16.mxu0 0
      %2042 = vmatpush1.bf16.msra.mxu0 0
      %2043 = vmatprep.subr.bf16.mxu0 0
      %2044 = vmatpush1.bf16.msra.mxu0 0
      %2045 = vmatprep.subr.bf16.mxu0 0
      %2046 = vmatpush1.bf16.msra.mxu0 0
      %2047 = vmatprep.subr.bf16.mxu0 0
      %2048 = vmatpush1.bf16.msra.mxu0 0
      %2049 = vmatprep.subr.bf16.mxu0 0
      %2050 = vmatpush1.bf16.msra.mxu0 0
      %2051 = vmatprep.subr.bf16.mxu0 0
      %2052 = vmatpush1.bf16.msra.mxu0 0
      %2053 = vmatprep.mubr.bf16.mxu0 0
      %2054 = vmatmul.mubr.bf16.gmra.mrb[0].mxu0 %v2019
      %v2055 = vpop.f32.mrb[0].mxu0
      %v2056 = vadd.f32 %v2006, %v2055
      %v2057 = vpop.f32.mrb[0].mxu0
      %v2058 = vpop.f32.mrb[0].mxu0
      %v2059 = vadd.f32 %v2009, %v2058
      %v2060 = vpop.f32.mrb[0].mxu0
      %2061 = vdwg.mxu0
      %v2062 = vld [vmem:[#allocation4 + $0x2] sm:$0xff]
      %v2063 = vld [vmem:[#allocation4 + $0xa] sm:$0xff]
      %v2064 = vpack.c.bf16 %v2063, %v2062
      %s2065 = scalar_lea.vmem [#allocation12], 16
      %v2066 = vld [vmem:[%s2065] sm:$0xf]
      %v2067 = vld [vmem:[%s2065 + $0x4] sm:$0xf]
      %v2070 = vunpack.c.l.b16 %v2066
      %v2071 = vunpack.c.l.b16 %v2067
      %v2072 = vpack.c.b16 %v2071, %v2070
      %v2075 = vsel %vm135, %v2064, 0
      %2077 = vmatprep.subr.bf16.mxu0 0
      %2078 = vmatpush1.bf16.msra.mxu0 %v2072
      %2079 = vmatprep.subr.bf16.mxu0 0
      %2080 = vmatpush1.bf16.msra.mxu0 0
      %2081 = vmatprep.subr.bf16.mxu0 0
      %2082 = vmatpush1.bf16.msra.mxu0 0
      %2083 = vmatprep.subr.bf16.mxu0 0
      %2084 = vmatpush1.bf16.msra.mxu0 0
      %2085 = vmatprep.subr.bf16.mxu0 0
      %2086 = vmatpush1.bf16.msra.mxu0 0
      %2087 = vmatprep.subr.bf16.mxu0 0
      %2088 = vmatpush1.bf16.msra.mxu0 0
      %2089 = vmatprep.subr.bf16.mxu0 0
      %2090 = vmatpush1.bf16.msra.mxu0 0
      %2091 = vmatprep.subr.bf16.mxu0 0
      %2092 = vmatpush1.bf16.msra.mxu0 0
      %2093 = vmatprep.subr.bf16.mxu0 0
      %2094 = vmatpush1.bf16.msra.mxu0 0
      %2095 = vmatprep.subr.bf16.mxu0 0
      %2096 = vmatpush1.bf16.msra.mxu0 0
      %2097 = vmatprep.subr.bf16.mxu0 0
      %2098 = vmatpush1.bf16.msra.mxu0 0
      %2099 = vmatprep.subr.bf16.mxu0 0
      %2100 = vmatpush1.bf16.msra.mxu0 0
      %2101 = vmatprep.subr.bf16.mxu0 0
      %2102 = vmatpush1.bf16.msra.mxu0 0
      %2103 = vmatprep.subr.bf16.mxu0 0
      %2104 = vmatpush1.bf16.msra.mxu0 0
      %2105 = vmatprep.subr.bf16.mxu0 0
      %2106 = vmatpush1.bf16.msra.mxu0 0
      %2107 = vmatprep.subr.bf16.mxu0 0
      %2108 = vmatpush1.bf16.msra.mxu0 0
      %2109 = vmatprep.mubr.bf16.mxu0 0
      %2110 = vmatmul.mubr.bf16.gmra.mrb[0].mxu0 %v2075
      %v2111 = vpop.f32.mrb[0].mxu0
      %v2112 = vadd.f32 0.0, %v2111
      %v2113 = vpop.f32.mrb[0].mxu0
      %v2114 = vpop.f32.mrb[0].mxu0
      %v2115 = vadd.f32 0.0, %v2114
      %v2116 = vpop.f32.mrb[0].mxu0
      %2117 = vdwg.mxu0
      %v2118 = vadd.f32 %v2056, %v2112
      %v2119 = vadd.f32 %v2059, %v2115
      %v2120 = vld [vmem:[#allocation4 + $0x3] sm:$0xff]
      %v2121 = vld [vmem:[#allocation4 + $0xb] sm:$0xff]
      %v2122 = vpack.c.bf16 %v2121, %v2120
      %s2123 = scalar_lea.vmem [#allocation12], 24
      %v2124 = vld [vmem:[%s2123] sm:$0xf]
      %v2125 = vld [vmem:[%s2123 + $0x4] sm:$0xf]
      %v2128 = vunpack.c.l.b16 %v2124
      %v2129 = vunpack.c.l.b16 %v2125
      %v2130 = vpack.c.b16 %v2129, %v2128
      %v2133 = vsel %vm135, %v2122, 0
      %2135 = vmatprep.subr.bf16.mxu0 0
      %2136 = vmatpush1.bf16.msra.mxu0 %v2130
      %2137 = vmatprep.subr.bf16.mxu0 0
      %2138 = vmatpush1.bf16.msra.mxu0 0
      %2139 = vmatprep.subr.bf16.mxu0 0
      %2140 = vmatpush1.bf16.msra.mxu0 0
      %2141 = vmatprep.subr.bf16.mxu0 0
      %2142 = vmatpush1.bf16.msra.mxu0 0
      %2143 = vmatprep.subr.bf16.mxu0 0
      %2144 = vmatpush1.bf16.msra.mxu0 0
      %2145 = vmatprep.subr.bf16.mxu0 0
      %2146 = vmatpush1.bf16.msra.mxu0 0
      %2147 = vmatprep.subr.bf16.mxu0 0
      %2148 = vmatpush1.bf16.msra.mxu0 0
      %2149 = vmatprep.subr.bf16.mxu0 0
      %2150 = vmatpush1.bf16.msra.mxu0 0
      %2151 = vmatprep.subr.bf16.mxu0 0
      %2152 = vmatpush1.bf16.msra.mxu0 0
      %2153 = vmatprep.subr.bf16.mxu0 0
      %2154 = vmatpush1.bf16.msra.mxu0 0
      %2155 = vmatprep.subr.bf16.mxu0 0
      %2156 = vmatpush1.bf16.msra.mxu0 0
      %2157 = vmatprep.subr.bf16.mxu0 0
      %2158 = vmatpush1.bf16.msra.mxu0 0
      %2159 = vmatprep.subr.bf16.mxu0 0
      %2160 = vmatpush1.bf16.msra.mxu0 0
      %2161 = vmatprep.subr.bf16.mxu0 0
      %2162 = vmatpush1.bf16.msra.mxu0 0
      %2163 = vmatprep.subr.bf16.mxu0 0
      %2164 = vmatpush1.bf16.msra.mxu0 0
      %2165 = vmatprep.subr.bf16.mxu0 0
      %2166 = vmatpush1.bf16.msra.mxu0 0
      %2167 = vmatprep.mubr.bf16.mxu0 0
      %2168 = vmatmul.mubr.bf16.gmra.mrb[0].mxu0 %v2133
      %v2169 = vpop.f32.mrb[0].mxu0
      %v2170 = vadd.f32 0.0, %v2169
      %v2171 = vpop.f32.mrb[0].mxu0
      %v2172 = vpop.f32.mrb[0].mxu0
      %v2173 = vadd.f32 0.0, %v2172
      %v2174 = vpop.f32.mrb[0].mxu0
      %2175 = vdwg.mxu0
      %v2176 = vadd.f32 %v2118, %v2170
      %v2177 = vadd.f32 %v2119, %v2173
      %v2178 = vld [vmem:[#allocation4 + $0x4] sm:$0xff]
      %v2179 = vld [vmem:[#allocation4 + $0xc] sm:$0xff]
      %v2180 = vpack.c.bf16 %v2179, %v2178
      %s2181 = scalar_lea.vmem [#allocation12], 32
      %v2182 = vld [vmem:[%s2181] sm:$0xf]
      %v2183 = vld [vmem:[%s2181 + $0x4] sm:$0xf]
      %v2186 = vunpack.c.l.b16 %v2182
      %v2187 = vunpack.c.l.b16 %v2183
      %v2188 = vpack.c.b16 %v2187, %v2186
      %v2191 = vsel %vm135, %v2180, 0
      %2193 = vmatprep.subr.bf16.mxu0 0
      %2194 = vmatpush1.bf16.msra.mxu0 %v2188
      %2195 = vmatprep.subr.bf16.mxu0 0
      %2196 = vmatpush1.bf16.msra.mxu0 0
      %2197 = vmatprep.subr.bf16.mxu0 0
      %2198 = vmatpush1.bf16.msra.mxu0 0
      %2199 = vmatprep.subr.bf16.mxu0 0
      %2200 = vmatpush1.bf16.msra.mxu0 0
      %2201 = vmatprep.subr.bf16.mxu0 0
      %2202 = vmatpush1.bf16.msra.mxu0 0
      %2203 = vmatprep.subr.bf16.mxu0 0
      %2204 = vmatpush1.bf16.msra.mxu0 0
      %2205 = vmatprep.subr.bf16.mxu0 0
      %2206 = vmatpush1.bf16.msra.mxu0 0
      %2207 = vmatprep.subr.bf16.mxu0 0
      %2208 = vmatpush1.bf16.msra.mxu0 0
      %2209 = vmatprep.subr.bf16.mxu0 0
      %2210 = vmatpush1.bf16.msra.mxu0 0
      %2211 = vmatprep.subr.bf16.mxu0 0
      %2212 = vmatpush1.bf16.msra.mxu0 0
      %2213 = vmatprep.subr.bf16.mxu0 0
      %2214 = vmatpush1.bf16.msra.mxu0 0
      %2215 = vmatprep.subr.bf16.mxu0 0
      %2216 = vmatpush1.bf16.msra.mxu0 0
      %2217 = vmatprep.subr.bf16.mxu0 0
      %2218 = vmatpush1.bf16.msra.mxu0 0
      %2219 = vmatprep.subr.bf16.mxu0 0
      %2220 = vmatpush1.bf16.msra.mxu0 0
      %2221 = vmatprep.subr.bf16.mxu0 0
      %2222 = vmatpush1.bf16.msra.mxu0 0
      %2223 = vmatprep.subr.bf16.mxu0 0
      %2224 = vmatpush1.bf16.msra.mxu0 0
      %2225 = vmatprep.mubr.bf16.mxu0 0
      %2226 = vmatmul.mubr.bf16.gmra.mrb[0].mxu0 %v2191
      %v2227 = vpop.f32.mrb[0].mxu0
      %v2228 = vadd.f32 0.0, %v2227
      %v2229 = vpop.f32.mrb[0].mxu0
      %v2230 = vpop.f32.mrb[0].mxu0
      %v2231 = vadd.f32 0.0, %v2230
      %v2232 = vpop.f32.mrb[0].mxu0
      %2233 = vdwg.mxu0
      %v2234 = vadd.f32 %v2176, %v2228
      %v2235 = vadd.f32 %v2177, %v2231
      %v2236 = vld [vmem:[#allocation4 + $0x5] sm:$0xff]
      %v2237 = vld [vmem:[#allocation4 + $0xd] sm:$0xff]
      %v2238 = vpack.c.bf16 %v2237, %v2236
      %s2239 = scalar_lea.vmem [#allocation12], 40
      %v2240 = vld [vmem:[%s2239] sm:$0xf]
      %v2241 = vld [vmem:[%s2239 + $0x4] sm:$0xf]
      %v2244 = vunpack.c.l.b16 %v2240
      %v2245 = vunpack.c.l.b16 %v2241
      %v2246 = vpack.c.b16 %v2245, %v2244
      %v2249 = vsel %vm135, %v2238, 0
      %2251 = vmatprep.subr.bf16.mxu0 0
      %2252 = vmatpush1.bf16.msra.mxu0 %v2246
      %2253 = vmatprep.subr.bf16.mxu0 0
      %2254 = vmatpush1.bf16.msra.mxu0 0
      %2255 = vmatprep.subr.bf16.mxu0 0
      %2256 = vmatpush1.bf16.msra.mxu0 0
      %2257 = vmatprep.subr.bf16.mxu0 0
      %2258 = vmatpush1.bf16.msra.mxu0 0
      %2259 = vmatprep.subr.bf16.mxu0 0
      %2260 = vmatpush1.bf16.msra.mxu0 0
      %2261 = vmatprep.subr.bf16.mxu0 0
      %2262 = vmatpush1.bf16.msra.mxu0 0
      %2263 = vmatprep.subr.bf16.mxu0 0
      %2264 = vmatpush1.bf16.msra.mxu0 0
      %2265 = vmatprep.subr.bf16.mxu0 0
      %2266 = vmatpush1.bf16.msra.mxu0 0
      %2267 = vmatprep.subr.bf16.mxu0 0
      %2268 = vmatpush1.bf16.msra.mxu0 0
      %2269 = vmatprep.subr.bf16.mxu0 0
      %2270 = vmatpush1.bf16.msra.mxu0 0
      %2271 = vmatprep.subr.bf16.mxu0 0
      %2272 = vmatpush1.bf16.msra.mxu0 0
      %2273 = vmatprep.subr.bf16.mxu0 0
      %2274 = vmatpush1.bf16.msra.mxu0 0
      %2275 = vmatprep.subr.bf16.mxu0 0
      %2276 = vmatpush1.bf16.msra.mxu0 0
      %2277 = vmatprep.subr.bf16.mxu0 0
      %2278 = vmatpush1.bf16.msra.mxu0 0
      %2279 = vmatprep.subr.bf16.mxu0 0
      %2280 = vmatpush1.bf16.msra.mxu0 0
      %2281 = vmatprep.subr.bf16.mxu0 0
      %2282 = vmatpush1.bf16.msra.mxu0 0
      %2283 = vmatprep.mubr.bf16.mxu0 0
      %2284 = vmatmul.mubr.bf16.gmra.mrb[0].mxu0 %v2249
      %v2285 = vpop.f32.mrb[0].mxu0
      %v2286 = vadd.f32 0.0, %v2285
      %v2287 = vpop.f32.mrb[0].mxu0
      %v2288 = vpop.f32.mrb[0].mxu0
      %v2289 = vadd.f32 0.0, %v2288
      %v2290 = vpop.f32.mrb[0].mxu0
      %2291 = vdwg.mxu0
      %v2292 = vadd.f32 %v2234, %v2286
      %v2293 = vadd.f32 %v2235, %v2289
      %v2294 = vld [vmem:[#allocation4 + $0x6] sm:$0xff]
      %v2295 = vld [vmem:[#allocation4 + $0xe] sm:$0xff]
      %v2296 = vpack.c.bf16 %v2295, %v2294
      %s2297 = scalar_lea.vmem [#allocation12], 48
      %v2298 = vld [vmem:[%s2297] sm:$0xf]
      %v2299 = vld [vmem:[%s2297 + $0x4] sm:$0xf]
      %v2302 = vunpack.c.l.b16 %v2298
      %v2303 = vunpack.c.l.b16 %v2299
      %v2304 = vpack.c.b16 %v2303, %v2302
      %v2307 = vsel %vm135, %v2296, 0
      %2309 = vmatprep.subr.bf16.mxu0 0
      %2310 = vmatpush1.bf16.msra.mxu0 %v2304
      %2311 = vmatprep.subr.bf16.mxu0 0
      %2312 = vmatpush1.bf16.msra.mxu0 0
      %2313 = vmatprep.subr.bf16.mxu0 0
      %2314 = vmatpush1.bf16.msra.mxu0 0
      %2315 = vmatprep.subr.bf16.mxu0 0
      %2316 = vmatpush1.bf16.msra.mxu0 0
      %2317 = vmatprep.subr.bf16.mxu0 0
      %2318 = vmatpush1.bf16.msra.mxu0 0
      %2319 = vmatprep.subr.bf16.mxu0 0
      %2320 = vmatpush1.bf16.msra.mxu0 0
      %2321 = vmatprep.subr.bf16.mxu0 0
      %2322 = vmatpush1.bf16.msra.mxu0 0
      %2323 = vmatprep.subr.bf16.mxu0 0
      %2324 = vmatpush1.bf16.msra.mxu0 0
      %2325 = vmatprep.subr.bf16.mxu0 0
      %2326 = vmatpush1.bf16.msra.mxu0 0
      %2327 = vmatprep.subr.bf16.mxu0 0
      %2328 = vmatpush1.bf16.msra.mxu0 0
      %2329 = vmatprep.subr.bf16.mxu0 0
      %2330 = vmatpush1.bf16.msra.mxu0 0
      %2331 = vmatprep.subr.bf16.mxu0 0
      %2332 = vmatpush1.bf16.msra.mxu0 0
      %2333 = vmatprep.subr.bf16.mxu0 0
      %2334 = vmatpush1.bf16.msra.mxu0 0
      %2335 = vmatprep.subr.bf16.mxu0 0
      %2336 = vmatpush1.bf16.msra.mxu0 0
      %2337 = vmatprep.subr.bf16.mxu0 0
      %2338 = vmatpush1.bf16.msra.mxu0 0
      %2339 = vmatprep.subr.bf16.mxu0 0
      %2340 = vmatpush1.bf16.msra.mxu0 0
      %2341 = vmatprep.mubr.bf16.mxu0 0
      %2342 = vmatmul.mubr.bf16.gmra.mrb[0].mxu0 %v2307
      %v2343 = vpop.f32.mrb[0].mxu0
      %v2344 = vadd.f32 0.0, %v2343
      %v2345 = vpop.f32.mrb[0].mxu0
      %v2346 = vpop.f32.mrb[0].mxu0
      %v2347 = vadd.f32 0.0, %v2346
      %v2348 = vpop.f32.mrb[0].mxu0
      %2349 = vdwg.mxu0
      %v2350 = vadd.f32 %v2292, %v2344
      %v2351 = vadd.f32 %v2293, %v2347
      %v2352 = vld [vmem:[%s114] sm:$0xff]
      %v2353 = vld [vmem:[%s114 + $0x8] sm:$0xff]
      %v2354 = vpack.c.bf16 %v2353, %v2352
      %s2355 = scalar_lea.vmem [#allocation12], 56
      %v2356 = vld [vmem:[%s2355] sm:$0xf]
      %v2357 = vld [vmem:[%s2355 + $0x4] sm:$0xf]
      %v2360 = vunpack.c.l.b16 %v2356
      %v2361 = vunpack.c.l.b16 %v2357
      %v2362 = vpack.c.b16 %v2361, %v2360
      %v2365 = vsel %vm135, %v2354, 0
      %2367 = vmatprep.subr.bf16.mxu0 0
      %2368 = vmatpush1.bf16.msra.mxu0 %v2362
      %2369 = vmatprep.subr.bf16.mxu0 0
      %2370 = vmatpush1.bf16.msra.mxu0 0
      %2371 = vmatprep.subr.bf16.mxu0 0
      %2372 = vmatpush1.bf16.msra.mxu0 0
      %2373 = vmatprep.subr.bf16.mxu0 0
      %2374 = vmatpush1.bf16.msra.mxu0 0
      %2375 = vmatprep.subr.bf16.mxu0 0
      %2376 = vmatpush1.bf16.msra.mxu0 0
      %2377 = vmatprep.subr.bf16.mxu0 0
      %2378 = vmatpush1.bf16.msra.mxu0 0
      %2379 = vmatprep.subr.bf16.mxu0 0
      %2380 = vmatpush1.bf16.msra.mxu0 0
      %2381 = vmatprep.subr.bf16.mxu0 0
      %2382 = vmatpush1.bf16.msra.mxu0 0
      %2383 = vmatprep.subr.bf16.mxu0 0
      %2384 = vmatpush1.bf16.msra.mxu0 0
      %2385 = vmatprep.subr.bf16.mxu0 0
      %2386 = vmatpush1.bf16.msra.mxu0 0
      %2387 = vmatprep.subr.bf16.mxu0 0
      %2388 = vmatpush1.bf16.msra.mxu0 0
      %2389 = vmatprep.subr.bf16.mxu0 0
      %2390 = vmatpush1.bf16.msra.mxu0 0
      %2391 = vmatprep.subr.bf16.mxu0 0
      %2392 = vmatpush1.bf16.msra.mxu0 0
      %2393 = vmatprep.subr.bf16.mxu0 0
      %2394 = vmatpush1.bf16.msra.mxu0 0
      %2395 = vmatprep.subr.bf16.mxu0 0
      %2396 = vmatpush1.bf16.msra.mxu0 0
      %2397 = vmatprep.subr.bf16.mxu0 0
      %2398 = vmatpush1.bf16.msra.mxu0 0
      %2399 = vmatprep.mubr.bf16.mxu0 0
      %2400 = vmatmul.mubr.bf16.gmra.mrb[0].mxu0 %v2365
      %v2401 = vpop.f32.mrb[0].mxu0
      %v2402 = vadd.f32 0.0, %v2401
      %v2403 = vpop.f32.mrb[0].mxu0
      %v2404 = vpop.f32.mrb[0].mxu0
      %v2405 = vadd.f32 0.0, %v2404
      %v2406 = vpop.f32.mrb[0].mxu0
      %2407 = vdwg.mxu0
      %v2408 = vadd.f32 %v2350, %v2402
      %v2409 = vadd.f32 %v2351, %v2405
      %v2410 = vld [vmem:[%s114 + $0x1] sm:$0xff]
      %v2411 = vld [vmem:[%s114 + $0x9] sm:$0xff]
      %v2412 = vpack.c.bf16 %v2411, %v2410
      %s2413 = scalar_lea.vmem [#allocation12], 64
      %v2414 = vld [vmem:[%s2413] sm:$0xf]
      %v2415 = vld [vmem:[%s2413 + $0x4] sm:$0xf]
      %v2418 = vunpack.c.l.b16 %v2414
      %v2419 = vunpack.c.l.b16 %v2415
      %v2420 = vpack.c.b16 %v2419, %v2418
      %v2423 = vsel %vm135, %v2412, 0
      %2425 = vmatprep.subr.bf16.mxu0 0
      %2426 = vmatpush1.bf16.msra.mxu0 %v2420
      %2427 = vmatprep.subr.bf16.mxu0 0
      %2428 = vmatpush1.bf16.msra.mxu0 0
      %2429 = vmatprep.subr.bf16.mxu0 0
      %2430 = vmatpush1.bf16.msra.mxu0 0
      %2431 = vmatprep.subr.bf16.mxu0 0
      %2432 = vmatpush1.bf16.msra.mxu0 0
      %2433 = vmatprep.subr.bf16.mxu0 0
      %2434 = vmatpush1.bf16.msra.mxu0 0
      %2435 = vmatprep.subr.bf16.mxu0 0
      %2436 = vmatpush1.bf16.msra.mxu0 0
      %2437 = vmatprep.subr.bf16.mxu0 0
      %2438 = vmatpush1.bf16.msra.mxu0 0
      %2439 = vmatprep.subr.bf16.mxu0 0
      %2440 = vmatpush1.bf16.msra.mxu0 0
      %2441 = vmatprep.subr.bf16.mxu0 0
      %2442 = vmatpush1.bf16.msra.mxu0 0
      %2443 = vmatprep.subr.bf16.mxu0 0
      %2444 = vmatpush1.bf16.msra.mxu0 0
      %2445 = vmatprep.subr.bf16.mxu0 0
      %2446 = vmatpush1.bf16.msra.mxu0 0
      %2447 = vmatprep.subr.bf16.mxu0 0
      %2448 = vmatpush1.bf16.msra.mxu0 0
      %2449 = vmatprep.subr.bf16.mxu0 0
      %2450 = vmatpush1.bf16.msra.mxu0 0
      %2451 = vmatprep.subr.bf16.mxu0 0
      %2452 = vmatpush1.bf16.msra.mxu0 0
      %2453 = vmatprep.subr.bf16.mxu0 0
      %2454 = vmatpush1.bf16.msra.mxu0 0
      %2455 = vmatprep.subr.bf16.mxu0 0
      %2456 = vmatpush1.bf16.msra.mxu0 0
      %2457 = vmatprep.mubr.bf16.mxu0 0
      %2458 = vmatmul.mubr.bf16.gmra.mrb[0].mxu0 %v2423
      %v2459 = vpop.f32.mrb[0].mxu0
      %v2460 = vadd.f32 0.0, %v2459
      %v2461 = vpop.f32.mrb[0].mxu0
      %v2462 = vpop.f32.mrb[0].mxu0
      %v2463 = vadd.f32 0.0, %v2462
      %v2464 = vpop.f32.mrb[0].mxu0
      %2465 = vdwg.mxu0
      %v2466 = vadd.f32 %v2408, %v2460
      %v2467 = vadd.f32 %v2409, %v2463
      %v2468 = vld [vmem:[%s114 + $0x2] sm:$0xff]
      %v2469 = vld [vmem:[%s114 + $0xa] sm:$0xff]
      %v2470 = vpack.c.bf16 %v2469, %v2468
      %s2471 = scalar_lea.vmem [#allocation12], 72
      %v2472 = vld [vmem:[%s2471] sm:$0xf]
      %v2473 = vld [vmem:[%s2471 + $0x4] sm:$0xf]
      %v2476 = vunpack.c.l.b16 %v2472
      %v2477 = vunpack.c.l.b16 %v2473
      %v2478 = vpack.c.b16 %v2477, %v2476
      %v2481 = vsel %vm135, %v2470, 0
      %2483 = vmatprep.subr.bf16.mxu0 0
      %2484 = vmatpush1.bf16.msra.mxu0 %v2478
      %2485 = vmatprep.subr.bf16.mxu0 0
      %2486 = vmatpush1.bf16.msra.mxu0 0
      %2487 = vmatprep.subr.bf16.mxu0 0
      %2488 = vmatpush1.bf16.msra.mxu0 0
      %2489 = vmatprep.subr.bf16.mxu0 0
      %2490 = vmatpush1.bf16.msra.mxu0 0
      %2491 = vmatprep.subr.bf16.mxu0 0
      %2492 = vmatpush1.bf16.msra.mxu0 0
      %2493 = vmatprep.subr.bf16.mxu0 0
      %2494 = vmatpush1.bf16.msra.mxu0 0
      %2495 = vmatprep.subr.bf16.mxu0 0
      %2496 = vmatpush1.bf16.msra.mxu0 0
      %2497 = vmatprep.subr.bf16.mxu0 0
      %2498 = vmatpush1.bf16.msra.mxu0 0
      %2499 = vmatprep.subr.bf16.mxu0 0
      %2500 = vmatpush1.bf16.msra.mxu0 0
      %2501 = vmatprep.subr.bf16.mxu0 0
      %2502 = vmatpush1.bf16.msra.mxu0 0
      %2503 = vmatprep.subr.bf16.mxu0 0
      %2504 = vmatpush1.bf16.msra.mxu0 0
      %2505 = vmatprep.subr.bf16.mxu0 0
      %2506 = vmatpush1.bf16.msra.mxu0 0
      %2507 = vmatprep.subr.bf16.mxu0 0
      %2508 = vmatpush1.bf16.msra.mxu0 0
      %2509 = vmatprep.subr.bf16.mxu0 0
      %2510 = vmatpush1.bf16.msra.mxu0 0
      %2511 = vmatprep.subr.bf16.mxu0 0
      %2512 = vmatpush1.bf16.msra.mxu0 0
      %2513 = vmatprep.subr.bf16.mxu0 0
      %2514 = vmatpush1.bf16.msra.mxu0 0
      %2515 = vmatprep.mubr.bf16.mxu0 0
      %2516 = vmatmul.mubr.bf16.gmra.mrb[0].mxu0 %v2481
      %v2517 = vpop.f32.mrb[0].mxu0
      %v2518 = vadd.f32 0.0, %v2517
      %v2519 = vpop.f32.mrb[0].mxu0
      %v2520 = vpop.f32.mrb[0].mxu0
      %v2521 = vadd.f32 0.0, %v2520
      %v2522 = vpop.f32.mrb[0].mxu0
      %2523 = vdwg.mxu0
      %v2524 = vadd.f32 %v2466, %v2518
      %v2525 = vadd.f32 %v2467, %v2521
      %v2526 = vld [vmem:[%s114 + $0x3] sm:$0xff]
      %v2527 = vld [vmem:[%s114 + $0xb] sm:$0xff]
      %v2528 = vpack.c.bf16 %v2527, %v2526
      %s2529 = scalar_lea.vmem [#allocation12], 80
      %v2530 = vld [vmem:[%s2529] sm:$0xf]
      %v2531 = vld [vmem:[%s2529 + $0x4] sm:$0xf]
      %v2534 = vunpack.c.l.b16 %v2530
      %v2535 = vunpack.c.l.b16 %v2531
      %v2536 = vpack.c.b16 %v2535, %v2534
      %v2539 = vsel %vm135, %v2528, 0
      %2541 = vmatprep.subr.bf16.mxu0 0
      %2542 = vmatpush1.bf16.msra.mxu0 %v2536
      %2543 = vmatprep.subr.bf16.mxu0 0
      %2544 = vmatpush1.bf16.msra.mxu0 0
      %2545 = vmatprep.subr.bf16.mxu0 0
      %2546 = vmatpush1.bf16.msra.mxu0 0
      %2547 = vmatprep.subr.bf16.mxu0 0
      %2548 = vmatpush1.bf16.msra.mxu0 0
      %2549 = vmatprep.subr.bf16.mxu0 0
      %2550 = vmatpush1.bf16.msra.mxu0 0
      %2551 = vmatprep.subr.bf16.mxu0 0
      %2552 = vmatpush1.bf16.msra.mxu0 0
      %2553 = vmatprep.subr.bf16.mxu0 0
      %2554 = vmatpush1.bf16.msra.mxu0 0
      %2555 = vmatprep.subr.bf16.mxu0 0
      %2556 = vmatpush1.bf16.msra.mxu0 0
      %2557 = vmatprep.subr.bf16.mxu0 0
      %2558 = vmatpush1.bf16.msra.mxu0 0
      %2559 = vmatprep.subr.bf16.mxu0 0
      %2560 = vmatpush1.bf16.msra.mxu0 0
      %2561 = vmatprep.subr.bf16.mxu0 0
      %2562 = vmatpush1.bf16.msra.mxu0 0
      %2563 = vmatprep.subr.bf16.mxu0 0
      %2564 = vmatpush1.bf16.msra.mxu0 0
      %2565 = vmatprep.subr.bf16.mxu0 0
      %2566 = vmatpush1.bf16.msra.mxu0 0
      %2567 = vmatprep.subr.bf16.mxu0 0
      %2568 = vmatpush1.bf16.msra.mxu0 0
      %2569 = vmatprep.subr.bf16.mxu0 0
      %2570 = vmatpush1.bf16.msra.mxu0 0
      %2571 = vmatprep.subr.bf16.mxu0 0
      %2572 = vmatpush1.bf16.msra.mxu0 0
      %2573 = vmatprep.mubr.bf16.mxu0 0
      %2574 = vmatmul.mubr.bf16.gmra.mrb[0].mxu0 %v2539
      %v2575 = vpop.f32.mrb[0].mxu0
      %v2576 = vadd.f32 0.0, %v2575
      %v2577 = vpop.f32.mrb[0].mxu0
      %v2578 = vpop.f32.mrb[0].mxu0
      %v2579 = vadd.f32 0.0, %v2578
      %v2580 = vpop.f32.mrb[0].mxu0
      %2581 = vdwg.mxu0
      %v2582 = vadd.f32 %v2524, %v2576
      %v2583 = vadd.f32 %v2525, %v2579
      %v2584 = vld [vmem:[%s114 + $0x4] sm:$0xff]
      %v2585 = vld [vmem:[%s114 + $0xc] sm:$0xff]
      %v2586 = vpack.c.bf16 %v2585, %v2584
      %s2587 = scalar_lea.vmem [#allocation12], 88
      %v2588 = vld [vmem:[%s2587] sm:$0xf]
      %v2589 = vld [vmem:[%s2587 + $0x4] sm:$0xf]
      %v2592 = vunpack.c.l.b16 %v2588
      %v2593 = vunpack.c.l.b16 %v2589
      %v2594 = vpack.c.b16 %v2593, %v2592
      %v2597 = vsel %vm135, %v2586, 0
      %2599 = vmatprep.subr.bf16.mxu0 0
      %2600 = vmatpush1.bf16.msra.mxu0 %v2594
      %2601 = vmatprep.subr.bf16.mxu0 0
      %2602 = vmatpush1.bf16.msra.mxu0 0
      %2603 = vmatprep.subr.bf16.mxu0 0
      %2604 = vmatpush1.bf16.msra.mxu0 0
      %2605 = vmatprep.subr.bf16.mxu0 0
      %2606 = vmatpush1.bf16.msra.mxu0 0
      %2607 = vmatprep.subr.bf16.mxu0 0
      %2608 = vmatpush1.bf16.msra.mxu0 0
      %2609 = vmatprep.subr.bf16.mxu0 0
      %2610 = vmatpush1.bf16.msra.mxu0 0
      %2611 = vmatprep.subr.bf16.mxu0 0
      %2612 = vmatpush1.bf16.msra.mxu0 0
      %2613 = vmatprep.subr.bf16.mxu0 0
      %2614 = vmatpush1.bf16.msra.mxu0 0
      %2615 = vmatprep.subr.bf16.mxu0 0
      %2616 = vmatpush1.bf16.msra.mxu0 0
      %2617 = vmatprep.subr.bf16.mxu0 0
      %2618 = vmatpush1.bf16.msra.mxu0 0
      %2619 = vmatprep.subr.bf16.mxu0 0
      %2620 = vmatpush1.bf16.msra.mxu0 0
      %2621 = vmatprep.subr.bf16.mxu0 0
      %2622 = vmatpush1.bf16.msra.mxu0 0
      %2623 = vmatprep.subr.bf16.mxu0 0
      %2624 = vmatpush1.bf16.msra.mxu0 0
      %2625 = vmatprep.subr.bf16.mxu0 0
      %2626 = vmatpush1.bf16.msra.mxu0 0
      %2627 = vmatprep.subr.bf16.mxu0 0
      %2628 = vmatpush1.bf16.msra.mxu0 0
      %2629 = vmatprep.subr.bf16.mxu0 0
      %2630 = vmatpush1.bf16.msra.mxu0 0
      %2631 = vmatprep.mubr.bf16.mxu0 0
      %2632 = vmatmul.mubr.bf16.gmra.mrb[0].mxu0 %v2597
      %v2633 = vpop.f32.mrb[0].mxu0
      %v2634 = vadd.f32 0.0, %v2633
      %v2635 = vpop.f32.mrb[0].mxu0
      %v2636 = vpop.f32.mrb[0].mxu0
      %v2637 = vadd.f32 0.0, %v2636
      %v2638 = vpop.f32.mrb[0].mxu0
      %2639 = vdwg.mxu0
      %v2640 = vadd.f32 %v2582, %v2634
      %v2641 = vadd.f32 %v2583, %v2637
      %v2642 = vld [vmem:[%s114 + $0x5] sm:$0xff]
      %v2643 = vld [vmem:[%s114 + $0xd] sm:$0xff]
      %v2644 = vpack.c.bf16 %v2643, %v2642
      %s2645 = scalar_lea.vmem [#allocation12], 96
      %v2646 = vld [vmem:[%s2645] sm:$0xf]
      %v2647 = vld [vmem:[%s2645 + $0x4] sm:$0xf]
      %v2650 = vunpack.c.l.b16 %v2646
      %v2651 = vunpack.c.l.b16 %v2647
      %v2652 = vpack.c.b16 %v2651, %v2650
      %v2655 = vsel %vm135, %v2644, 0
      %2657 = vmatprep.subr.bf16.mxu0 0
      %2658 = vmatpush1.bf16.msra.mxu0 %v2652
      %2659 = vmatprep.subr.bf16.mxu0 0
      %2660 = vmatpush1.bf16.msra.mxu0 0
      %2661 = vmatprep.subr.bf16.mxu0 0
      %2662 = vmatpush1.bf16.msra.mxu0 0
      %2663 = vmatprep.subr.bf16.mxu0 0
      %2664 = vmatpush1.bf16.msra.mxu0 0
      %2665 = vmatprep.subr.bf16.mxu0 0
      %2666 = vmatpush1.bf16.msra.mxu0 0
      %2667 = vmatprep.subr.bf16.mxu0 0
      %2668 = vmatpush1.bf16.msra.mxu0 0
      %2669 = vmatprep.subr.bf16.mxu0 0
      %2670 = vmatpush1.bf16.msra.mxu0 0
      %2671 = vmatprep.subr.bf16.mxu0 0
      %2672 = vmatpush1.bf16.msra.mxu0 0
      %2673 = vmatprep.subr.bf16.mxu0 0
      %2674 = vmatpush1.bf16.msra.mxu0 0
      %2675 = vmatprep.subr.bf16.mxu0 0
      %2676 = vmatpush1.bf16.msra.mxu0 0
      %2677 = vmatprep.subr.bf16.mxu0 0
      %2678 = vmatpush1.bf16.msra.mxu0 0
      %2679 = vmatprep.subr.bf16.mxu0 0
      %2680 = vmatpush1.bf16.msra.mxu0 0
      %2681 = vmatprep.subr.bf16.mxu0 0
      %2682 = vmatpush1.bf16.msra.mxu0 0
      %2683 = vmatprep.subr.bf16.mxu0 0
      %2684 = vmatpush1.bf16.msra.mxu0 0
      %2685 = vmatprep.subr.bf16.mxu0 0
      %2686 = vmatpush1.bf16.msra.mxu0 0
      %2687 = vmatprep.subr.bf16.mxu0 0
      %2688 = vmatpush1.bf16.msra.mxu0 0
      %2689 = vmatprep.mubr.bf16.mxu0 0
      %2690 = vmatmul.mubr.bf16.gmra.mrb[0].mxu0 %v2655
      %v2691 = vpop.f32.mrb[0].mxu0
      %v2692 = vadd.f32 0.0, %v2691
      %v2693 = vpop.f32.mrb[0].mxu0
      %v2694 = vpop.f32.mrb[0].mxu0
      %v2695 = vadd.f32 0.0, %v2694
      %v2696 = vpop.f32.mrb[0].mxu0
      %2697 = vdwg.mxu0
      %v2698 = vadd.f32 %v2640, %v2692
      %v2699 = vadd.f32 %v2641, %v2695
      %v2700 = vld [vmem:[%s114 + $0x6] sm:$0xff]
      %v2701 = vld [vmem:[%s114 + $0xe] sm:$0xff]
      %v2702 = vpack.c.bf16 %v2701, %v2700
      %s2703 = scalar_lea.vmem [#allocation12], 104
      %v2704 = vld [vmem:[%s2703] sm:$0xf]
      %v2705 = vld [vmem:[%s2703 + $0x4] sm:$0xf]
      %v2708 = vunpack.c.l.b16 %v2704
      %v2709 = vunpack.c.l.b16 %v2705
      %v2710 = vpack.c.b16 %v2709, %v2708
      %v2713 = vsel %vm135, %v2702, 0
      %2715 = vmatprep.subr.bf16.mxu0 0
      %2716 = vmatpush1.bf16.msra.mxu0 %v2710
      %2717 = vmatprep.subr.bf16.mxu0 0
      %2718 = vmatpush1.bf16.msra.mxu0 0
      %2719 = vmatprep.subr.bf16.mxu0 0
      %2720 = vmatpush1.bf16.msra.mxu0 0
      %2721 = vmatprep.subr.bf16.mxu0 0
      %2722 = vmatpush1.bf16.msra.mxu0 0
      %2723 = vmatprep.subr.bf16.mxu0 0
      %2724 = vmatpush1.bf16.msra.mxu0 0
      %2725 = vmatprep.subr.bf16.mxu0 0
      %2726 = vmatpush1.bf16.msra.mxu0 0
      %2727 = vmatprep.subr.bf16.mxu0 0
      %2728 = vmatpush1.bf16.msra.mxu0 0
      %2729 = vmatprep.subr.bf16.mxu0 0
      %2730 = vmatpush1.bf16.msra.mxu0 0
      %2731 = vmatprep.subr.bf16.mxu0 0
      %2732 = vmatpush1.bf16.msra.mxu0 0
      %2733 = vmatprep.subr.bf16.mxu0 0
      %2734 = vmatpush1.bf16.msra.mxu0 0
      %2735 = vmatprep.subr.bf16.mxu0 0
      %2736 = vmatpush1.bf16.msra.mxu0 0
      %2737 = vmatprep.subr.bf16.mxu0 0
      %2738 = vmatpush1.bf16.msra.mxu0 0
      %2739 = vmatprep.subr.bf16.mxu0 0
      %2740 = vmatpush1.bf16.msra.mxu0 0
      %2741 = vmatprep.subr.bf16.mxu0 0
      %2742 = vmatpush1.bf16.msra.mxu0 0
      %2743 = vmatprep.subr.bf16.mxu0 0
      %2744 = vmatpush1.bf16.msra.mxu0 0
      %2745 = vmatprep.subr.bf16.mxu0 0
      %2746 = vmatpush1.bf16.msra.mxu0 0
      %2747 = vmatprep.mubr.bf16.mxu0 0
      %2748 = vmatmul.mubr.bf16.gmra.mrb[0].mxu0 %v2713
      %v2749 = vpop.f32.mrb[0].mxu0
      %v2750 = vadd.f32 0.0, %v2749
      %v2751 = vpop.f32.mrb[0].mxu0
      %v2752 = vpop.f32.mrb[0].mxu0
      %v2753 = vadd.f32 0.0, %v2752
      %v2754 = vpop.f32.mrb[0].mxu0
      %2755 = vdwg.mxu0
      %v2756 = vadd.f32 %v2698, %v2750
      %v2757 = vadd.f32 %v2699, %v2753
      %v2758 = vstv %s1946
      %v2759 = vadd.f32 %v2756, %v2758
      %v2760 = vadd.f32 %v2757, %v2758
      %v2761 = vmax.f32 %v2759, 0.0
      %v2762 = vmax.f32 %v2760, 0.0
      %v2763 = vxor.u32 %v2761, 2147483648
      %v2764 = vxor.u32 %v2762, 2147483648
      %v2765 = vmul.f32 %v2763, 1.442695
      %v2766 = vpow.pop %v2765
      %v2767 = vmul.f32 %v2764, 1.442695
      %v2768 = vpow.pop %v2767
      %v2769 = vadd.f32 %v2766, 1.0
      %v2770 = vadd.f32 %v2768, 1.0
      %v2771 = vrcp.pop %v2769
      %v2772 = vmul.f32 1.0, %v2771
      %v2773 = vrcp.pop %v2770
      %v2774 = vmul.f32 1.0, %v2773
      %v2775 = vstv %s117
      %v2776 = vmul.f32 %v2775, %v1075
      %v2777 = vstv %s118
      %v2778 = vmul.f32 %v2777, %v1930
      %v2779 = vmul.f32 %v2777, %v2772
      %v2780 = vmul.f32 %v2777, %v2774
      %v2781 = vlaneseq
      %v2782 = vshrl.u32 %v2781, 7
      %v2783 = vsub.s32 0, %v2782
      %v2784 = vrot.slane %v2776, %v2783
      %2786 = vbcast.lane.b32.xlu0 %v2784, 256
      %v2787 = vpop.permute.xlu0 %2786
      %s2789 = sor.u32 256, 8
      %2790 = vbcast.lane.b32.xlu0 %v2784, %s2789
      %v2791 = vpop.permute.xlu0 %2790
      %v2792 = vlaneseq
      %v2793 = vshrl.u32 %v2792, 7
      %v2794 = vsub.s32 1, %v2793
      %v2795 = vrot.slane %v2776, %v2794
      %2797 = vbcast.lane.b32.xlu0 %v2795, 256
      %v2798 = vpop.permute.xlu0 %2797
      %s2800 = sor.u32 256, 8
      %2801 = vbcast.lane.b32.xlu0 %v2795, %s2800
      %v2802 = vpop.permute.xlu0 %2801
      %v2803 = vlaneseq
      %v2804 = vshrl.u32 %v2803, 7
      %v2805 = vsub.s32 2, %v2804
      %v2806 = vrot.slane %v2776, %v2805
      %2808 = vbcast.lane.b32.xlu0 %v2806, 256
      %v2809 = vpop.permute.xlu0 %2808
      %s2811 = sor.u32 256, 8
      %2812 = vbcast.lane.b32.xlu0 %v2806, %s2811
      %v2813 = vpop.permute.xlu0 %2812
      %v2814 = vlaneseq
      %v2815 = vshrl.u32 %v2814, 7
      %v2816 = vsub.s32 3, %v2815
      %v2817 = vrot.slane %v2776, %v2816
      %2819 = vbcast.lane.b32.xlu0 %v2817, 256
      %v2820 = vpop.permute.xlu0 %2819
      %s2822 = sor.u32 256, 8
      %2823 = vbcast.lane.b32.xlu0 %v2817, %s2822
      %v2824 = vpop.permute.xlu0 %2823
      %v2827 = vunpack.c.l.s4 1966171168
      %v2828 = vunpack.c.0.s8 %v2827
      %v2829 = vlaneseq
      %v2830 = vshrl.u32 %v2829, 7
      %v2831 = vsub.s32 %v2828, %v2830
      %v2832 = vrot.slane %v2778, %v2831
      %v2833 = vcombine.high %v2832, %v2832
      %v2835 = vunpack.c.l.s4 1966171168
      %v2836 = vunpack.c.0.s8 %v2835
      %v2837 = vlaneseq
      %v2838 = vshrl.u32 %v2837, 7
      %v2839 = vsub.s32 %v2836, %v2838
      %v2840 = vrot.slane %v2832, %v2839
      %v2842 = vunpack.c.l.s4 1966171168
      %v2843 = vunpack.c.0.s8 %v2842
      %v2844 = vlaneseq
      %v2845 = vshrl.u32 %v2844, 7
      %v2846 = vsub.s32 %v2843, %v2845
      %v2847 = vrot.slane %v2833, %v2846
      %v2848 = vcombine.high %v2840, %v2840
      %v2849 = vcombine.high %v2847, %v2847
      %v2850 = vlaneseq
      %v2851 = vshrl.u32 %v2850, 7
      %v2852 = vsub.s32 0, %v2851
      %v2853 = vrot.slane %v2840, %v2852
      %v2854 = vlaneseq
      %v2855 = vshrl.u32 %v2854, 7
      %v2856 = vsub.s32 0, %v2855
      %v2857 = vrot.slane %v2847, %v2856
      %v2858 = vlaneseq
      %v2859 = vshrl.u32 %v2858, 7
      %v2860 = vsub.s32 0, %v2859
      %v2861 = vrot.slane %v2848, %v2860
      %v2862 = vlaneseq
      %v2863 = vshrl.u32 %v2862, 7
      %v2864 = vsub.s32 0, %v2863
      %v2865 = vrot.slane %v2849, %v2864
      %v2870 = vadd.f32 %v2787, %v2853
      %v2871 = vadd.f32 %v2791, %v2853
      %v2872 = vadd.f32 %v2798, %v2857
      %v2873 = vadd.f32 %v2802, %v2857
      %v2874 = vadd.f32 %v2809, %v2861
      %v2875 = vadd.f32 %v2813, %v2861
      %v2876 = vadd.f32 %v2820, %v2865
      %v2877 = vadd.f32 %v2824, %v2865
      %v2878 = vadd.f32 %v2870, %v2779
      %v2879 = vadd.f32 %v2871, %v2780
      %v2880 = vadd.f32 %v2872, %v2779
      %v2881 = vadd.f32 %v2873, %v2780
      %v2882 = vadd.f32 %v2874, %v2779
      %v2883 = vadd.f32 %v2875, %v2780
      %v2884 = vadd.f32 %v2876, %v2779
      %v2885 = vadd.f32 %v2877, %v2780
      %v2886 = vmul.f32 %v127, %v2878
      %v2887 = vmul.f32 %v128, %v2879
      %v2888 = vmul.f32 %v129, %v2880
      %v2889 = vmul.f32 %v130, %v2881
      %v2890 = vmul.f32 %v131, %v2882
      %v2891 = vmul.f32 %v132, %v2883
      %v2892 = vmul.f32 %v133, %v2884
      %v2893 = vmul.f32 %v134, %v2885
      %s2894 = scalar_lea.vmem [#allocation17], %s125
      %2895 = vst.msk [vmem:[%s2894] sm:$0xff] %vm135, %v2886
      %2896 = vst.msk [vmem:[%s2894 + $0x8] sm:$0xff] %vm135, %v2887
      %2897 = vst.msk [vmem:[%s2894 + $0x10] sm:$0xff] %vm135, %v2888
      %2898 = vst.msk [vmem:[%s2894 + $0x18] sm:$0xff] %vm135, %v2889
      %2899 = vst.msk [vmem:[%s2894 + $0x20] sm:$0xff] %vm135, %v2890
      %2900 = vst.msk [vmem:[%s2894 + $0x28] sm:$0xff] %vm135, %v2891
      %2901 = vst.msk [vmem:[%s2894 + $0x30] sm:$0xff] %vm135, %v2892
      %2902 = vst.msk [vmem:[%s2894 + $0x38] sm:$0xff] %vm135, %v2893
    $region54: #{tpu_custom_call.1} parent=1 // loop_footer
      %s124 = sadd.s32 1, %s120
    $region55: #{tpu_custom_call.1} parent=1 // loop_footer_branch
      %119 = sbr.rel target = $region51
    $region56: #{tpu_custom_call.1} parent=1 // loop_exit
      _
    // Predicated region
    $region57: #{tpu_custom_call.1} parent=1 // pred_check
      _
    $region58: #{tpu_custom_call.1} parent=1 // pred_check_branch
      %2904 = sbr.rel (0) target = $region60
    $region59: #{tpu_custom_call.1} parent=1 // pred_region
      %s2906 = ssub.s32 2048, 2048
      %2907 = vsyncadd [#allocation7], %s2906
      %s2908 = sshll.u32 [#allocation17], 4
      %s2909 = int_to_ptr.vmem [resolvable:$true] %s2908
      %2914 = dma.vmem_to_hbm [thread:$0]  %s2909, 2048, %s6, [#allocation7], 128, 128, 8
    $region60: #{tpu_custom_call.1} parent=1 // pred_fallthru
      _
    // Predicated region
    $region61: #{tpu_custom_call.1} parent=1 // pred_check
      _
    $region62: #{tpu_custom_call.1} parent=1 // pred_check_branch
      %2916 = sbr.rel (0) target = $region64
    $region63: #{tpu_custom_call.1} parent=1 // pred_region
      %2917 = dma.done [#allocation7], 2048
    $region64: #{tpu_custom_call.1} parent=1 // pred_fallthru
      _
    %2918 = vsyncpa [#allocation6], 1
    %2919 = vsyncpa [#allocation10], 1
    %2920 = vsyncpa [#allocation13], 1
    %2921 = vsyncpa [#allocation7], 1
    %2922 = vsyncpa [#allocation8], 1
    %2923 = vsyncpa [#allocation16], 1

</llo_original>
